<compile_context>
chip_gen: v7x
topology: tpu7x:2x2x1
jax: 0.10.0
libtpu: 0.0.40
codegen_flags: <defaults>
</compile_context>

<pallas_src>
import math
import functools

import jax
import jax.numpy as jnp
import numpy as np
from jax.experimental import pallas as pl
from jax.experimental.pallas import tpu as pltpu


_MIN_PALLAS_OUT_BYTES = 64 * 1024          # below this, plain XLA wins
_TARGET_BLOCK_BYTES = 6 << 20              # ~6 MiB output block per grid step


def _choose_spatial_tile(hw, c2, n_batch, *, target_bytes=_TARGET_BLOCK_BYTES,
                         itemsize=4):
    """Tile length T along the flattened H*W axis for a (1, c2, T) out block.

    Prefers tiles that (a) are multiples of 128 (lane-dense stores; satisfies
    the (8,128) divisibility rule), (b) divide hw exactly, (c) keep the block
    near `target_bytes` so double-buffered blocks sit comfortably in scoped
    VMEM on every generation, and (d) leave >= 2 total grid steps so both v7x
    TensorCores get work and the DMA pipeline has more than one stage.
    """
    bytes_per_col = c2 * itemsize
    budget_cols = max(128, target_bytes // bytes_per_col)
    if hw <= 128 or hw % 128 != 0:
        # No lane-dense divisor exists.  Full-extent block is always legal
        # (block dims == array dims); use it while it fits the budget,
        # otherwise fall back to a 128-multiple tile with a ragged (masked)
        # last grid step.
        if hw * bytes_per_col <= target_bytes:
            return hw
        return max(128, min(hw // 128, budget_cols // 128) * 128)
    cap = budget_cols
    if n_batch < 2:
        # Only one batch step: force >= 2 spatial steps when the size allows.
        cap = min(cap, max(128, hw // 2))
    best = 128
    for d in range(128, hw + 1, 128):
        if hw % d == 0 and d <= cap:
            best = d
    return best


def _sine_embed_kernel(y_ref, x_ref, coef_y_ref, coef_x_ref, phase_ref,
                       out_ref):
    # y_ref, x_ref      : (1, 1, T) f32  spatial embeds (already cumsum'd and
    #                                    normalized in the wrapper)
    # coef_*_ref, phase : (1, c2, 1) f32 per-channel constants
    # out_ref           : (1, c2, T)     channel-major output block
    y = y_ref[...]                                    # lane-dense, 1 sublane
    x = x_ref[...]
    # Broadcasts: y/x along sublanes (c2), coefs along lanes (T) - both cheap.
    arg = y * coef_y_ref[...] + x * coef_x_ref[...] + phase_ref[...]
    out_ref[...] = jnp.sin(arg).astype(out_ref.dtype)


def position_embedding_sine_wshape(x_shape, mask=None, *, num_pos_feats=64,
                                   temperature=10000, normalize=False,
                                   scale=None, out_dtype=jnp.float32):
    """Pallas implementation of PositionEmbeddingSineWShape.forward.

    x_shape: (B, C, H, W) tuple (only B, H, W are used, like the torch module).
    mask:    optional bool array (B, H, W); True = padded position.
    Returns: (B, 2*num_pos_feats, H, W) in NCHW layout, dtype `out_dtype`
             (float32 by default to match PyTorch; bf16 halves output HBM
             write bytes if consumers accept it).
    """
    if scale is not None and normalize is False:
        raise ValueError("normalize should be True if scale is passed")
    if scale is None:
        scale = 2 * math.pi
    scale = float(scale)

    B, _, H, W = x_shape
    npf = int(num_pos_feats)
    c2 = 2 * npf
    HW = H * W
    eps = 1e-6

    # ---- per-channel constants (channel-major column vectors) -------------
    # dim_t[2k] == dim_t[2k+1], so "sin at even chan / cos at odd chan" is
    # sin(embed * inv_dim[c] + phase[c]) with phase in {0, pi/2}.  coef_y is
    # inv_dim on the y-half of the channels and 0 on the x-half (and vice
    # versa), so the full argument is y*coef_y + x*coef_x + phase.
    i = np.arange(npf, dtype=np.float32)
    dim_t = np.asarray(temperature, np.float64) ** (2.0 * np.floor(i / 2.0) / npf)
    inv_dim = (1.0 / dim_t).astype(np.float32)
    half_phase = np.where(np.arange(npf) % 2 == 0, 0.0,
                          0.5 * np.pi).astype(np.float32)
    coef_y = jnp.asarray(
        np.concatenate([inv_dim, np.zeros(npf, np.float32)])).reshape(1, c2, 1)
    coef_x = jnp.asarray(
        np.concatenate([np.zeros(npf, np.float32), inv_dim])).reshape(1, c2, 1)
    phase = jnp.asarray(
        np.concatenate([half_phase, half_phase])).reshape(1, c2, 1)

    # ---- spatial embeds (tiny, O(B*H*W); stays in XLA) ---------------------
    if mask is None:
        # Batch-independent fast path: pure position counters.
        row = jnp.arange(1, H + 1, dtype=jnp.float32)
        col = jnp.arange(1, W + 1, dtype=jnp.float32)
        if normalize:
            row = row / (H + eps) * scale
            col = col / (W + eps) * scale
        y_flat = jnp.broadcast_to(row[:, None], (H, W)).reshape(1, 1, HW)
        x_flat = jnp.broadcast_to(col[None, :], (H, W)).reshape(1, 1, HW)
        yx_map = lambda b, s: (0, 0, s)          # all batches share one copy
    else:
        # TODO(synk): the cumsum + normalize stays in plain XLA (1/(2*npf) of
        # total work) so the kernel's spatial tiling needs no cumsum carry.
        not_mask = (~mask).astype(jnp.float32)
        y_embed = jnp.cumsum(not_mask, axis=1)
        x_embed = jnp.cumsum(not_mask, axis=2)
        if normalize:
            y_embed = y_embed / (y_embed[:, -1:, :] + eps) * scale
            x_embed = x_embed / (x_embed[:, :, -1:] + eps) * scale
        y_flat = y_embed.reshape(B, 1, HW)
        x_flat = x_embed.reshape(B, 1, HW)
        yx_map = lambda b, s: (b, 0, s)

    itemsize = jnp.dtype(out_dtype).itemsize
    out_bytes = B * c2 * HW * itemsize

    # ---- tiny problems: plain XLA fuses this in one pass ------------------
    if out_bytes < _MIN_PALLAS_OUT_BYTES:
        out = jnp.sin(y_flat * coef_y + x_flat * coef_x + phase).astype(out_dtype)
        out = jnp.broadcast_to(out, (B, c2, HW))
        return out.reshape(B, c2, H, W)

    # ---- Pallas kernel: channel-major (B, c2, H*W) output ------------------
    t = _choose_spatial_tile(HW, c2, B, itemsize=itemsize)
    n_s = pl.cdiv(HW, t)
    const_map = lambda b, s: (0, 0, 0)

    out_flat = pl.pallas_call(
        _sine_embed_kernel,
        out_shape=jax.ShapeDtypeStruct((B, c2, HW), out_dtype),
        grid_spec=pltpu.PrefetchScalarGridSpec(
            num_scalar_prefetch=0,
            grid=(B, n_s),
            in_specs=[
                pl.BlockSpec((1, 1, t), yx_map),
                pl.BlockSpec((1, 1, t), yx_map),
                pl.BlockSpec((1, c2, 1), const_map),
                pl.BlockSpec((1, c2, 1), const_map),
                pl.BlockSpec((1, c2, 1), const_map),
            ],
            out_specs=pl.BlockSpec((1, c2, t), lambda b, s: (b, 0, s)),
        ),
        compiler_params=pltpu.CompilerParams(
            dimension_semantics=("parallel", "parallel"),
            vmem_limit_bytes=32 * 1024 * 1024),
    )(y_flat, x_flat, coef_y, coef_x, phase)

    # Splitting the minor H*W axis back into (H, W) is layout plumbing only
    # (no transpose); the old NHWC->NCHW transpose (a full extra HBM pass over
    # the output) is gone.
    return out_flat.reshape(B, c2, H, W)


def _reference(x_shape, mask, num_pos_feats, temperature, normalize, scale):
    """Pure-JAX transcription of the torch forward, for correctness checking."""
    B, _, H, W = x_shape
    if scale is None:
        scale = 2 * math.pi
    if mask is None:
        mask = jnp.zeros((B, H, W), dtype=jnp.bool_)
    not_mask = ~mask
    y_embed = jnp.cumsum(not_mask.astype(jnp.float32), axis=1)
    x_embed = jnp.cumsum(not_mask.astype(jnp.float32), axis=2)
    if normalize:
        eps = 1e-6
        y_embed = y_embed / (y_embed[:, -1:, :] + eps) * scale
        x_embed = x_embed / (x_embed[:, :, -1:] + eps) * scale
    i = jnp.arange(num_pos_feats, dtype=jnp.float32)
    dim_t = temperature ** (2.0 * jnp.floor(i / 2.0) / num_pos_feats)
    pos_x = x_embed[:, :, :, None] / dim_t
    pos_y = y_embed[:, :, :, None] / dim_t
    pos_x = jnp.stack((jnp.sin(pos_x[:, :, :, 0::2]),
                       jnp.cos(pos_x[:, :, :, 1::2])), axis=4).reshape(B, H, W, -1)
    pos_y = jnp.stack((jnp.sin(pos_y[:, :, :, 0::2]),
                       jnp.cos(pos_y[:, :, :, 1::2])), axis=4).reshape(B, H, W, -1)
    pos = jnp.concatenate((pos_y, pos_x), axis=3).transpose(0, 3, 1, 2)
    return pos


if __name__ == "__main__":
    key = jax.random.PRNGKey(0)

    B, C, H, W = 2, 4, 16, 16
    num_pos_feats = 64
    temperature = 10000

    # Deterministic example inputs: a dummy feature map (only its shape is
    # used, like the torch module) and a padding mask with some True entries.
    x = jax.random.normal(key, (B, C, H, W), dtype=jnp.float32)
    mask = jnp.zeros((B, H, W), dtype=jnp.bool_)
    mask = mask.at[1, :, W - 4:].set(True)     # batch 1 has 4 padded columns

    # Masked + normalize path (Pallas kernel: output 256 KiB > fallback cap).
    pos = position_embedding_sine_wshape(
        x.shape, mask,
        num_pos_feats=num_pos_feats, temperature=temperature,
        normalize=True, scale=2 * math.pi)
    pos = jax.block_until_ready(pos)
    ref = _reference(x.shape, mask, num_pos_feats, temperature, True,
                     2 * math.pi)
    assert pos.shape == (B, 2 * num_pos_feats, H, W), pos.shape
    assert pos.dtype == jnp.float32
    np.testing.assert_allclose(np.asarray(pos), np.asarray(ref),
                               rtol=1e-5, atol=1e-5)

    # mask=None, normalize=False path (Pallas kernel, shared spatial embeds).
    pos0 = position_embedding_sine_wshape(
        x.shape, None,
        num_pos_feats=num_pos_feats, temperature=temperature,
        normalize=False, scale=None)
    pos0 = jax.block_until_ready(pos0)
    ref0 = _reference(x.shape, None, num_pos_feats, temperature, False, None)
    assert pos0.shape == (B, 2 * num_pos_feats, H, W), pos0.shape
    np.testing.assert_allclose(np.asarray(pos0), np.asarray(ref0),
                               rtol=1e-5, atol=1e-5)

    print("KERNEL_OK")
</pallas_src>

<mosaic_0001>
module attributes {stable_mosaic.version = 11 : i64} {
  func.func @_sine_embed_kernel(%arg0: i32, %arg1: i32, %arg2: memref<1x1x256xf32, #tpu.memory_space<vmem>>, %arg3: memref<1x1x256xf32, #tpu.memory_space<vmem>>, %arg4: memref<1x128x1xf32, #tpu.memory_space<vmem>>, %arg5: memref<1x128x1xf32, #tpu.memory_space<vmem>>, %arg6: memref<1x128x1xf32, #tpu.memory_space<vmem>>, %arg7: memref<1x128x256xf32, #tpu.memory_space<vmem>>) attributes {dimension_semantics = [#tpu.dimension_semantics<parallel>, #tpu.dimension_semantics<parallel>], iteration_bounds = array<i64: 2, 1>, scalar_prefetch = 0 : i64, scratch_operands = 0 : i64, tpu.core_type = #tpu.core_type<tc>, window_params = [{transform_indices = @transform_0, window_bounds = array<i64: 1, 1, 256>}, {transform_indices = @transform_1, window_bounds = array<i64: 1, 1, 256>}, {pipeline_mode = #tpu.pipeline_mode<synchronous>, transform_indices = @transform_2, window_bounds = array<i64: 1, 128, 1>}, {pipeline_mode = #tpu.pipeline_mode<synchronous>, transform_indices = @transform_3, window_bounds = array<i64: 1, 128, 1>}, {pipeline_mode = #tpu.pipeline_mode<synchronous>, transform_indices = @transform_4, window_bounds = array<i64: 1, 128, 1>}, {transform_indices = @transform_5, window_bounds = array<i64: 1, 128, 256>}]} {
    %c0 = arith.constant 0 : index
    %c0_0 = arith.constant 0 : index
    %c0_1 = arith.constant 0 : index
    %0 = vector.load %arg2[%c0, %c0_0, %c0_1] : memref<1x1x256xf32, #tpu.memory_space<vmem>>, vector<1x1x256xf32>
    %c0_2 = arith.constant 0 : index
    %c0_3 = arith.constant 0 : index
    %c0_4 = arith.constant 0 : index
    %1 = vector.load %arg3[%c0_2, %c0_3, %c0_4] : memref<1x1x256xf32, #tpu.memory_space<vmem>>, vector<1x1x256xf32>
    %c0_5 = arith.constant 0 : index
    %c0_6 = arith.constant 0 : index
    %c0_7 = arith.constant 0 : index
    %2 = vector.load %arg4[%c0_5, %c0_6, %c0_7] : memref<1x128x1xf32, #tpu.memory_space<vmem>>, vector<1x128x1xf32>
    %3 = vector.broadcast %0 : vector<1x1x256xf32> to vector<1x128x256xf32>
    %4 = vector.broadcast %2 : vector<1x128x1xf32> to vector<1x128x256xf32>
    %5 = arith.mulf %3, %4 : vector<1x128x256xf32>
    %c0_8 = arith.constant 0 : index
    %c0_9 = arith.constant 0 : index
    %c0_10 = arith.constant 0 : index
    %6 = vector.load %arg5[%c0_8, %c0_9, %c0_10] : memref<1x128x1xf32, #tpu.memory_space<vmem>>, vector<1x128x1xf32>
    %7 = vector.broadcast %1 : vector<1x1x256xf32> to vector<1x128x256xf32>
    %8 = vector.broadcast %6 : vector<1x128x1xf32> to vector<1x128x256xf32>
    %9 = arith.mulf %7, %8 : vector<1x128x256xf32>
    %10 = arith.addf %5, %9 : vector<1x128x256xf32>
    %c0_11 = arith.constant 0 : index
    %c0_12 = arith.constant 0 : index
    %c0_13 = arith.constant 0 : index
    %11 = vector.load %arg6[%c0_11, %c0_12, %c0_13] : memref<1x128x1xf32, #tpu.memory_space<vmem>>, vector<1x128x1xf32>
    %12 = vector.broadcast %11 : vector<1x128x1xf32> to vector<1x128x256xf32>
    %13 = arith.addf %10, %12 : vector<1x128x256xf32>
    %14 = math.sin %13 : vector<1x128x256xf32>
    %c0_14 = arith.constant 0 : index
    %c0_15 = arith.constant 0 : index
    %c0_16 = arith.constant 0 : index
    %15 = vector.load %arg7[%c0_14, %c0_15, %c0_16] : memref<1x128x256xf32, #tpu.memory_space<vmem>>, vector<1x128x256xf32>
    tpu.vector_store %arg7[%c0_14, %c0_15, %c0_16], %14 {strides = array<i32>} : memref<1x128x256xf32, #tpu.memory_space<vmem>>, vector<1x128x256xf32>,
    return
  }
  func.func @transform_0(%arg0: i32, %arg1: i32) -> (i32, i32, i32) {
    %c0_i32 = arith.constant 0 : i32
    %c0_i32_0 = arith.constant 0 : i32
    return %arg0, %c0_i32, %arg1 : i32, i32, i32
  }
  func.func @transform_1(%arg0: i32, %arg1: i32) -> (i32, i32, i32) {
    %c0_i32 = arith.constant 0 : i32
    %c0_i32_0 = arith.constant 0 : i32
    return %arg0, %c0_i32, %arg1 : i32, i32, i32
  }
  func.func @transform_2(%arg0: i32, %arg1: i32) -> (i32, i32, i32) {
    %c0_i32 = arith.constant 0 : i32
    %c0_i32_0 = arith.constant 0 : i32
    %c0_i32_1 = arith.constant 0 : i32
    %c0_i32_2 = arith.constant 0 : i32
    return %c0_i32, %c0_i32_0, %c0_i32_1 : i32, i32, i32
  }
  func.func @transform_3(%arg0: i32, %arg1: i32) -> (i32, i32, i32) {
    %c0_i32 = arith.constant 0 : i32
    %c0_i32_0 = arith.constant 0 : i32
    %c0_i32_1 = arith.constant 0 : i32
    %c0_i32_2 = arith.constant 0 : i32
    return %c0_i32, %c0_i32_0, %c0_i32_1 : i32, i32, i32
  }
  func.func @transform_4(%arg0: i32, %arg1: i32) -> (i32, i32, i32) {
    %c0_i32 = arith.constant 0 : i32
    %c0_i32_0 = arith.constant 0 : i32
    %c0_i32_1 = arith.constant 0 : i32
    %c0_i32_2 = arith.constant 0 : i32
    return %c0_i32, %c0_i32_0, %c0_i32_1 : i32, i32, i32
  }
  func.func @transform_5(%arg0: i32, %arg1: i32) -> (i32, i32, i32) {
    %c0_i32 = arith.constant 0 : i32
    %c0_i32_0 = arith.constant 0 : i32
    return %arg0, %c0_i32, %arg1 : i32, i32, i32
  }
}

</mosaic_0001>

<llo_original>
// kernel: tpu_custom_call.1
$region0: #{tpu_custom_call.1}
  #allocation0 [shape = 'u32[]', space=smem, size = 0x4, offset = 0x4, fixed_abs, tag = 'smem constant byte address 0x4 - core index']
  #allocation1 [shape = 'u32[144,128]{1,0:T(1,128)}', space=vmem, size = 0x12000, scoped, tag = 'internal scratch']
  %s0 = inlined_call_operand.vmem [shape: f32[2,1,256], index: 0, kind: input, shape index: {}]
  %s1 = inlined_call_operand.vmem [shape: f32[2,1,256], index: 1, kind: input, shape index: {}]
  %s2 = inlined_call_operand.vmem [shape: f32[1,128,1], index: 2, kind: input, shape index: {}]
  %s3 = inlined_call_operand.vmem [shape: f32[1,128,1], index: 3, kind: input, shape index: {}]
  %s4 = inlined_call_operand.vmem [shape: f32[1,128,1], index: 4, kind: input, shape index: {}]
  %s5 = inlined_call_operand.hbm [shape: f32[2,128,256], index: 5, kind: output, shape index: {}]
  %s6 = sld [smem:[#allocation0]]
  $region53: #{tpu_custom_call.1} parent=0
    _
  %s8 = ssub.s32 1, %s6
  %s9 = scalar_select 0, %s8, %s6
  $region1: #{tpu_custom_call.1} parent=0
    #allocation2 [shape = 'u8[262144]{0}', space=vmem, size = 0x40000, scoped, tag = 'output window, operand 0']
    #allocation3 [shape = 's32[2]{0}', space=sflag, size = 0x8, scoped, tag = 'scoped memory for tpu_custom_call.1']
    %10 = vsyncpa [#allocation3], 0
    %s11 = scalar_lea.sflag [#allocation3], 1
    %12 = vsyncpa %s11, 0
    loop: start=0, step=1, limit=4
    $region2: #{tpu_custom_call.1} parent=1 // loop_pre_header
      _
    $region3: #{tpu_custom_call.1} parent=1 // loop_header
      %s14 = sphi 0, %s18
      %p15 = scmp.ge.s32.totalorder %s14, 4
      %s21 = sphi 0, %s33
      %s22 = sphi 0, %s29
      %s23 = sphi 0, %s21
      %s24 = sphi 0, %s22
      %s25 = sphi 0, %s23
      %s26 = sphi 0, %s24
      %s38 = sphi 0, %s40
      %s41 = sphi 0, %s38
      %s42 = sphi 0, %s41
      %s58 = sphi 0, %s42
      %s66 = sphi 0, %s68
      %s69 = sphi 0, %s66
      %s70 = sphi 0, %s69
      %s86 = sphi 0, %s70
      %s90 = sphi 0, %s90
      %s92 = sphi 0, %s90
      %s93 = sphi 0, %s92
      %s107 = sphi 0, %s93
      %s111 = sphi 0, %s111
      %s113 = sphi 0, %s111
      %s114 = sphi 0, %s113
      %s128 = sphi 0, %s114
      %s132 = sphi 0, %s132
      %s134 = sphi 0, %s132
      %s135 = sphi 0, %s134
      %s149 = sphi 0, %s135
      %s157 = sphi 0, %s159
      %s160 = sphi 0, %s157
      %s161 = sphi 0, %s160
      %s177 = sphi 0, %s161
    $region4: #{tpu_custom_call.1} parent=1 // loop_header_branch
      %17 = sbr.rel (%p15) target = $region8
    $region5: #{tpu_custom_call.1} parent=1 // loop_body
      %s19 = ssub.s32 %s14, 1
      %s20 = ssub.s32 %s14, 2
      %s27 = sadd.s32 1, %s22
      %p28 = scmp.ge.s32.totalorder %s27, 1
      %s29 = scalar_select %p28, 0, %s27
      %s30 = sadd.s32 1, %s21
      %s31 = scalar_select %p28, %s30, %s21
      %p32 = scmp.ge.s32.totalorder %s31, 2
      %s33 = scalar_select %p32, 0, %s31
      %s34 = ssub.s32 %s21, %s33
      %s35 = ssub.s32 %s22, %s29
      %s36 = sor.u32 %s34, %s35
      %p37 = scmp.eq.s32.totalorder %s36, 0
      %s39 = sadd.s32 %s38, 1
      %s40 = scalar_select %p37, %s38, %s39
      %p43 = pneg %p37
      %p44 = scmp.eq.s32.totalorder %s14, 1
      %p45 = por %p43, %p44
      %p46 = scmp.ne.s32.totalorder %s38, %s41
      %p47 = scmp.eq.s32.totalorder %s14, 0
      %p48 = por %p46, %p47
      %p49 = scmp.ne.s32.totalorder %s38, %s41
      %p50 = scmp.eq.s32.totalorder %s19, 1
      %p51 = por %p49, %p50
      %p52 = scmp.ne.s32.totalorder %s41, %s42
      %p53 = scmp.eq.s32.totalorder %s19, 0
      %p54 = por %p52, %p53
      %p55 = scmp.ne.s32.totalorder %s41, %s42
      %p56 = scmp.eq.s32.totalorder %s20, 1
      %p57 = por %p55, %p56
      %p59 = scmp.ne.s32.totalorder %s42, %s58
      %p60 = scmp.eq.s32.totalorder %s20, 0
      %p61 = por %p59, %p60
      %s62 = ssub.s32 %s21, %s33
      %s63 = ssub.s32 %s22, %s29
      %s64 = sor.u32 %s62, %s63
      %p65 = scmp.eq.s32.totalorder %s64, 0
      %s67 = sadd.s32 %s66, 1
      %s68 = scalar_select %p65, %s66, %s67
      %p71 = pneg %p65
      %p72 = scmp.eq.s32.totalorder %s14, 1
      %p73 = por %p71, %p72
      %p74 = scmp.ne.s32.totalorder %s66, %s69
      %p75 = scmp.eq.s32.totalorder %s14, 0
      %p76 = por %p74, %p75
      %p77 = scmp.ne.s32.totalorder %s66, %s69
      %p78 = scmp.eq.s32.totalorder %s19, 1
      %p79 = por %p77, %p78
      %p80 = scmp.ne.s32.totalorder %s69, %s70
      %p81 = scmp.eq.s32.totalorder %s19, 0
      %p82 = por %p80, %p81
      %p83 = scmp.ne.s32.totalorder %s69, %s70
      %p84 = scmp.eq.s32.totalorder %s20, 1
      %p85 = por %p83, %p84
      %p87 = scmp.ne.s32.totalorder %s70, %s86
      %p88 = scmp.eq.s32.totalorder %s20, 0
      %p89 = por %p87, %p88
      %s91 = sadd.s32 %s90, 1
      %p94 = scmp.eq.s32.totalorder %s14, 1
      %p95 = scmp.ne.s32.totalorder %s90, %s92
      %p96 = scmp.eq.s32.totalorder %s14, 0
      %p97 = por %p95, %p96
      %p98 = scmp.ne.s32.totalorder %s90, %s92
      %p99 = scmp.eq.s32.totalorder %s19, 1
      %p100 = por %p98, %p99
      %p101 = scmp.ne.s32.totalorder %s92, %s93
      %p102 = scmp.eq.s32.totalorder %s19, 0
      %p103 = por %p101, %p102
      %p104 = scmp.ne.s32.totalorder %s92, %s93
      %p105 = scmp.eq.s32.totalorder %s20, 1
      %p106 = por %p104, %p105
      %p108 = scmp.ne.s32.totalorder %s93, %s107
      %p109 = scmp.eq.s32.totalorder %s20, 0
      %p110 = por %p108, %p109
      %s112 = sadd.s32 %s111, 1
      %p115 = scmp.eq.s32.totalorder %s14, 1
      %p116 = scmp.ne.s32.totalorder %s111, %s113
      %p117 = scmp.eq.s32.totalorder %s14, 0
      %p118 = por %p116, %p117
      %p119 = scmp.ne.s32.totalorder %s111, %s113
      %p120 = scmp.eq.s32.totalorder %s19, 1
      %p121 = por %p119, %p120
      %p122 = scmp.ne.s32.totalorder %s113, %s114
      %p123 = scmp.eq.s32.totalorder %s19, 0
      %p124 = por %p122, %p123
      %p125 = scmp.ne.s32.totalorder %s113, %s114
      %p126 = scmp.eq.s32.totalorder %s20, 1
      %p127 = por %p125, %p126
      %p129 = scmp.ne.s32.totalorder %s114, %s128
      %p130 = scmp.eq.s32.totalorder %s20, 0
      %p131 = por %p129, %p130
      %s133 = sadd.s32 %s132, 1
      %p136 = scmp.eq.s32.totalorder %s14, 1
      %p137 = scmp.ne.s32.totalorder %s132, %s134
      %p138 = scmp.eq.s32.totalorder %s14, 0
      %p139 = por %p137, %p138
      %p140 = scmp.ne.s32.totalorder %s132, %s134
      %p141 = scmp.eq.s32.totalorder %s19, 1
      %p142 = por %p140, %p141
      %p143 = scmp.ne.s32.totalorder %s134, %s135
      %p144 = scmp.eq.s32.totalorder %s19, 0
      %p145 = por %p143, %p144
      %p146 = scmp.ne.s32.totalorder %s134, %s135
      %p147 = scmp.eq.s32.totalorder %s20, 1
      %p148 = por %p146, %p147
      %p150 = scmp.ne.s32.totalorder %s135, %s149
      %p151 = scmp.eq.s32.totalorder %s20, 0
      %p152 = por %p150, %p151
      %s153 = ssub.s32 %s21, %s33
      %s154 = ssub.s32 %s22, %s29
      %s155 = sor.u32 %s153, %s154
      %p156 = scmp.eq.s32.totalorder %s155, 0
      %s158 = sadd.s32 %s157, 1
      %s159 = scalar_select %p156, %s157, %s158
      %p162 = pneg %p156
      %p163 = scmp.eq.s32.totalorder %s14, 1
      %p164 = por %p162, %p163
      %p165 = scmp.ne.s32.totalorder %s157, %s160
      %p166 = scmp.eq.s32.totalorder %s14, 0
      %p167 = por %p165, %p166
      %p168 = scmp.ne.s32.totalorder %s157, %s160
      %p169 = scmp.eq.s32.totalorder %s19, 1
      %p170 = por %p168, %p169
      %p171 = scmp.ne.s32.totalorder %s160, %s161
      %p172 = scmp.eq.s32.totalorder %s19, 0
      %p173 = por %p171, %p172
      %p174 = scmp.ne.s32.totalorder %s160, %s161
      %p175 = scmp.eq.s32.totalorder %s20, 1
      %p176 = por %p174, %p175
      %p178 = scmp.ne.s32.totalorder %s161, %s177
      %p179 = scmp.eq.s32.totalorder %s20, 0
      %p180 = por %p178, %p179
      %p181 = scmp.le.s32.totalorder 1, %s14
      %p182 = scmp.lt.s32.totalorder %s14, 3
      %p183 = pnand %p181, %p182
      %p184 = pneg %p183
      // Predicated region
      $region9: #{tpu_custom_call.1} parent=5 // pred_check
        _
      $region10: #{tpu_custom_call.1} parent=5 // pred_check_branch
        %186 = sbr.rel (%p183) target = $region12
      $region11: #{tpu_custom_call.1} parent=5 // pred_region
        %s187 = ssub.s32 %s14, 1
        // Predicated region
        $region13: #{tpu_custom_call.1} parent=11 // pred_check
          %p188 = pneg %p103
        $region14: #{tpu_custom_call.1} parent=11 // pred_check_branch
          %190 = sbr.rel (%p188) target = $region16
        $region15: #{tpu_custom_call.1} parent=11 // pred_region
          _
        $region16: #{tpu_custom_call.1} parent=11 // pred_fallthru
          _
        // Predicated region
        $region17: #{tpu_custom_call.1} parent=11 // pred_check
          %p191 = pneg %p124
        $region18: #{tpu_custom_call.1} parent=11 // pred_check_branch
          %193 = sbr.rel (%p191) target = $region20
        $region19: #{tpu_custom_call.1} parent=11 // pred_region
          _
        $region20: #{tpu_custom_call.1} parent=11 // pred_fallthru
          _
        // Predicated region
        $region21: #{tpu_custom_call.1} parent=11 // pred_check
          %p194 = pneg %p145
        $region22: #{tpu_custom_call.1} parent=11 // pred_check_branch
          %196 = sbr.rel (%p194) target = $region24
        $region23: #{tpu_custom_call.1} parent=11 // pred_region
          _
        $region24: #{tpu_custom_call.1} parent=11 // pred_fallthru
          _
      $region12: #{tpu_custom_call.1} parent=5 // pred_fallthru
        _
      %p197 = scmp.lt.s32.totalorder %s14, 2
      // Predicated region
      $region25: #{tpu_custom_call.1} parent=5 // pred_check
        %p198 = pneg %p197
      $region26: #{tpu_custom_call.1} parent=5 // pred_check_branch
        %200 = sbr.rel (%p198) target = $region28
      $region27: #{tpu_custom_call.1} parent=5 // pred_region
        // Predicated region
        $region29: #{tpu_custom_call.1} parent=27 // pred_check
          %p201 = pneg %p48
        $region30: #{tpu_custom_call.1} parent=27 // pred_check_branch
          %203 = sbr.rel (%p201) target = $region32
        $region31: #{tpu_custom_call.1} parent=27 // pred_region
          %s204 = smul.u32 2, %s22
          %p205 = scmp.lt.s32.totalorder %s21, 1
          %s206 = scalar_select %p205, %s21, 1
          %p207 = scmp.lt.s32.totalorder %s204, 1
          %s208 = scalar_select %p207, %s204, 1
          %s209 = smul.addr %s206, 2
          %s210 = sadd.s32 %s208, %s209
          %s211 = scalar_lea.vmem %s0, %s210
          %s212 = smul.u32 2, %s22
        $region32: #{tpu_custom_call.1} parent=27 // pred_fallthru
          _
        // Predicated region
        $region33: #{tpu_custom_call.1} parent=27 // pred_check
          %p213 = pneg %p76
        $region34: #{tpu_custom_call.1} parent=27 // pred_check_branch
          %215 = sbr.rel (%p213) target = $region36
        $region35: #{tpu_custom_call.1} parent=27 // pred_region
          %s216 = smul.u32 2, %s22
          %p217 = scmp.lt.s32.totalorder %s21, 1
          %s218 = scalar_select %p217, %s21, 1
          %p219 = scmp.lt.s32.totalorder %s216, 1
          %s220 = scalar_select %p219, %s216, 1
          %s221 = smul.addr %s218, 2
          %s222 = sadd.s32 %s220, %s221
          %s223 = scalar_lea.vmem %s1, %s222
          %s224 = smul.u32 2, %s22
        $region36: #{tpu_custom_call.1} parent=27 // pred_fallthru
          _
      $region28: #{tpu_custom_call.1} parent=5 // pred_fallthru
        _
      %p225 = scmp.le.s32.totalorder 1, %s14
      %p226 = scmp.lt.s32.totalorder %s14, 3
      %p227 = pnand %p225, %p226
      %p228 = pneg %p227
      // Predicated region
      $region37: #{tpu_custom_call.1} parent=5 // pred_check
        _
      $region38: #{tpu_custom_call.1} parent=5 // pred_check_branch
        %230 = sbr.rel (%p227) target = $region40
      $region39: #{tpu_custom_call.1} parent=5 // pred_region
        %s231 = ssub.s32 %s14, 1
        %s232 = smul.u32 2, %s24
        %p233 = scmp.lt.s32.totalorder %s23, 1
        %s234 = scalar_select %p233, %s23, 1
        %p235 = scmp.lt.s32.totalorder %s232, 1
        %s236 = scalar_select %p235, %s232, 1
        %s237 = smul.addr %s234, 2
        %s238 = sadd.s32 %s236, %s237
        %s239 = scalar_lea.vmem %s0, %s238
        %p240 = pneg %p54
        %p241 = pneg %p51
        %s242 = smul.u32 2, %s24
        %p243 = scmp.lt.s32.totalorder %s23, 1
        %s244 = scalar_select %p243, %s23, 1
        %p245 = scmp.lt.s32.totalorder %s242, 1
        %s246 = scalar_select %p245, %s242, 1
        %s247 = smul.addr %s244, 2
        %s248 = sadd.s32 %s246, %s247
        %s249 = scalar_lea.vmem %s1, %s248
        %p250 = pneg %p82
        %p251 = pneg %p79
        %p252 = pneg %p103
        %p253 = pneg %p100
        %p254 = pneg %p124
        %p255 = pneg %p121
        %p256 = pneg %p145
        %p257 = pneg %p142
        %p258 = pneg %p173
        %p259 = pneg %p170
        %s260 = sand.u32 %s160, 1
        %s261 = scalar_lea.sflag [#allocation3], %s260
        %s262 = sand.u32 %s160, 1
        %s263 = smul.addr %s262, 256
        %s264 = scalar_lea.vmem [#allocation2], %s263
        %s265 = smul.u32 2, %s24
        %p266 = scmp.lt.s32.totalorder %s23, 1
        %s267 = scalar_select %p266, %s23, 1
        %p268 = scmp.lt.s32.totalorder %s265, 1
        %s269 = scalar_select %p268, %s265, 1
        %s270 = smul.addr %s267, 2
        %s271 = sadd.s32 %s269, %s270
        %s272 = scalar_lea.vmem %s0, %s271
        %s273 = smul.u32 2, %s24
        %s274 = smul.u32 2, %s24
        %p275 = scmp.lt.s32.totalorder %s23, 1
        %s276 = scalar_select %p275, %s23, 1
        %p277 = scmp.lt.s32.totalorder %s274, 1
        %s278 = scalar_select %p277, %s274, 1
        %s279 = smul.addr %s276, 2
        %s280 = sadd.s32 %s278, %s279
        %s281 = scalar_lea.vmem %s1, %s280
        %s282 = smul.u32 2, %s24
        %s283 = smul.u32 2, %s24
        %v284 = vld [vmem:[%s272] sm:$0x3]
        %v285 = vld [vmem:[%s281] sm:$0x3]
        %v286 = vld [vmem:[%s2] sm:$0xff]
        %v287 = vld [vmem:[%s2 + $0x8] sm:$0xff]
        %v288 = vld [vmem:[%s2 + $0x10] sm:$0xff]
        %v289 = vld [vmem:[%s2 + $0x18] sm:$0xff]
        %v290 = vld [vmem:[%s2 + $0x20] sm:$0xff]
        %v291 = vld [vmem:[%s2 + $0x28] sm:$0xff]
        %v292 = vld [vmem:[%s2 + $0x30] sm:$0xff]
        %v293 = vld [vmem:[%s2 + $0x38] sm:$0xff]
        %v294 = vld [vmem:[%s2 + $0x40] sm:$0xff]
        %v295 = vld [vmem:[%s2 + $0x48] sm:$0xff]
        %v296 = vld [vmem:[%s2 + $0x50] sm:$0xff]
        %v297 = vld [vmem:[%s2 + $0x58] sm:$0xff]
        %v298 = vld [vmem:[%s2 + $0x60] sm:$0xff]
        %v299 = vld [vmem:[%s2 + $0x68] sm:$0xff]
        %v300 = vld [vmem:[%s2 + $0x70] sm:$0xff]
        %v301 = vld [vmem:[%s2 + $0x78] sm:$0xff]
        %v303 = vlaneseq
        %v304 = vshrl.u32 %v303, 7
        %v305 = vsub.s32 0, %v304
        %v306 = vrot.slane %v284, %v305
        %v307 = vlaneseq
        %v308 = vshrl.u32 %v307, 7
        %v309 = vsub.s32 1, %v308
        %v310 = vrot.slane %v284, %v309
        %314 = vset.pattern.permute.xlu0 0
        %315 = vperm.xlu0 %314, %v286
        %v316 = vpop.permute.xlu0 %315
        %319 = vset.pattern.permute.xlu0 0
        %320 = vperm.xlu0 %319, %v287
        %v321 = vpop.permute.xlu0 %320
        %324 = vset.pattern.permute.xlu0 0
        %325 = vperm.xlu0 %324, %v288
        %v326 = vpop.permute.xlu0 %325
        %329 = vset.pattern.permute.xlu0 0
        %330 = vperm.xlu0 %329, %v289
        %v331 = vpop.permute.xlu0 %330
        %334 = vset.pattern.permute.xlu0 0
        %335 = vperm.xlu0 %334, %v290
        %v336 = vpop.permute.xlu0 %335
        %339 = vset.pattern.permute.xlu0 0
        %340 = vperm.xlu0 %339, %v291
        %v341 = vpop.permute.xlu0 %340
        %344 = vset.pattern.permute.xlu0 0
        %345 = vperm.xlu0 %344, %v292
        %v346 = vpop.permute.xlu0 %345
        %349 = vset.pattern.permute.xlu0 0
        %350 = vperm.xlu0 %349, %v293
        %v351 = vpop.permute.xlu0 %350
        %354 = vset.pattern.permute.xlu0 0
        %355 = vperm.xlu0 %354, %v294
        %v356 = vpop.permute.xlu0 %355
        %359 = vset.pattern.permute.xlu0 0
        %360 = vperm.xlu0 %359, %v295
        %v361 = vpop.permute.xlu0 %360
        %364 = vset.pattern.permute.xlu0 0
        %365 = vperm.xlu0 %364, %v296
        %v366 = vpop.permute.xlu0 %365
        %369 = vset.pattern.permute.xlu0 0
        %370 = vperm.xlu0 %369, %v297
        %v371 = vpop.permute.xlu0 %370
        %374 = vset.pattern.permute.xlu0 0
        %375 = vperm.xlu0 %374, %v298
        %v376 = vpop.permute.xlu0 %375
        %379 = vset.pattern.permute.xlu0 0
        %380 = vperm.xlu0 %379, %v299
        %v381 = vpop.permute.xlu0 %380
        %384 = vset.pattern.permute.xlu0 0
        %385 = vperm.xlu0 %384, %v300
        %v386 = vpop.permute.xlu0 %385
        %389 = vset.pattern.permute.xlu0 0
        %390 = vperm.xlu0 %389, %v301
        %v391 = vpop.permute.xlu0 %390
        %v393 = vmul.f32 %v306, %v316
        %v394 = vmul.f32 %v310, %v316
        %v395 = vmul.f32 %v306, %v321
        %v396 = vmul.f32 %v310, %v321
        %v397 = vmul.f32 %v306, %v326
        %v398 = vmul.f32 %v310, %v326
        %v399 = vmul.f32 %v306, %v331
        %v400 = vmul.f32 %v310, %v331
        %v401 = vmul.f32 %v306, %v336
        %v402 = vmul.f32 %v310, %v336
        %v403 = vmul.f32 %v306, %v341
        %v404 = vmul.f32 %v310, %v341
        %v405 = vmul.f32 %v306, %v346
        %v406 = vmul.f32 %v310, %v346
        %v407 = vmul.f32 %v306, %v351
        %v408 = vmul.f32 %v310, %v351
        %v409 = vmul.f32 %v306, %v356
        %v410 = vmul.f32 %v310, %v356
        %v411 = vmul.f32 %v306, %v361
        %v412 = vmul.f32 %v310, %v361
        %v413 = vmul.f32 %v306, %v366
        %v414 = vmul.f32 %v310, %v366
        %v415 = vmul.f32 %v306, %v371
        %v416 = vmul.f32 %v310, %v371
        %v417 = vmul.f32 %v306, %v376
        %v418 = vmul.f32 %v310, %v376
        %v419 = vmul.f32 %v306, %v381
        %v420 = vmul.f32 %v310, %v381
        %v421 = vmul.f32 %v306, %v386
        %v422 = vmul.f32 %v310, %v386
        %v423 = vmul.f32 %v306, %v391
        %v424 = vmul.f32 %v310, %v391
        %v425 = vld [vmem:[%s3] sm:$0xff]
        %v426 = vld [vmem:[%s3 + $0x8] sm:$0xff]
        %v427 = vld [vmem:[%s3 + $0x10] sm:$0xff]
        %v428 = vld [vmem:[%s3 + $0x18] sm:$0xff]
        %v429 = vld [vmem:[%s3 + $0x20] sm:$0xff]
        %v430 = vld [vmem:[%s3 + $0x28] sm:$0xff]
        %v431 = vld [vmem:[%s3 + $0x30] sm:$0xff]
        %v432 = vld [vmem:[%s3 + $0x38] sm:$0xff]
        %v433 = vld [vmem:[%s3 + $0x40] sm:$0xff]
        %v434 = vld [vmem:[%s3 + $0x48] sm:$0xff]
        %v435 = vld [vmem:[%s3 + $0x50] sm:$0xff]
        %v436 = vld [vmem:[%s3 + $0x58] sm:$0xff]
        %v437 = vld [vmem:[%s3 + $0x60] sm:$0xff]
        %v438 = vld [vmem:[%s3 + $0x68] sm:$0xff]
        %v439 = vld [vmem:[%s3 + $0x70] sm:$0xff]
        %v440 = vld [vmem:[%s3 + $0x78] sm:$0xff]
        %v442 = vlaneseq
        %v443 = vshrl.u32 %v442, 7
        %v444 = vsub.s32 0, %v443
        %v445 = vrot.slane %v285, %v444
        %v446 = vlaneseq
        %v447 = vshrl.u32 %v446, 7
        %v448 = vsub.s32 1, %v447
        %v449 = vrot.slane %v285, %v448
        %453 = vset.pattern.permute.xlu0 0
        %454 = vperm.xlu0 %453, %v425
        %v455 = vpop.permute.xlu0 %454
        %458 = vset.pattern.permute.xlu0 0
        %459 = vperm.xlu0 %458, %v426
        %v460 = vpop.permute.xlu0 %459
        %463 = vset.pattern.permute.xlu0 0
        %464 = vperm.xlu0 %463, %v427
        %v465 = vpop.permute.xlu0 %464
        %468 = vset.pattern.permute.xlu0 0
        %469 = vperm.xlu0 %468, %v428
        %v470 = vpop.permute.xlu0 %469
        %473 = vset.pattern.permute.xlu0 0
        %474 = vperm.xlu0 %473, %v429
        %v475 = vpop.permute.xlu0 %474
        %478 = vset.pattern.permute.xlu0 0
        %479 = vperm.xlu0 %478, %v430
        %v480 = vpop.permute.xlu0 %479
        %483 = vset.pattern.permute.xlu0 0
        %484 = vperm.xlu0 %483, %v431
        %v485 = vpop.permute.xlu0 %484
        %488 = vset.pattern.permute.xlu0 0
        %489 = vperm.xlu0 %488, %v432
        %v490 = vpop.permute.xlu0 %489
        %493 = vset.pattern.permute.xlu0 0
        %494 = vperm.xlu0 %493, %v433
        %v495 = vpop.permute.xlu0 %494
        %498 = vset.pattern.permute.xlu0 0
        %499 = vperm.xlu0 %498, %v434
        %v500 = vpop.permute.xlu0 %499
        %503 = vset.pattern.permute.xlu0 0
        %504 = vperm.xlu0 %503, %v435
        %v505 = vpop.permute.xlu0 %504
        %508 = vset.pattern.permute.xlu0 0
        %509 = vperm.xlu0 %508, %v436
        %v510 = vpop.permute.xlu0 %509
        %513 = vset.pattern.permute.xlu0 0
        %514 = vperm.xlu0 %513, %v437
        %v515 = vpop.permute.xlu0 %514
        %518 = vset.pattern.permute.xlu0 0
        %519 = vperm.xlu0 %518, %v438
        %v520 = vpop.permute.xlu0 %519
        %523 = vset.pattern.permute.xlu0 0
        %524 = vperm.xlu0 %523, %v439
        %v525 = vpop.permute.xlu0 %524
        %528 = vset.pattern.permute.xlu0 0
        %529 = vperm.xlu0 %528, %v440
        %v530 = vpop.permute.xlu0 %529
        %v532 = vmul.f32 %v445, %v455
        %v533 = vmul.f32 %v449, %v455
        %v534 = vmul.f32 %v445, %v460
        %v535 = vmul.f32 %v449, %v460
        %v536 = vmul.f32 %v445, %v465
        %v537 = vmul.f32 %v449, %v465
        %v538 = vmul.f32 %v445, %v470
        %v539 = vmul.f32 %v449, %v470
        %v540 = vmul.f32 %v445, %v475
        %v541 = vmul.f32 %v449, %v475
        %v542 = vmul.f32 %v445, %v480
        %v543 = vmul.f32 %v449, %v480
        %v544 = vmul.f32 %v445, %v485
        %v545 = vmul.f32 %v449, %v485
        %v546 = vmul.f32 %v445, %v490
        %v547 = vmul.f32 %v449, %v490
        %v548 = vmul.f32 %v445, %v495
        %v549 = vmul.f32 %v449, %v495
        %v550 = vmul.f32 %v445, %v500
        %v551 = vmul.f32 %v449, %v500
        %v552 = vmul.f32 %v445, %v505
        %v553 = vmul.f32 %v449, %v505
        %v554 = vmul.f32 %v445, %v510
        %v555 = vmul.f32 %v449, %v510
        %v556 = vmul.f32 %v445, %v515
        %v557 = vmul.f32 %v449, %v515
        %v558 = vmul.f32 %v445, %v520
        %v559 = vmul.f32 %v449, %v520
        %v560 = vmul.f32 %v445, %v525
        %v561 = vmul.f32 %v449, %v525
        %v562 = vmul.f32 %v445, %v530
        %v563 = vmul.f32 %v449, %v530
        %v564 = vadd.f32 %v393, %v532
        %v565 = vadd.f32 %v394, %v533
        %v566 = vadd.f32 %v395, %v534
        %v567 = vadd.f32 %v396, %v535
        %v568 = vadd.f32 %v397, %v536
        %v569 = vadd.f32 %v398, %v537
        %v570 = vadd.f32 %v399, %v538
        %v571 = vadd.f32 %v400, %v539
        %v572 = vadd.f32 %v401, %v540
        %v573 = vadd.f32 %v402, %v541
        %v574 = vadd.f32 %v403, %v542
        %v575 = vadd.f32 %v404, %v543
        %v576 = vadd.f32 %v405, %v544
        %v577 = vadd.f32 %v406, %v545
        %v578 = vadd.f32 %v407, %v546
        %v579 = vadd.f32 %v408, %v547
        %v580 = vadd.f32 %v409, %v548
        %v581 = vadd.f32 %v410, %v549
        %v582 = vadd.f32 %v411, %v550
        %v583 = vadd.f32 %v412, %v551
        %v584 = vadd.f32 %v413, %v552
        %v585 = vadd.f32 %v414, %v553
        %v586 = vadd.f32 %v415, %v554
        %v587 = vadd.f32 %v416, %v555
        %v588 = vadd.f32 %v417, %v556
        %v589 = vadd.f32 %v418, %v557
        %v590 = vadd.f32 %v419, %v558
        %v591 = vadd.f32 %v420, %v559
        %v592 = vadd.f32 %v421, %v560
        %v593 = vadd.f32 %v422, %v561
        %v594 = vadd.f32 %v423, %v562
        %v595 = vadd.f32 %v424, %v563
        %v596 = vld [vmem:[%s4] sm:$0xff]
        %v597 = vld [vmem:[%s4 + $0x8] sm:$0xff]
        %v598 = vld [vmem:[%s4 + $0x10] sm:$0xff]
        %v599 = vld [vmem:[%s4 + $0x18] sm:$0xff]
        %v600 = vld [vmem:[%s4 + $0x20] sm:$0xff]
        %v601 = vld [vmem:[%s4 + $0x28] sm:$0xff]
        %v602 = vld [vmem:[%s4 + $0x30] sm:$0xff]
        %v603 = vld [vmem:[%s4 + $0x38] sm:$0xff]
        %v604 = vld [vmem:[%s4 + $0x40] sm:$0xff]
        %v605 = vld [vmem:[%s4 + $0x48] sm:$0xff]
        %v606 = vld [vmem:[%s4 + $0x50] sm:$0xff]
        %v607 = vld [vmem:[%s4 + $0x58] sm:$0xff]
        %v608 = vld [vmem:[%s4 + $0x60] sm:$0xff]
        %v609 = vld [vmem:[%s4 + $0x68] sm:$0xff]
        %v610 = vld [vmem:[%s4 + $0x70] sm:$0xff]
        %v611 = vld [vmem:[%s4 + $0x78] sm:$0xff]
        %613 = vset.pattern.permute.xlu0 0
        %614 = vperm.xlu0 %613, %v596
        %v615 = vpop.permute.xlu0 %614
        %618 = vset.pattern.permute.xlu0 0
        %619 = vperm.xlu0 %618, %v597
        %v620 = vpop.permute.xlu0 %619
        %623 = vset.pattern.permute.xlu0 0
        %624 = vperm.xlu0 %623, %v598
        %v625 = vpop.permute.xlu0 %624
        %628 = vset.pattern.permute.xlu0 0
        %629 = vperm.xlu0 %628, %v599
        %v630 = vpop.permute.xlu0 %629
        %633 = vset.pattern.permute.xlu0 0
        %634 = vperm.xlu0 %633, %v600
        %v635 = vpop.permute.xlu0 %634
        %638 = vset.pattern.permute.xlu0 0
        %639 = vperm.xlu0 %638, %v601
        %v640 = vpop.permute.xlu0 %639
        %643 = vset.pattern.permute.xlu0 0
        %644 = vperm.xlu0 %643, %v602
        %v645 = vpop.permute.xlu0 %644
        %648 = vset.pattern.permute.xlu0 0
        %649 = vperm.xlu0 %648, %v603
        %v650 = vpop.permute.xlu0 %649
        %653 = vset.pattern.permute.xlu0 0
        %654 = vperm.xlu0 %653, %v604
        %v655 = vpop.permute.xlu0 %654
        %658 = vset.pattern.permute.xlu0 0
        %659 = vperm.xlu0 %658, %v605
        %v660 = vpop.permute.xlu0 %659
        %663 = vset.pattern.permute.xlu0 0
        %664 = vperm.xlu0 %663, %v606
        %v665 = vpop.permute.xlu0 %664
        %668 = vset.pattern.permute.xlu0 0
        %669 = vperm.xlu0 %668, %v607
        %v670 = vpop.permute.xlu0 %669
        %673 = vset.pattern.permute.xlu0 0
        %674 = vperm.xlu0 %673, %v608
        %v675 = vpop.permute.xlu0 %674
        %678 = vset.pattern.permute.xlu0 0
        %679 = vperm.xlu0 %678, %v609
        %v680 = vpop.permute.xlu0 %679
        %683 = vset.pattern.permute.xlu0 0
        %684 = vperm.xlu0 %683, %v610
        %v685 = vpop.permute.xlu0 %684
        %688 = vset.pattern.permute.xlu0 0
        %689 = vperm.xlu0 %688, %v611
        %v690 = vpop.permute.xlu0 %689
        %v692 = vadd.f32 %v564, %v615
        %v693 = vadd.f32 %v565, %v615
        %v694 = vadd.f32 %v566, %v620
        %v695 = vadd.f32 %v567, %v620
        %v696 = vadd.f32 %v568, %v625
        %v697 = vadd.f32 %v569, %v625
        %v698 = vadd.f32 %v570, %v630
        %v699 = vadd.f32 %v571, %v630
        %v700 = vadd.f32 %v572, %v635
        %v701 = vadd.f32 %v573, %v635
        %v702 = vadd.f32 %v574, %v640
        %v703 = vadd.f32 %v575, %v640
        %v704 = vadd.f32 %v576, %v645
        %v705 = vadd.f32 %v577, %v645
        %v706 = vadd.f32 %v578, %v650
        %v707 = vadd.f32 %v579, %v650
        %v708 = vadd.f32 %v580, %v655
        %v709 = vadd.f32 %v581, %v655
        %v710 = vadd.f32 %v582, %v660
        %v711 = vadd.f32 %v583, %v660
        %v712 = vadd.f32 %v584, %v665
        %v713 = vadd.f32 %v585, %v665
        %v714 = vadd.f32 %v586, %v670
        %v715 = vadd.f32 %v587, %v670
        %v716 = vadd.f32 %v588, %v675
        %v717 = vadd.f32 %v589, %v675
        %v718 = vadd.f32 %v590, %v680
        %v719 = vadd.f32 %v591, %v680
        %v720 = vadd.f32 %v592, %v685
        %v721 = vadd.f32 %v593, %v685
        %v722 = vadd.f32 %v594, %v690
        %v723 = vadd.f32 %v595, %v690
        %v724 = vand.u32 2147483647, %v692
        %vm725 = vcmp.le.f32.partialorder %v724, 0.7853982
        %vm726 = vcmp.lt.s32.totalorder %v692, 0
        %v727 = vand.u32 %v692, 2139095040
        %v728 = vshrl.u32 %v727, 23
        %v729 = vsub.s32 %v728, 127
        %v730 = vand.u32 2147483647, %v692
        %v731 = vand.u32 %v730, 8388607
        %v732 = vor.u32 %v731, 8388608
        %v733 = vsub.s32 0, %v732
        %v734 = vadd.s32 %v729, 1
        %vm735 = vcmp.gt.s32.totalorder %v734, 0
        %v736 = vsel %vm735, %v734, 0
        %v737 = vshrl.u32 %v736, 5
        %v738 = vand.u32 %v736, 31
        %v739 = vsub.s32 32, %v738
        %v740 = vshrl.u32 683565275, %v739
        %v741 = vshll.u32 683565275, %v738
        %v742 = vshrl.u32 2475754826, %v739
        %v743 = vor.u32 %v741, %v742
        %v744 = vshll.u32 2475754826, %v738
        %v745 = vshrl.u32 2131351028, %v739
        %v746 = vor.u32 %v744, %v745
        %v747 = vshll.u32 2131351028, %v738
        %v748 = vshrl.u32 2102212464, %v739
        %v749 = vor.u32 %v747, %v748
        %v750 = vshll.u32 2102212464, %v738
        %v751 = vshrl.u32 920167782, %v739
        %v752 = vor.u32 %v750, %v751
        %v753 = vshll.u32 920167782, %v738
        %v754 = vshrl.u32 1326507024, %v739
        %v755 = vor.u32 %v753, %v754
        %vm756 = vcmp.lt.s32.totalorder %v737, 1
        %vm757 = vcmp.lt.s32.totalorder %v737, 2
        %vm758 = vcmp.lt.s32.totalorder %v737, 3
        %vm759 = vcmp.lt.s32.totalorder %v737, 4
        %v760 = vsel %vm756, %v740, %v743
        %v761 = vsel %vm759, %v749, 2102212464
        %v762 = vsel %vm758, %v746, %v761
        %v763 = vsel %vm757, %v760, %v762
        %v764 = vsel %vm756, %v743, %v746
        %v765 = vsel %vm759, %v752, 920167782
        %v766 = vsel %vm758, %v749, %v765
        %v767 = vsel %vm757, %v764, %v766
        %v768 = vsel %vm756, %v746, %v749
        %v769 = vsel %vm759, %v755, 1326507024
        %v770 = vsel %vm758, %v752, %v769
        %v771 = vsel %vm757, %v768, %v770
        %v772 = vshll.u32 %v732, 8
        %v773 = vmul.u32.u64.compose %v772, %v771
        %v774 = vextract.low.u32 %v773
        %v775 = vextract.high.u32 %v773
        %v776 = vmul.u32.u64.compose %v772, %v767
        %v777 = vextract.low.u32 %v776
        %v778 = vextract.high.u32 %v776
        %v779 = vmul.u32 %v772, %v763
        %v780 = vadd.s32 %v775, %v777
        %vm781 = vc.u32 %v775, %v777
        %v782 = vadd.s32 %v778, 1
        %v783 = vsel %vm781, %v782, %v778
        %v784 = vadd.s32 %v779, %v783
        %v785 = vadd.s32 %v784, 536870912
        %v786 = vshrl.u32 %v785, 30
        %v787 = vshll.u32 %v786, 30
        %v788 = vsub.s32 %v784, %v787
        %vm789 = vcmp.lt.s32.totalorder %v788, 0
        %v790 = vsub.s32 0, %v788
        %v791 = vsel %vm789, %v790, %v788
        %v792 = vclz %v791
        %v793 = vsub.s32 %v792, 2
        %vm794 = vcmp.gt.s32.totalorder 0, %v793
        %v795 = vsel %vm794, 0, %v793
        %v796 = vsub.s32 32, %v795
        %v797 = vshll.u32 %v788, %v795
        %v798 = vshrl.u32 %v780, %v796
        %v799 = vor.u32 %v797, %v798
        %v800 = vsub.s32 4294967266, %v795
        %v801 = vadd.s32 %v800, 127
        %v802 = vshll.u32 %v801, 23
        %v803 = vor.u32 4788187, %v802
        %v804 = vand.u32 2147483647, %v803
        %v806 = vcvt.s32.f32 %v799
        %v807 = vmul.f32 %v806, %v804
        %v808 = vxor.u32 %v807, 2147483648
        %v809 = vsel %vm726, %v808, %v807
        %v810 = vsub.s32 4, %v786
        %v811 = vsel %vm726, %v810, %v786
        %v812 = vsel %vm725, %v692, %v809
        %v813 = vsel %vm725, 0, %v811
        %v814 = vcosq.f32.pop %v812
        %v815 = vsinq.f32.pop %v812
        %vm816 = vweird.f32 %v692
        %v817 = vadd.s32 %v813, 3
        %v818 = vand.u32 %v817, 3
        %vm819 = vcmp.lt.s32.totalorder %v818, 2
        %vm820 = vcmp.eq.s32.totalorder %v818, 0
        %v821 = vxor.u32 %v815, 2147483648
        %v822 = vsel %vm820, %v814, %v821
        %vm823 = vcmp.eq.s32.totalorder %v818, 2
        %v824 = vxor.u32 %v814, 2147483648
        %v825 = vsel %vm823, %v824, %v815
        %v826 = vsel %vm819, %v822, %v825
        %v827 = vsel %vm816, nan, %v826
        %v828 = vand.u32 2147483647, %v693
        %vm829 = vcmp.le.f32.partialorder %v828, 0.7853982
        %vm830 = vcmp.lt.s32.totalorder %v693, 0
        %v831 = vand.u32 %v693, 2139095040
        %v832 = vshrl.u32 %v831, 23
        %v833 = vsub.s32 %v832, 127
        %v834 = vand.u32 2147483647, %v693
        %v835 = vand.u32 %v834, 8388607
        %v836 = vor.u32 %v835, 8388608
        %v837 = vsub.s32 0, %v836
        %v838 = vadd.s32 %v833, 1
        %vm839 = vcmp.gt.s32.totalorder %v838, 0
        %v840 = vsel %vm839, %v838, 0
        %v841 = vshrl.u32 %v840, 5
        %v842 = vand.u32 %v840, 31
        %v843 = vsub.s32 32, %v842
        %v844 = vshrl.u32 683565275, %v843
        %v845 = vshll.u32 683565275, %v842
        %v846 = vshrl.u32 2475754826, %v843
        %v847 = vor.u32 %v845, %v846
        %v848 = vshll.u32 2475754826, %v842
        %v849 = vshrl.u32 2131351028, %v843
        %v850 = vor.u32 %v848, %v849
        %v851 = vshll.u32 2131351028, %v842
        %v852 = vshrl.u32 2102212464, %v843
        %v853 = vor.u32 %v851, %v852
        %v854 = vshll.u32 2102212464, %v842
        %v855 = vshrl.u32 920167782, %v843
        %v856 = vor.u32 %v854, %v855
        %v857 = vshll.u32 920167782, %v842
        %v858 = vshrl.u32 1326507024, %v843
        %v859 = vor.u32 %v857, %v858
        %vm860 = vcmp.lt.s32.totalorder %v841, 1
        %vm861 = vcmp.lt.s32.totalorder %v841, 2
        %vm862 = vcmp.lt.s32.totalorder %v841, 3
        %vm863 = vcmp.lt.s32.totalorder %v841, 4
        %v864 = vsel %vm860, %v844, %v847
        %v865 = vsel %vm863, %v853, 2102212464
        %v866 = vsel %vm862, %v850, %v865
        %v867 = vsel %vm861, %v864, %v866
        %v868 = vsel %vm860, %v847, %v850
        %v869 = vsel %vm863, %v856, 920167782
        %v870 = vsel %vm862, %v853, %v869
        %v871 = vsel %vm861, %v868, %v870
        %v872 = vsel %vm860, %v850, %v853
        %v873 = vsel %vm863, %v859, 1326507024
        %v874 = vsel %vm862, %v856, %v873
        %v875 = vsel %vm861, %v872, %v874
        %v876 = vshll.u32 %v836, 8
        %v877 = vmul.u32.u64.compose %v876, %v875
        %v878 = vextract.low.u32 %v877
        %v879 = vextract.high.u32 %v877
        %v880 = vmul.u32.u64.compose %v876, %v871
        %v881 = vextract.low.u32 %v880
        %v882 = vextract.high.u32 %v880
        %v883 = vmul.u32 %v876, %v867
        %v884 = vadd.s32 %v879, %v881
        %vm885 = vc.u32 %v879, %v881
        %v886 = vadd.s32 %v882, 1
        %v887 = vsel %vm885, %v886, %v882
        %v888 = vadd.s32 %v883, %v887
        %v889 = vadd.s32 %v888, 536870912
        %v890 = vshrl.u32 %v889, 30
        %v891 = vshll.u32 %v890, 30
        %v892 = vsub.s32 %v888, %v891
        %vm893 = vcmp.lt.s32.totalorder %v892, 0
        %v894 = vsub.s32 0, %v892
        %v895 = vsel %vm893, %v894, %v892
        %v896 = vclz %v895
        %v897 = vsub.s32 %v896, 2
        %vm898 = vcmp.gt.s32.totalorder 0, %v897
        %v899 = vsel %vm898, 0, %v897
        %v900 = vsub.s32 32, %v899
        %v901 = vshll.u32 %v892, %v899
        %v902 = vshrl.u32 %v884, %v900
        %v903 = vor.u32 %v901, %v902
        %v904 = vsub.s32 4294967266, %v899
        %v905 = vadd.s32 %v904, 127
        %v906 = vshll.u32 %v905, 23
        %v907 = vor.u32 4788187, %v906
        %v908 = vand.u32 2147483647, %v907
        %v910 = vcvt.s32.f32 %v903
        %v911 = vmul.f32 %v910, %v908
        %v912 = vxor.u32 %v911, 2147483648
        %v913 = vsel %vm830, %v912, %v911
        %v914 = vsub.s32 4, %v890
        %v915 = vsel %vm830, %v914, %v890
        %v916 = vsel %vm829, %v693, %v913
        %v917 = vsel %vm829, 0, %v915
        %v918 = vcosq.f32.pop %v916
        %v919 = vsinq.f32.pop %v916
        %vm920 = vweird.f32 %v693
        %v921 = vadd.s32 %v917, 3
        %v922 = vand.u32 %v921, 3
        %vm923 = vcmp.lt.s32.totalorder %v922, 2
        %vm924 = vcmp.eq.s32.totalorder %v922, 0
        %v925 = vxor.u32 %v919, 2147483648
        %v926 = vsel %vm924, %v918, %v925
        %vm927 = vcmp.eq.s32.totalorder %v922, 2
        %v928 = vxor.u32 %v918, 2147483648
        %v929 = vsel %vm927, %v928, %v919
        %v930 = vsel %vm923, %v926, %v929
        %v931 = vsel %vm920, nan, %v930
        %v932 = vand.u32 2147483647, %v694
        %vm933 = vcmp.le.f32.partialorder %v932, 0.7853982
        %vm934 = vcmp.lt.s32.totalorder %v694, 0
        %v935 = vand.u32 %v694, 2139095040
        %v936 = vshrl.u32 %v935, 23
        %v937 = vsub.s32 %v936, 127
        %v938 = vand.u32 2147483647, %v694
        %v939 = vand.u32 %v938, 8388607
        %v940 = vor.u32 %v939, 8388608
        %v941 = vsub.s32 0, %v940
        %v942 = vadd.s32 %v937, 1
        %vm943 = vcmp.gt.s32.totalorder %v942, 0
        %v944 = vsel %vm943, %v942, 0
        %v945 = vshrl.u32 %v944, 5
        %v946 = vand.u32 %v944, 31
        %v947 = vsub.s32 32, %v946
        %v948 = vshrl.u32 683565275, %v947
        %v949 = vshll.u32 683565275, %v946
        %v950 = vshrl.u32 2475754826, %v947
        %v951 = vor.u32 %v949, %v950
        %v952 = vshll.u32 2475754826, %v946
        %v953 = vshrl.u32 2131351028, %v947
        %v954 = vor.u32 %v952, %v953
        %v955 = vshll.u32 2131351028, %v946
        %v956 = vshrl.u32 2102212464, %v947
        %v957 = vor.u32 %v955, %v956
        %v958 = vshll.u32 2102212464, %v946
        %v959 = vshrl.u32 920167782, %v947
        %v960 = vor.u32 %v958, %v959
        %v961 = vshll.u32 920167782, %v946
        %v962 = vshrl.u32 1326507024, %v947
        %v963 = vor.u32 %v961, %v962
        %vm964 = vcmp.lt.s32.totalorder %v945, 1
        %vm965 = vcmp.lt.s32.totalorder %v945, 2
        %vm966 = vcmp.lt.s32.totalorder %v945, 3
        %vm967 = vcmp.lt.s32.totalorder %v945, 4
        %v968 = vsel %vm964, %v948, %v951
        %v969 = vsel %vm967, %v957, 2102212464
        %v970 = vsel %vm966, %v954, %v969
        %v971 = vsel %vm965, %v968, %v970
        %v972 = vsel %vm964, %v951, %v954
        %v973 = vsel %vm967, %v960, 920167782
        %v974 = vsel %vm966, %v957, %v973
        %v975 = vsel %vm965, %v972, %v974
        %v976 = vsel %vm964, %v954, %v957
        %v977 = vsel %vm967, %v963, 1326507024
        %v978 = vsel %vm966, %v960, %v977
        %v979 = vsel %vm965, %v976, %v978
        %v980 = vshll.u32 %v940, 8
        %v981 = vmul.u32.u64.compose %v980, %v979
        %v982 = vextract.low.u32 %v981
        %v983 = vextract.high.u32 %v981
        %v984 = vmul.u32.u64.compose %v980, %v975
        %v985 = vextract.low.u32 %v984
        %v986 = vextract.high.u32 %v984
        %v987 = vmul.u32 %v980, %v971
        %v988 = vadd.s32 %v983, %v985
        %vm989 = vc.u32 %v983, %v985
        %v990 = vadd.s32 %v986, 1
        %v991 = vsel %vm989, %v990, %v986
        %v992 = vadd.s32 %v987, %v991
        %v993 = vadd.s32 %v992, 536870912
        %v994 = vshrl.u32 %v993, 30
        %v995 = vshll.u32 %v994, 30
        %v996 = vsub.s32 %v992, %v995
        %vm997 = vcmp.lt.s32.totalorder %v996, 0
        %v998 = vsub.s32 0, %v996
        %v999 = vsel %vm997, %v998, %v996
        %v1000 = vclz %v999
        %v1001 = vsub.s32 %v1000, 2
        %vm1002 = vcmp.gt.s32.totalorder 0, %v1001
        %v1003 = vsel %vm1002, 0, %v1001
        %v1004 = vsub.s32 32, %v1003
        %v1005 = vshll.u32 %v996, %v1003
        %v1006 = vshrl.u32 %v988, %v1004
        %v1007 = vor.u32 %v1005, %v1006
        %v1008 = vsub.s32 4294967266, %v1003
        %v1009 = vadd.s32 %v1008, 127
        %v1010 = vshll.u32 %v1009, 23
        %v1011 = vor.u32 4788187, %v1010
        %v1012 = vand.u32 2147483647, %v1011
        %v1014 = vcvt.s32.f32 %v1007
        %v1015 = vmul.f32 %v1014, %v1012
        %v1016 = vxor.u32 %v1015, 2147483648
        %v1017 = vsel %vm934, %v1016, %v1015
        %v1018 = vsub.s32 4, %v994
        %v1019 = vsel %vm934, %v1018, %v994
        %v1020 = vsel %vm933, %v694, %v1017
        %v1021 = vsel %vm933, 0, %v1019
        %v1022 = vcosq.f32.pop %v1020
        %v1023 = vsinq.f32.pop %v1020
        %vm1024 = vweird.f32 %v694
        %v1025 = vadd.s32 %v1021, 3
        %v1026 = vand.u32 %v1025, 3
        %vm1027 = vcmp.lt.s32.totalorder %v1026, 2
        %vm1028 = vcmp.eq.s32.totalorder %v1026, 0
        %v1029 = vxor.u32 %v1023, 2147483648
        %v1030 = vsel %vm1028, %v1022, %v1029
        %vm1031 = vcmp.eq.s32.totalorder %v1026, 2
        %v1032 = vxor.u32 %v1022, 2147483648
        %v1033 = vsel %vm1031, %v1032, %v1023
        %v1034 = vsel %vm1027, %v1030, %v1033
        %v1035 = vsel %vm1024, nan, %v1034
        %v1036 = vand.u32 2147483647, %v695
        %vm1037 = vcmp.le.f32.partialorder %v1036, 0.7853982
        %vm1038 = vcmp.lt.s32.totalorder %v695, 0
        %v1039 = vand.u32 %v695, 2139095040
        %v1040 = vshrl.u32 %v1039, 23
        %v1041 = vsub.s32 %v1040, 127
        %v1042 = vand.u32 2147483647, %v695
        %v1043 = vand.u32 %v1042, 8388607
        %v1044 = vor.u32 %v1043, 8388608
        %v1045 = vsub.s32 0, %v1044
        %v1046 = vadd.s32 %v1041, 1
        %vm1047 = vcmp.gt.s32.totalorder %v1046, 0
        %v1048 = vsel %vm1047, %v1046, 0
        %v1049 = vshrl.u32 %v1048, 5
        %v1050 = vand.u32 %v1048, 31
        %v1051 = vsub.s32 32, %v1050
        %v1052 = vshrl.u32 683565275, %v1051
        %v1053 = vshll.u32 683565275, %v1050
        %v1054 = vshrl.u32 2475754826, %v1051
        %v1055 = vor.u32 %v1053, %v1054
        %v1056 = vshll.u32 2475754826, %v1050
        %v1057 = vshrl.u32 2131351028, %v1051
        %v1058 = vor.u32 %v1056, %v1057
        %v1059 = vshll.u32 2131351028, %v1050
        %v1060 = vshrl.u32 2102212464, %v1051
        %v1061 = vor.u32 %v1059, %v1060
        %v1062 = vshll.u32 2102212464, %v1050
        %v1063 = vshrl.u32 920167782, %v1051
        %v1064 = vor.u32 %v1062, %v1063
        %v1065 = vshll.u32 920167782, %v1050
        %v1066 = vshrl.u32 1326507024, %v1051
        %v1067 = vor.u32 %v1065, %v1066
        %vm1068 = vcmp.lt.s32.totalorder %v1049, 1
        %vm1069 = vcmp.lt.s32.totalorder %v1049, 2
        %vm1070 = vcmp.lt.s32.totalorder %v1049, 3
        %vm1071 = vcmp.lt.s32.totalorder %v1049, 4
        %v1072 = vsel %vm1068, %v1052, %v1055
        %v1073 = vsel %vm1071, %v1061, 2102212464
        %v1074 = vsel %vm1070, %v1058, %v1073
        %v1075 = vsel %vm1069, %v1072, %v1074
        %v1076 = vsel %vm1068, %v1055, %v1058
        %v1077 = vsel %vm1071, %v1064, 920167782
        %v1078 = vsel %vm1070, %v1061, %v1077
        %v1079 = vsel %vm1069, %v1076, %v1078
        %v1080 = vsel %vm1068, %v1058, %v1061
        %v1081 = vsel %vm1071, %v1067, 1326507024
        %v1082 = vsel %vm1070, %v1064, %v1081
        %v1083 = vsel %vm1069, %v1080, %v1082
        %v1084 = vshll.u32 %v1044, 8
        %v1085 = vmul.u32.u64.compose %v1084, %v1083
        %v1086 = vextract.low.u32 %v1085
        %v1087 = vextract.high.u32 %v1085
        %v1088 = vmul.u32.u64.compose %v1084, %v1079
        %v1089 = vextract.low.u32 %v1088
        %v1090 = vextract.high.u32 %v1088
        %v1091 = vmul.u32 %v1084, %v1075
        %v1092 = vadd.s32 %v1087, %v1089
        %vm1093 = vc.u32 %v1087, %v1089
        %v1094 = vadd.s32 %v1090, 1
        %v1095 = vsel %vm1093, %v1094, %v1090
        %v1096 = vadd.s32 %v1091, %v1095
        %v1097 = vadd.s32 %v1096, 536870912
        %v1098 = vshrl.u32 %v1097, 30
        %v1099 = vshll.u32 %v1098, 30
        %v1100 = vsub.s32 %v1096, %v1099
        %vm1101 = vcmp.lt.s32.totalorder %v1100, 0
        %v1102 = vsub.s32 0, %v1100
        %v1103 = vsel %vm1101, %v1102, %v1100
        %v1104 = vclz %v1103
        %v1105 = vsub.s32 %v1104, 2
        %vm1106 = vcmp.gt.s32.totalorder 0, %v1105
        %v1107 = vsel %vm1106, 0, %v1105
        %v1108 = vsub.s32 32, %v1107
        %v1109 = vshll.u32 %v1100, %v1107
        %v1110 = vshrl.u32 %v1092, %v1108
        %v1111 = vor.u32 %v1109, %v1110
        %v1112 = vsub.s32 4294967266, %v1107
        %v1113 = vadd.s32 %v1112, 127
        %v1114 = vshll.u32 %v1113, 23
        %v1115 = vor.u32 4788187, %v1114
        %v1116 = vand.u32 2147483647, %v1115
        %v1118 = vcvt.s32.f32 %v1111
        %v1119 = vmul.f32 %v1118, %v1116
        %v1120 = vxor.u32 %v1119, 2147483648
        %v1121 = vsel %vm1038, %v1120, %v1119
        %v1122 = vsub.s32 4, %v1098
        %v1123 = vsel %vm1038, %v1122, %v1098
        %v1124 = vsel %vm1037, %v695, %v1121
        %v1125 = vsel %vm1037, 0, %v1123
        %v1126 = vcosq.f32.pop %v1124
        %v1127 = vsinq.f32.pop %v1124
        %vm1128 = vweird.f32 %v695
        %v1129 = vadd.s32 %v1125, 3
        %v1130 = vand.u32 %v1129, 3
        %vm1131 = vcmp.lt.s32.totalorder %v1130, 2
        %vm1132 = vcmp.eq.s32.totalorder %v1130, 0
        %v1133 = vxor.u32 %v1127, 2147483648
        %v1134 = vsel %vm1132, %v1126, %v1133
        %vm1135 = vcmp.eq.s32.totalorder %v1130, 2
        %v1136 = vxor.u32 %v1126, 2147483648
        %v1137 = vsel %vm1135, %v1136, %v1127
        %v1138 = vsel %vm1131, %v1134, %v1137
        %v1139 = vsel %vm1128, nan, %v1138
        %v1140 = vand.u32 2147483647, %v696
        %vm1141 = vcmp.le.f32.partialorder %v1140, 0.7853982
        %vm1142 = vcmp.lt.s32.totalorder %v696, 0
        %v1143 = vand.u32 %v696, 2139095040
        %v1144 = vshrl.u32 %v1143, 23
        %v1145 = vsub.s32 %v1144, 127
        %v1146 = vand.u32 2147483647, %v696
        %v1147 = vand.u32 %v1146, 8388607
        %v1148 = vor.u32 %v1147, 8388608
        %v1149 = vsub.s32 0, %v1148
        %v1150 = vadd.s32 %v1145, 1
        %vm1151 = vcmp.gt.s32.totalorder %v1150, 0
        %v1152 = vsel %vm1151, %v1150, 0
        %v1153 = vshrl.u32 %v1152, 5
        %v1154 = vand.u32 %v1152, 31
        %v1155 = vsub.s32 32, %v1154
        %v1156 = vshrl.u32 683565275, %v1155
        %v1157 = vshll.u32 683565275, %v1154
        %v1158 = vshrl.u32 2475754826, %v1155
        %v1159 = vor.u32 %v1157, %v1158
        %v1160 = vshll.u32 2475754826, %v1154
        %v1161 = vshrl.u32 2131351028, %v1155
        %v1162 = vor.u32 %v1160, %v1161
        %v1163 = vshll.u32 2131351028, %v1154
        %v1164 = vshrl.u32 2102212464, %v1155
        %v1165 = vor.u32 %v1163, %v1164
        %v1166 = vshll.u32 2102212464, %v1154
        %v1167 = vshrl.u32 920167782, %v1155
        %v1168 = vor.u32 %v1166, %v1167
        %v1169 = vshll.u32 920167782, %v1154
        %v1170 = vshrl.u32 1326507024, %v1155
        %v1171 = vor.u32 %v1169, %v1170
        %vm1172 = vcmp.lt.s32.totalorder %v1153, 1
        %vm1173 = vcmp.lt.s32.totalorder %v1153, 2
        %vm1174 = vcmp.lt.s32.totalorder %v1153, 3
        %vm1175 = vcmp.lt.s32.totalorder %v1153, 4
        %v1176 = vsel %vm1172, %v1156, %v1159
        %v1177 = vsel %vm1175, %v1165, 2102212464
        %v1178 = vsel %vm1174, %v1162, %v1177
        %v1179 = vsel %vm1173, %v1176, %v1178
        %v1180 = vsel %vm1172, %v1159, %v1162
        %v1181 = vsel %vm1175, %v1168, 920167782
        %v1182 = vsel %vm1174, %v1165, %v1181
        %v1183 = vsel %vm1173, %v1180, %v1182
        %v1184 = vsel %vm1172, %v1162, %v1165
        %v1185 = vsel %vm1175, %v1171, 1326507024
        %v1186 = vsel %vm1174, %v1168, %v1185
        %v1187 = vsel %vm1173, %v1184, %v1186
        %v1188 = vshll.u32 %v1148, 8
        %v1189 = vmul.u32.u64.compose %v1188, %v1187
        %v1190 = vextract.low.u32 %v1189
        %v1191 = vextract.high.u32 %v1189
        %v1192 = vmul.u32.u64.compose %v1188, %v1183
        %v1193 = vextract.low.u32 %v1192
        %v1194 = vextract.high.u32 %v1192
        %v1195 = vmul.u32 %v1188, %v1179
        %v1196 = vadd.s32 %v1191, %v1193
        %vm1197 = vc.u32 %v1191, %v1193
        %v1198 = vadd.s32 %v1194, 1
        %v1199 = vsel %vm1197, %v1198, %v1194
        %v1200 = vadd.s32 %v1195, %v1199
        %v1201 = vadd.s32 %v1200, 536870912
        %v1202 = vshrl.u32 %v1201, 30
        %v1203 = vshll.u32 %v1202, 30
        %v1204 = vsub.s32 %v1200, %v1203
        %vm1205 = vcmp.lt.s32.totalorder %v1204, 0
        %v1206 = vsub.s32 0, %v1204
        %v1207 = vsel %vm1205, %v1206, %v1204
        %v1208 = vclz %v1207
        %v1209 = vsub.s32 %v1208, 2
        %vm1210 = vcmp.gt.s32.totalorder 0, %v1209
        %v1211 = vsel %vm1210, 0, %v1209
        %v1212 = vsub.s32 32, %v1211
        %v1213 = vshll.u32 %v1204, %v1211
        %v1214 = vshrl.u32 %v1196, %v1212
        %v1215 = vor.u32 %v1213, %v1214
        %v1216 = vsub.s32 4294967266, %v1211
        %v1217 = vadd.s32 %v1216, 127
        %v1218 = vshll.u32 %v1217, 23
        %v1219 = vor.u32 4788187, %v1218
        %v1220 = vand.u32 2147483647, %v1219
        %v1222 = vcvt.s32.f32 %v1215
        %v1223 = vmul.f32 %v1222, %v1220
        %v1224 = vxor.u32 %v1223, 2147483648
        %v1225 = vsel %vm1142, %v1224, %v1223
        %v1226 = vsub.s32 4, %v1202
        %v1227 = vsel %vm1142, %v1226, %v1202
        %v1228 = vsel %vm1141, %v696, %v1225
        %v1229 = vsel %vm1141, 0, %v1227
        %v1230 = vcosq.f32.pop %v1228
        %v1231 = vsinq.f32.pop %v1228
        %vm1232 = vweird.f32 %v696
        %v1233 = vadd.s32 %v1229, 3
        %v1234 = vand.u32 %v1233, 3
        %vm1235 = vcmp.lt.s32.totalorder %v1234, 2
        %vm1236 = vcmp.eq.s32.totalorder %v1234, 0
        %v1237 = vxor.u32 %v1231, 2147483648
        %v1238 = vsel %vm1236, %v1230, %v1237
        %vm1239 = vcmp.eq.s32.totalorder %v1234, 2
        %v1240 = vxor.u32 %v1230, 2147483648
        %v1241 = vsel %vm1239, %v1240, %v1231
        %v1242 = vsel %vm1235, %v1238, %v1241
        %v1243 = vsel %vm1232, nan, %v1242
        %v1244 = vand.u32 2147483647, %v697
        %vm1245 = vcmp.le.f32.partialorder %v1244, 0.7853982
        %vm1246 = vcmp.lt.s32.totalorder %v697, 0
        %v1247 = vand.u32 %v697, 2139095040
        %v1248 = vshrl.u32 %v1247, 23
        %v1249 = vsub.s32 %v1248, 127
        %v1250 = vand.u32 2147483647, %v697
        %v1251 = vand.u32 %v1250, 8388607
        %v1252 = vor.u32 %v1251, 8388608
        %v1253 = vsub.s32 0, %v1252
        %v1254 = vadd.s32 %v1249, 1
        %vm1255 = vcmp.gt.s32.totalorder %v1254, 0
        %v1256 = vsel %vm1255, %v1254, 0
        %v1257 = vshrl.u32 %v1256, 5
        %v1258 = vand.u32 %v1256, 31
        %v1259 = vsub.s32 32, %v1258
        %v1260 = vshrl.u32 683565275, %v1259
        %v1261 = vshll.u32 683565275, %v1258
        %v1262 = vshrl.u32 2475754826, %v1259
        %v1263 = vor.u32 %v1261, %v1262
        %v1264 = vshll.u32 2475754826, %v1258
        %v1265 = vshrl.u32 2131351028, %v1259
        %v1266 = vor.u32 %v1264, %v1265
        %v1267 = vshll.u32 2131351028, %v1258
        %v1268 = vshrl.u32 2102212464, %v1259
        %v1269 = vor.u32 %v1267, %v1268
        %v1270 = vshll.u32 2102212464, %v1258
        %v1271 = vshrl.u32 920167782, %v1259
        %v1272 = vor.u32 %v1270, %v1271
        %v1273 = vshll.u32 920167782, %v1258
        %v1274 = vshrl.u32 1326507024, %v1259
        %v1275 = vor.u32 %v1273, %v1274
        %vm1276 = vcmp.lt.s32.totalorder %v1257, 1
        %vm1277 = vcmp.lt.s32.totalorder %v1257, 2
        %vm1278 = vcmp.lt.s32.totalorder %v1257, 3
        %vm1279 = vcmp.lt.s32.totalorder %v1257, 4
        %v1280 = vsel %vm1276, %v1260, %v1263
        %v1281 = vsel %vm1279, %v1269, 2102212464
        %v1282 = vsel %vm1278, %v1266, %v1281
        %v1283 = vsel %vm1277, %v1280, %v1282
        %v1284 = vsel %vm1276, %v1263, %v1266
        %v1285 = vsel %vm1279, %v1272, 920167782
        %v1286 = vsel %vm1278, %v1269, %v1285
        %v1287 = vsel %vm1277, %v1284, %v1286
        %v1288 = vsel %vm1276, %v1266, %v1269
        %v1289 = vsel %vm1279, %v1275, 1326507024
        %v1290 = vsel %vm1278, %v1272, %v1289
        %v1291 = vsel %vm1277, %v1288, %v1290
        %v1292 = vshll.u32 %v1252, 8
        %v1293 = vmul.u32.u64.compose %v1292, %v1291
        %v1294 = vextract.low.u32 %v1293
        %v1295 = vextract.high.u32 %v1293
        %v1296 = vmul.u32.u64.compose %v1292, %v1287
        %v1297 = vextract.low.u32 %v1296
        %v1298 = vextract.high.u32 %v1296
        %v1299 = vmul.u32 %v1292, %v1283
        %v1300 = vadd.s32 %v1295, %v1297
        %vm1301 = vc.u32 %v1295, %v1297
        %v1302 = vadd.s32 %v1298, 1
        %v1303 = vsel %vm1301, %v1302, %v1298
        %v1304 = vadd.s32 %v1299, %v1303
        %v1305 = vadd.s32 %v1304, 536870912
        %v1306 = vshrl.u32 %v1305, 30
        %v1307 = vshll.u32 %v1306, 30
        %v1308 = vsub.s32 %v1304, %v1307
        %vm1309 = vcmp.lt.s32.totalorder %v1308, 0
        %v1310 = vsub.s32 0, %v1308
        %v1311 = vsel %vm1309, %v1310, %v1308
        %v1312 = vclz %v1311
        %v1313 = vsub.s32 %v1312, 2
        %vm1314 = vcmp.gt.s32.totalorder 0, %v1313
        %v1315 = vsel %vm1314, 0, %v1313
        %v1316 = vsub.s32 32, %v1315
        %v1317 = vshll.u32 %v1308, %v1315
        %v1318 = vshrl.u32 %v1300, %v1316
        %v1319 = vor.u32 %v1317, %v1318
        %v1320 = vsub.s32 4294967266, %v1315
        %v1321 = vadd.s32 %v1320, 127
        %v1322 = vshll.u32 %v1321, 23
        %v1323 = vor.u32 4788187, %v1322
        %v1324 = vand.u32 2147483647, %v1323
        %v1326 = vcvt.s32.f32 %v1319
        %v1327 = vmul.f32 %v1326, %v1324
        %v1328 = vxor.u32 %v1327, 2147483648
        %v1329 = vsel %vm1246, %v1328, %v1327
        %v1330 = vsub.s32 4, %v1306
        %v1331 = vsel %vm1246, %v1330, %v1306
        %v1332 = vsel %vm1245, %v697, %v1329
        %v1333 = vsel %vm1245, 0, %v1331
        %v1334 = vcosq.f32.pop %v1332
        %v1335 = vsinq.f32.pop %v1332
        %vm1336 = vweird.f32 %v697
        %v1337 = vadd.s32 %v1333, 3
        %v1338 = vand.u32 %v1337, 3
        %vm1339 = vcmp.lt.s32.totalorder %v1338, 2
        %vm1340 = vcmp.eq.s32.totalorder %v1338, 0
        %v1341 = vxor.u32 %v1335, 2147483648
        %v1342 = vsel %vm1340, %v1334, %v1341
        %vm1343 = vcmp.eq.s32.totalorder %v1338, 2
        %v1344 = vxor.u32 %v1334, 2147483648
        %v1345 = vsel %vm1343, %v1344, %v1335
        %v1346 = vsel %vm1339, %v1342, %v1345
        %v1347 = vsel %vm1336, nan, %v1346
        %v1348 = vand.u32 2147483647, %v698
        %vm1349 = vcmp.le.f32.partialorder %v1348, 0.7853982
        %vm1350 = vcmp.lt.s32.totalorder %v698, 0
        %v1351 = vand.u32 %v698, 2139095040
        %v1352 = vshrl.u32 %v1351, 23
        %v1353 = vsub.s32 %v1352, 127
        %v1354 = vand.u32 2147483647, %v698
        %v1355 = vand.u32 %v1354, 8388607
        %v1356 = vor.u32 %v1355, 8388608
        %v1357 = vsub.s32 0, %v1356
        %v1358 = vadd.s32 %v1353, 1
        %vm1359 = vcmp.gt.s32.totalorder %v1358, 0
        %v1360 = vsel %vm1359, %v1358, 0
        %v1361 = vshrl.u32 %v1360, 5
        %v1362 = vand.u32 %v1360, 31
        %v1363 = vsub.s32 32, %v1362
        %v1364 = vshrl.u32 683565275, %v1363
        %v1365 = vshll.u32 683565275, %v1362
        %v1366 = vshrl.u32 2475754826, %v1363
        %v1367 = vor.u32 %v1365, %v1366
        %v1368 = vshll.u32 2475754826, %v1362
        %v1369 = vshrl.u32 2131351028, %v1363
        %v1370 = vor.u32 %v1368, %v1369
        %v1371 = vshll.u32 2131351028, %v1362
        %v1372 = vshrl.u32 2102212464, %v1363
        %v1373 = vor.u32 %v1371, %v1372
        %v1374 = vshll.u32 2102212464, %v1362
        %v1375 = vshrl.u32 920167782, %v1363
        %v1376 = vor.u32 %v1374, %v1375
        %v1377 = vshll.u32 920167782, %v1362
        %v1378 = vshrl.u32 1326507024, %v1363
        %v1379 = vor.u32 %v1377, %v1378
        %vm1380 = vcmp.lt.s32.totalorder %v1361, 1
        %vm1381 = vcmp.lt.s32.totalorder %v1361, 2
        %vm1382 = vcmp.lt.s32.totalorder %v1361, 3
        %vm1383 = vcmp.lt.s32.totalorder %v1361, 4
        %v1384 = vsel %vm1380, %v1364, %v1367
        %v1385 = vsel %vm1383, %v1373, 2102212464
        %v1386 = vsel %vm1382, %v1370, %v1385
        %v1387 = vsel %vm1381, %v1384, %v1386
        %v1388 = vsel %vm1380, %v1367, %v1370
        %v1389 = vsel %vm1383, %v1376, 920167782
        %v1390 = vsel %vm1382, %v1373, %v1389
        %v1391 = vsel %vm1381, %v1388, %v1390
        %v1392 = vsel %vm1380, %v1370, %v1373
        %v1393 = vsel %vm1383, %v1379, 1326507024
        %v1394 = vsel %vm1382, %v1376, %v1393
        %v1395 = vsel %vm1381, %v1392, %v1394
        %v1396 = vshll.u32 %v1356, 8
        %v1397 = vmul.u32.u64.compose %v1396, %v1395
        %v1398 = vextract.low.u32 %v1397
        %v1399 = vextract.high.u32 %v1397
        %v1400 = vmul.u32.u64.compose %v1396, %v1391
        %v1401 = vextract.low.u32 %v1400
        %v1402 = vextract.high.u32 %v1400
        %v1403 = vmul.u32 %v1396, %v1387
        %v1404 = vadd.s32 %v1399, %v1401
        %vm1405 = vc.u32 %v1399, %v1401
        %v1406 = vadd.s32 %v1402, 1
        %v1407 = vsel %vm1405, %v1406, %v1402
        %v1408 = vadd.s32 %v1403, %v1407
        %v1409 = vadd.s32 %v1408, 536870912
        %v1410 = vshrl.u32 %v1409, 30
        %v1411 = vshll.u32 %v1410, 30
        %v1412 = vsub.s32 %v1408, %v1411
        %vm1413 = vcmp.lt.s32.totalorder %v1412, 0
        %v1414 = vsub.s32 0, %v1412
        %v1415 = vsel %vm1413, %v1414, %v1412
        %v1416 = vclz %v1415
        %v1417 = vsub.s32 %v1416, 2
        %vm1418 = vcmp.gt.s32.totalorder 0, %v1417
        %v1419 = vsel %vm1418, 0, %v1417
        %v1420 = vsub.s32 32, %v1419
        %v1421 = vshll.u32 %v1412, %v1419
        %v1422 = vshrl.u32 %v1404, %v1420
        %v1423 = vor.u32 %v1421, %v1422
        %v1424 = vsub.s32 4294967266, %v1419
        %v1425 = vadd.s32 %v1424, 127
        %v1426 = vshll.u32 %v1425, 23
        %v1427 = vor.u32 4788187, %v1426
        %v1428 = vand.u32 2147483647, %v1427
        %v1430 = vcvt.s32.f32 %v1423
        %v1431 = vmul.f32 %v1430, %v1428
        %v1432 = vxor.u32 %v1431, 2147483648
        %v1433 = vsel %vm1350, %v1432, %v1431
        %v1434 = vsub.s32 4, %v1410
        %v1435 = vsel %vm1350, %v1434, %v1410
        %v1436 = vsel %vm1349, %v698, %v1433
        %v1437 = vsel %vm1349, 0, %v1435
        %v1438 = vcosq.f32.pop %v1436
        %v1439 = vsinq.f32.pop %v1436
        %vm1440 = vweird.f32 %v698
        %v1441 = vadd.s32 %v1437, 3
        %v1442 = vand.u32 %v1441, 3
        %vm1443 = vcmp.lt.s32.totalorder %v1442, 2
        %vm1444 = vcmp.eq.s32.totalorder %v1442, 0
        %v1445 = vxor.u32 %v1439, 2147483648
        %v1446 = vsel %vm1444, %v1438, %v1445
        %vm1447 = vcmp.eq.s32.totalorder %v1442, 2
        %v1448 = vxor.u32 %v1438, 2147483648
        %v1449 = vsel %vm1447, %v1448, %v1439
        %v1450 = vsel %vm1443, %v1446, %v1449
        %v1451 = vsel %vm1440, nan, %v1450
        %v1452 = vand.u32 2147483647, %v699
        %vm1453 = vcmp.le.f32.partialorder %v1452, 0.7853982
        %vm1454 = vcmp.lt.s32.totalorder %v699, 0
        %v1455 = vand.u32 %v699, 2139095040
        %v1456 = vshrl.u32 %v1455, 23
        %v1457 = vsub.s32 %v1456, 127
        %v1458 = vand.u32 2147483647, %v699
        %v1459 = vand.u32 %v1458, 8388607
        %v1460 = vor.u32 %v1459, 8388608
        %v1461 = vsub.s32 0, %v1460
        %v1462 = vadd.s32 %v1457, 1
        %vm1463 = vcmp.gt.s32.totalorder %v1462, 0
        %v1464 = vsel %vm1463, %v1462, 0
        %v1465 = vshrl.u32 %v1464, 5
        %v1466 = vand.u32 %v1464, 31
        %v1467 = vsub.s32 32, %v1466
        %v1468 = vshrl.u32 683565275, %v1467
        %v1469 = vshll.u32 683565275, %v1466
        %v1470 = vshrl.u32 2475754826, %v1467
        %v1471 = vor.u32 %v1469, %v1470
        %v1472 = vshll.u32 2475754826, %v1466
        %v1473 = vshrl.u32 2131351028, %v1467
        %v1474 = vor.u32 %v1472, %v1473
        %v1475 = vshll.u32 2131351028, %v1466
        %v1476 = vshrl.u32 2102212464, %v1467
        %v1477 = vor.u32 %v1475, %v1476
        %v1478 = vshll.u32 2102212464, %v1466
        %v1479 = vshrl.u32 920167782, %v1467
        %v1480 = vor.u32 %v1478, %v1479
        %v1481 = vshll.u32 920167782, %v1466
        %v1482 = vshrl.u32 1326507024, %v1467
        %v1483 = vor.u32 %v1481, %v1482
        %vm1484 = vcmp.lt.s32.totalorder %v1465, 1
        %vm1485 = vcmp.lt.s32.totalorder %v1465, 2
        %vm1486 = vcmp.lt.s32.totalorder %v1465, 3
        %vm1487 = vcmp.lt.s32.totalorder %v1465, 4
        %v1488 = vsel %vm1484, %v1468, %v1471
        %v1489 = vsel %vm1487, %v1477, 2102212464
        %v1490 = vsel %vm1486, %v1474, %v1489
        %v1491 = vsel %vm1485, %v1488, %v1490
        %v1492 = vsel %vm1484, %v1471, %v1474
        %v1493 = vsel %vm1487, %v1480, 920167782
        %v1494 = vsel %vm1486, %v1477, %v1493
        %v1495 = vsel %vm1485, %v1492, %v1494
        %v1496 = vsel %vm1484, %v1474, %v1477
        %v1497 = vsel %vm1487, %v1483, 1326507024
        %v1498 = vsel %vm1486, %v1480, %v1497
        %v1499 = vsel %vm1485, %v1496, %v1498
        %v1500 = vshll.u32 %v1460, 8
        %v1501 = vmul.u32.u64.compose %v1500, %v1499
        %v1502 = vextract.low.u32 %v1501
        %v1503 = vextract.high.u32 %v1501
        %v1504 = vmul.u32.u64.compose %v1500, %v1495
        %v1505 = vextract.low.u32 %v1504
        %v1506 = vextract.high.u32 %v1504
        %v1507 = vmul.u32 %v1500, %v1491
        %v1508 = vadd.s32 %v1503, %v1505
        %vm1509 = vc.u32 %v1503, %v1505
        %v1510 = vadd.s32 %v1506, 1
        %v1511 = vsel %vm1509, %v1510, %v1506
        %v1512 = vadd.s32 %v1507, %v1511
        %v1513 = vadd.s32 %v1512, 536870912
        %v1514 = vshrl.u32 %v1513, 30
        %v1515 = vshll.u32 %v1514, 30
        %v1516 = vsub.s32 %v1512, %v1515
        %vm1517 = vcmp.lt.s32.totalorder %v1516, 0
        %v1518 = vsub.s32 0, %v1516
        %v1519 = vsel %vm1517, %v1518, %v1516
        %v1520 = vclz %v1519
        %v1521 = vsub.s32 %v1520, 2
        %vm1522 = vcmp.gt.s32.totalorder 0, %v1521
        %v1523 = vsel %vm1522, 0, %v1521
        %v1524 = vsub.s32 32, %v1523
        %v1525 = vshll.u32 %v1516, %v1523
        %v1526 = vshrl.u32 %v1508, %v1524
        %v1527 = vor.u32 %v1525, %v1526
        %v1528 = vsub.s32 4294967266, %v1523
        %v1529 = vadd.s32 %v1528, 127
        %v1530 = vshll.u32 %v1529, 23
        %v1531 = vor.u32 4788187, %v1530
        %v1532 = vand.u32 2147483647, %v1531
        %v1534 = vcvt.s32.f32 %v1527
        %v1535 = vmul.f32 %v1534, %v1532
        %v1536 = vxor.u32 %v1535, 2147483648
        %v1537 = vsel %vm1454, %v1536, %v1535
        %v1538 = vsub.s32 4, %v1514
        %v1539 = vsel %vm1454, %v1538, %v1514
        %v1540 = vsel %vm1453, %v699, %v1537
        %v1541 = vsel %vm1453, 0, %v1539
        %v1542 = vcosq.f32.pop %v1540
        %v1543 = vsinq.f32.pop %v1540
        %vm1544 = vweird.f32 %v699
        %v1545 = vadd.s32 %v1541, 3
        %v1546 = vand.u32 %v1545, 3
        %vm1547 = vcmp.lt.s32.totalorder %v1546, 2
        %vm1548 = vcmp.eq.s32.totalorder %v1546, 0
        %v1549 = vxor.u32 %v1543, 2147483648
        %v1550 = vsel %vm1548, %v1542, %v1549
        %vm1551 = vcmp.eq.s32.totalorder %v1546, 2
        %v1552 = vxor.u32 %v1542, 2147483648
        %v1553 = vsel %vm1551, %v1552, %v1543
        %v1554 = vsel %vm1547, %v1550, %v1553
        %v1555 = vsel %vm1544, nan, %v1554
        %v1556 = vand.u32 2147483647, %v700
        %vm1557 = vcmp.le.f32.partialorder %v1556, 0.7853982
        %vm1558 = vcmp.lt.s32.totalorder %v700, 0
        %v1559 = vand.u32 %v700, 2139095040
        %v1560 = vshrl.u32 %v1559, 23
        %v1561 = vsub.s32 %v1560, 127
        %v1562 = vand.u32 2147483647, %v700
        %v1563 = vand.u32 %v1562, 8388607
        %v1564 = vor.u32 %v1563, 8388608
        %v1565 = vsub.s32 0, %v1564
        %v1566 = vadd.s32 %v1561, 1
        %vm1567 = vcmp.gt.s32.totalorder %v1566, 0
        %v1568 = vsel %vm1567, %v1566, 0
        %v1569 = vshrl.u32 %v1568, 5
        %v1570 = vand.u32 %v1568, 31
        %v1571 = vsub.s32 32, %v1570
        %v1572 = vshrl.u32 683565275, %v1571
        %v1573 = vshll.u32 683565275, %v1570
        %v1574 = vshrl.u32 2475754826, %v1571
        %v1575 = vor.u32 %v1573, %v1574
        %v1576 = vshll.u32 2475754826, %v1570
        %v1577 = vshrl.u32 2131351028, %v1571
        %v1578 = vor.u32 %v1576, %v1577
        %v1579 = vshll.u32 2131351028, %v1570
        %v1580 = vshrl.u32 2102212464, %v1571
        %v1581 = vor.u32 %v1579, %v1580
        %v1582 = vshll.u32 2102212464, %v1570
        %v1583 = vshrl.u32 920167782, %v1571
        %v1584 = vor.u32 %v1582, %v1583
        %v1585 = vshll.u32 920167782, %v1570
        %v1586 = vshrl.u32 1326507024, %v1571
        %v1587 = vor.u32 %v1585, %v1586
        %vm1588 = vcmp.lt.s32.totalorder %v1569, 1
        %vm1589 = vcmp.lt.s32.totalorder %v1569, 2
        %vm1590 = vcmp.lt.s32.totalorder %v1569, 3
        %vm1591 = vcmp.lt.s32.totalorder %v1569, 4
        %v1592 = vsel %vm1588, %v1572, %v1575
        %v1593 = vsel %vm1591, %v1581, 2102212464
        %v1594 = vsel %vm1590, %v1578, %v1593
        %v1595 = vsel %vm1589, %v1592, %v1594
        %v1596 = vsel %vm1588, %v1575, %v1578
        %v1597 = vsel %vm1591, %v1584, 920167782
        %v1598 = vsel %vm1590, %v1581, %v1597
        %v1599 = vsel %vm1589, %v1596, %v1598
        %v1600 = vsel %vm1588, %v1578, %v1581
        %v1601 = vsel %vm1591, %v1587, 1326507024
        %v1602 = vsel %vm1590, %v1584, %v1601
        %v1603 = vsel %vm1589, %v1600, %v1602
        %v1604 = vshll.u32 %v1564, 8
        %v1605 = vmul.u32.u64.compose %v1604, %v1603
        %v1606 = vextract.low.u32 %v1605
        %v1607 = vextract.high.u32 %v1605
        %v1608 = vmul.u32.u64.compose %v1604, %v1599
        %v1609 = vextract.low.u32 %v1608
        %v1610 = vextract.high.u32 %v1608
        %v1611 = vmul.u32 %v1604, %v1595
        %v1612 = vadd.s32 %v1607, %v1609
        %vm1613 = vc.u32 %v1607, %v1609
        %v1614 = vadd.s32 %v1610, 1
        %v1615 = vsel %vm1613, %v1614, %v1610
        %v1616 = vadd.s32 %v1611, %v1615
        %v1617 = vadd.s32 %v1616, 536870912
        %v1618 = vshrl.u32 %v1617, 30
        %v1619 = vshll.u32 %v1618, 30
        %v1620 = vsub.s32 %v1616, %v1619
        %vm1621 = vcmp.lt.s32.totalorder %v1620, 0
        %v1622 = vsub.s32 0, %v1620
        %v1623 = vsel %vm1621, %v1622, %v1620
        %v1624 = vclz %v1623
        %v1625 = vsub.s32 %v1624, 2
        %vm1626 = vcmp.gt.s32.totalorder 0, %v1625
        %v1627 = vsel %vm1626, 0, %v1625
        %v1628 = vsub.s32 32, %v1627
        %v1629 = vshll.u32 %v1620, %v1627
        %v1630 = vshrl.u32 %v1612, %v1628
        %v1631 = vor.u32 %v1629, %v1630
        %v1632 = vsub.s32 4294967266, %v1627
        %v1633 = vadd.s32 %v1632, 127
        %v1634 = vshll.u32 %v1633, 23
        %v1635 = vor.u32 4788187, %v1634
        %v1636 = vand.u32 2147483647, %v1635
        %v1638 = vcvt.s32.f32 %v1631
        %v1639 = vmul.f32 %v1638, %v1636
        %v1640 = vxor.u32 %v1639, 2147483648
        %v1641 = vsel %vm1558, %v1640, %v1639
        %v1642 = vsub.s32 4, %v1618
        %v1643 = vsel %vm1558, %v1642, %v1618
        %v1644 = vsel %vm1557, %v700, %v1641
        %v1645 = vsel %vm1557, 0, %v1643
        %v1646 = vcosq.f32.pop %v1644
        %v1647 = vsinq.f32.pop %v1644
        %vm1648 = vweird.f32 %v700
        %v1649 = vadd.s32 %v1645, 3
        %v1650 = vand.u32 %v1649, 3
        %vm1651 = vcmp.lt.s32.totalorder %v1650, 2
        %vm1652 = vcmp.eq.s32.totalorder %v1650, 0
        %v1653 = vxor.u32 %v1647, 2147483648
        %v1654 = vsel %vm1652, %v1646, %v1653
        %vm1655 = vcmp.eq.s32.totalorder %v1650, 2
        %v1656 = vxor.u32 %v1646, 2147483648
        %v1657 = vsel %vm1655, %v1656, %v1647
        %v1658 = vsel %vm1651, %v1654, %v1657
        %v1659 = vsel %vm1648, nan, %v1658
        %v1660 = vand.u32 2147483647, %v701
        %vm1661 = vcmp.le.f32.partialorder %v1660, 0.7853982
        %vm1662 = vcmp.lt.s32.totalorder %v701, 0
        %v1663 = vand.u32 %v701, 2139095040
        %v1664 = vshrl.u32 %v1663, 23
        %v1665 = vsub.s32 %v1664, 127
        %v1666 = vand.u32 2147483647, %v701
        %v1667 = vand.u32 %v1666, 8388607
        %v1668 = vor.u32 %v1667, 8388608
        %v1669 = vsub.s32 0, %v1668
        %v1670 = vadd.s32 %v1665, 1
        %vm1671 = vcmp.gt.s32.totalorder %v1670, 0
        %v1672 = vsel %vm1671, %v1670, 0
        %v1673 = vshrl.u32 %v1672, 5
        %v1674 = vand.u32 %v1672, 31
        %v1675 = vsub.s32 32, %v1674
        %v1676 = vshrl.u32 683565275, %v1675
        %v1677 = vshll.u32 683565275, %v1674
        %v1678 = vshrl.u32 2475754826, %v1675
        %v1679 = vor.u32 %v1677, %v1678
        %v1680 = vshll.u32 2475754826, %v1674
        %v1681 = vshrl.u32 2131351028, %v1675
        %v1682 = vor.u32 %v1680, %v1681
        %v1683 = vshll.u32 2131351028, %v1674
        %v1684 = vshrl.u32 2102212464, %v1675
        %v1685 = vor.u32 %v1683, %v1684
        %v1686 = vshll.u32 2102212464, %v1674
        %v1687 = vshrl.u32 920167782, %v1675
        %v1688 = vor.u32 %v1686, %v1687
        %v1689 = vshll.u32 920167782, %v1674
        %v1690 = vshrl.u32 1326507024, %v1675
        %v1691 = vor.u32 %v1689, %v1690
        %vm1692 = vcmp.lt.s32.totalorder %v1673, 1
        %vm1693 = vcmp.lt.s32.totalorder %v1673, 2
        %vm1694 = vcmp.lt.s32.totalorder %v1673, 3
        %vm1695 = vcmp.lt.s32.totalorder %v1673, 4
        %v1696 = vsel %vm1692, %v1676, %v1679
        %v1697 = vsel %vm1695, %v1685, 2102212464
        %v1698 = vsel %vm1694, %v1682, %v1697
        %v1699 = vsel %vm1693, %v1696, %v1698
        %v1700 = vsel %vm1692, %v1679, %v1682
        %v1701 = vsel %vm1695, %v1688, 920167782
        %v1702 = vsel %vm1694, %v1685, %v1701
        %v1703 = vsel %vm1693, %v1700, %v1702
        %v1704 = vsel %vm1692, %v1682, %v1685
        %v1705 = vsel %vm1695, %v1691, 1326507024
        %v1706 = vsel %vm1694, %v1688, %v1705
        %v1707 = vsel %vm1693, %v1704, %v1706
        %v1708 = vshll.u32 %v1668, 8
        %v1709 = vmul.u32.u64.compose %v1708, %v1707
        %v1710 = vextract.low.u32 %v1709
        %v1711 = vextract.high.u32 %v1709
        %v1712 = vmul.u32.u64.compose %v1708, %v1703
        %v1713 = vextract.low.u32 %v1712
        %v1714 = vextract.high.u32 %v1712
        %v1715 = vmul.u32 %v1708, %v1699
        %v1716 = vadd.s32 %v1711, %v1713
        %vm1717 = vc.u32 %v1711, %v1713
        %v1718 = vadd.s32 %v1714, 1
        %v1719 = vsel %vm1717, %v1718, %v1714
        %v1720 = vadd.s32 %v1715, %v1719
        %v1721 = vadd.s32 %v1720, 536870912
        %v1722 = vshrl.u32 %v1721, 30
        %v1723 = vshll.u32 %v1722, 30
        %v1724 = vsub.s32 %v1720, %v1723
        %vm1725 = vcmp.lt.s32.totalorder %v1724, 0
        %v1726 = vsub.s32 0, %v1724
        %v1727 = vsel %vm1725, %v1726, %v1724
        %v1728 = vclz %v1727
        %v1729 = vsub.s32 %v1728, 2
        %vm1730 = vcmp.gt.s32.totalorder 0, %v1729
        %v1731 = vsel %vm1730, 0, %v1729
        %v1732 = vsub.s32 32, %v1731
        %v1733 = vshll.u32 %v1724, %v1731
        %v1734 = vshrl.u32 %v1716, %v1732
        %v1735 = vor.u32 %v1733, %v1734
        %v1736 = vsub.s32 4294967266, %v1731
        %v1737 = vadd.s32 %v1736, 127
        %v1738 = vshll.u32 %v1737, 23
        %v1739 = vor.u32 4788187, %v1738
        %v1740 = vand.u32 2147483647, %v1739
        %v1742 = vcvt.s32.f32 %v1735
        %v1743 = vmul.f32 %v1742, %v1740
        %v1744 = vxor.u32 %v1743, 2147483648
        %v1745 = vsel %vm1662, %v1744, %v1743
        %v1746 = vsub.s32 4, %v1722
        %v1747 = vsel %vm1662, %v1746, %v1722
        %v1748 = vsel %vm1661, %v701, %v1745
        %v1749 = vsel %vm1661, 0, %v1747
        %v1750 = vcosq.f32.pop %v1748
        %v1751 = vsinq.f32.pop %v1748
        %vm1752 = vweird.f32 %v701
        %v1753 = vadd.s32 %v1749, 3
        %v1754 = vand.u32 %v1753, 3
        %vm1755 = vcmp.lt.s32.totalorder %v1754, 2
        %vm1756 = vcmp.eq.s32.totalorder %v1754, 0
        %v1757 = vxor.u32 %v1751, 2147483648
        %v1758 = vsel %vm1756, %v1750, %v1757
        %vm1759 = vcmp.eq.s32.totalorder %v1754, 2
        %v1760 = vxor.u32 %v1750, 2147483648
        %v1761 = vsel %vm1759, %v1760, %v1751
        %v1762 = vsel %vm1755, %v1758, %v1761
        %v1763 = vsel %vm1752, nan, %v1762
        %v1764 = vand.u32 2147483647, %v702
        %vm1765 = vcmp.le.f32.partialorder %v1764, 0.7853982
        %vm1766 = vcmp.lt.s32.totalorder %v702, 0
        %v1767 = vand.u32 %v702, 2139095040
        %v1768 = vshrl.u32 %v1767, 23
        %v1769 = vsub.s32 %v1768, 127
        %v1770 = vand.u32 2147483647, %v702
        %v1771 = vand.u32 %v1770, 8388607
        %v1772 = vor.u32 %v1771, 8388608
        %v1773 = vsub.s32 0, %v1772
        %v1774 = vadd.s32 %v1769, 1
        %vm1775 = vcmp.gt.s32.totalorder %v1774, 0
        %v1776 = vsel %vm1775, %v1774, 0
        %v1777 = vshrl.u32 %v1776, 5
        %v1778 = vand.u32 %v1776, 31
        %v1779 = vsub.s32 32, %v1778
        %v1780 = vshrl.u32 683565275, %v1779
        %v1781 = vshll.u32 683565275, %v1778
        %v1782 = vshrl.u32 2475754826, %v1779
        %v1783 = vor.u32 %v1781, %v1782
        %v1784 = vshll.u32 2475754826, %v1778
        %v1785 = vshrl.u32 2131351028, %v1779
        %v1786 = vor.u32 %v1784, %v1785
        %v1787 = vshll.u32 2131351028, %v1778
        %v1788 = vshrl.u32 2102212464, %v1779
        %v1789 = vor.u32 %v1787, %v1788
        %v1790 = vshll.u32 2102212464, %v1778
        %v1791 = vshrl.u32 920167782, %v1779
        %v1792 = vor.u32 %v1790, %v1791
        %v1793 = vshll.u32 920167782, %v1778
        %v1794 = vshrl.u32 1326507024, %v1779
        %v1795 = vor.u32 %v1793, %v1794
        %vm1796 = vcmp.lt.s32.totalorder %v1777, 1
        %vm1797 = vcmp.lt.s32.totalorder %v1777, 2
        %vm1798 = vcmp.lt.s32.totalorder %v1777, 3
        %vm1799 = vcmp.lt.s32.totalorder %v1777, 4
        %v1800 = vsel %vm1796, %v1780, %v1783
        %v1801 = vsel %vm1799, %v1789, 2102212464
        %v1802 = vsel %vm1798, %v1786, %v1801
        %v1803 = vsel %vm1797, %v1800, %v1802
        %v1804 = vsel %vm1796, %v1783, %v1786
        %v1805 = vsel %vm1799, %v1792, 920167782
        %v1806 = vsel %vm1798, %v1789, %v1805
        %v1807 = vsel %vm1797, %v1804, %v1806
        %v1808 = vsel %vm1796, %v1786, %v1789
        %v1809 = vsel %vm1799, %v1795, 1326507024
        %v1810 = vsel %vm1798, %v1792, %v1809
        %v1811 = vsel %vm1797, %v1808, %v1810
        %v1812 = vshll.u32 %v1772, 8
        %v1813 = vmul.u32.u64.compose %v1812, %v1811
        %v1814 = vextract.low.u32 %v1813
        %v1815 = vextract.high.u32 %v1813
        %v1816 = vmul.u32.u64.compose %v1812, %v1807
        %v1817 = vextract.low.u32 %v1816
        %v1818 = vextract.high.u32 %v1816
        %v1819 = vmul.u32 %v1812, %v1803
        %v1820 = vadd.s32 %v1815, %v1817
        %vm1821 = vc.u32 %v1815, %v1817
        %v1822 = vadd.s32 %v1818, 1
        %v1823 = vsel %vm1821, %v1822, %v1818
        %v1824 = vadd.s32 %v1819, %v1823
        %v1825 = vadd.s32 %v1824, 536870912
        %v1826 = vshrl.u32 %v1825, 30
        %v1827 = vshll.u32 %v1826, 30
        %v1828 = vsub.s32 %v1824, %v1827
        %vm1829 = vcmp.lt.s32.totalorder %v1828, 0
        %v1830 = vsub.s32 0, %v1828
        %v1831 = vsel %vm1829, %v1830, %v1828
        %v1832 = vclz %v1831
        %v1833 = vsub.s32 %v1832, 2
        %vm1834 = vcmp.gt.s32.totalorder 0, %v1833
        %v1835 = vsel %vm1834, 0, %v1833
        %v1836 = vsub.s32 32, %v1835
        %v1837 = vshll.u32 %v1828, %v1835
        %v1838 = vshrl.u32 %v1820, %v1836
        %v1839 = vor.u32 %v1837, %v1838
        %v1840 = vsub.s32 4294967266, %v1835
        %v1841 = vadd.s32 %v1840, 127
        %v1842 = vshll.u32 %v1841, 23
        %v1843 = vor.u32 4788187, %v1842
        %v1844 = vand.u32 2147483647, %v1843
        %v1846 = vcvt.s32.f32 %v1839
        %v1847 = vmul.f32 %v1846, %v1844
        %v1848 = vxor.u32 %v1847, 2147483648
        %v1849 = vsel %vm1766, %v1848, %v1847
        %v1850 = vsub.s32 4, %v1826
        %v1851 = vsel %vm1766, %v1850, %v1826
        %v1852 = vsel %vm1765, %v702, %v1849
        %v1853 = vsel %vm1765, 0, %v1851
        %v1854 = vcosq.f32.pop %v1852
        %v1855 = vsinq.f32.pop %v1852
        %vm1856 = vweird.f32 %v702
        %v1857 = vadd.s32 %v1853, 3
        %v1858 = vand.u32 %v1857, 3
        %vm1859 = vcmp.lt.s32.totalorder %v1858, 2
        %vm1860 = vcmp.eq.s32.totalorder %v1858, 0
        %v1861 = vxor.u32 %v1855, 2147483648
        %v1862 = vsel %vm1860, %v1854, %v1861
        %vm1863 = vcmp.eq.s32.totalorder %v1858, 2
        %v1864 = vxor.u32 %v1854, 2147483648
        %v1865 = vsel %vm1863, %v1864, %v1855
        %v1866 = vsel %vm1859, %v1862, %v1865
        %v1867 = vsel %vm1856, nan, %v1866
        %v1868 = vand.u32 2147483647, %v703
        %vm1869 = vcmp.le.f32.partialorder %v1868, 0.7853982
        %vm1870 = vcmp.lt.s32.totalorder %v703, 0
        %v1871 = vand.u32 %v703, 2139095040
        %v1872 = vshrl.u32 %v1871, 23
        %v1873 = vsub.s32 %v1872, 127
        %v1874 = vand.u32 2147483647, %v703
        %v1875 = vand.u32 %v1874, 8388607
        %v1876 = vor.u32 %v1875, 8388608
        %v1877 = vsub.s32 0, %v1876
        %v1878 = vadd.s32 %v1873, 1
        %vm1879 = vcmp.gt.s32.totalorder %v1878, 0
        %v1880 = vsel %vm1879, %v1878, 0
        %v1881 = vshrl.u32 %v1880, 5
        %v1882 = vand.u32 %v1880, 31
        %v1883 = vsub.s32 32, %v1882
        %v1884 = vshrl.u32 683565275, %v1883
        %v1885 = vshll.u32 683565275, %v1882
        %v1886 = vshrl.u32 2475754826, %v1883
        %v1887 = vor.u32 %v1885, %v1886
        %v1888 = vshll.u32 2475754826, %v1882
        %v1889 = vshrl.u32 2131351028, %v1883
        %v1890 = vor.u32 %v1888, %v1889
        %v1891 = vshll.u32 2131351028, %v1882
        %v1892 = vshrl.u32 2102212464, %v1883
        %v1893 = vor.u32 %v1891, %v1892
        %v1894 = vshll.u32 2102212464, %v1882
        %v1895 = vshrl.u32 920167782, %v1883
        %v1896 = vor.u32 %v1894, %v1895
        %v1897 = vshll.u32 920167782, %v1882
        %v1898 = vshrl.u32 1326507024, %v1883
        %v1899 = vor.u32 %v1897, %v1898
        %vm1900 = vcmp.lt.s32.totalorder %v1881, 1
        %vm1901 = vcmp.lt.s32.totalorder %v1881, 2
        %vm1902 = vcmp.lt.s32.totalorder %v1881, 3
        %vm1903 = vcmp.lt.s32.totalorder %v1881, 4
        %v1904 = vsel %vm1900, %v1884, %v1887
        %v1905 = vsel %vm1903, %v1893, 2102212464
        %v1906 = vsel %vm1902, %v1890, %v1905
        %v1907 = vsel %vm1901, %v1904, %v1906
        %v1908 = vsel %vm1900, %v1887, %v1890
        %v1909 = vsel %vm1903, %v1896, 920167782
        %v1910 = vsel %vm1902, %v1893, %v1909
        %v1911 = vsel %vm1901, %v1908, %v1910
        %v1912 = vsel %vm1900, %v1890, %v1893
        %v1913 = vsel %vm1903, %v1899, 1326507024
        %v1914 = vsel %vm1902, %v1896, %v1913
        %v1915 = vsel %vm1901, %v1912, %v1914
        %v1916 = vshll.u32 %v1876, 8
        %v1917 = vmul.u32.u64.compose %v1916, %v1915
        %v1918 = vextract.low.u32 %v1917
        %v1919 = vextract.high.u32 %v1917
        %v1920 = vmul.u32.u64.compose %v1916, %v1911
        %v1921 = vextract.low.u32 %v1920
        %v1922 = vextract.high.u32 %v1920
        %v1923 = vmul.u32 %v1916, %v1907
        %v1924 = vadd.s32 %v1919, %v1921
        %vm1925 = vc.u32 %v1919, %v1921
        %v1926 = vadd.s32 %v1922, 1
        %v1927 = vsel %vm1925, %v1926, %v1922
        %v1928 = vadd.s32 %v1923, %v1927
        %v1929 = vadd.s32 %v1928, 536870912
        %v1930 = vshrl.u32 %v1929, 30
        %v1931 = vshll.u32 %v1930, 30
        %v1932 = vsub.s32 %v1928, %v1931
        %vm1933 = vcmp.lt.s32.totalorder %v1932, 0
        %v1934 = vsub.s32 0, %v1932
        %v1935 = vsel %vm1933, %v1934, %v1932
        %v1936 = vclz %v1935
        %v1937 = vsub.s32 %v1936, 2
        %vm1938 = vcmp.gt.s32.totalorder 0, %v1937
        %v1939 = vsel %vm1938, 0, %v1937
        %v1940 = vsub.s32 32, %v1939
        %v1941 = vshll.u32 %v1932, %v1939
        %v1942 = vshrl.u32 %v1924, %v1940
        %v1943 = vor.u32 %v1941, %v1942
        %v1944 = vsub.s32 4294967266, %v1939
        %v1945 = vadd.s32 %v1944, 127
        %v1946 = vshll.u32 %v1945, 23
        %v1947 = vor.u32 4788187, %v1946
        %v1948 = vand.u32 2147483647, %v1947
        %v1950 = vcvt.s32.f32 %v1943
        %v1951 = vmul.f32 %v1950, %v1948
        %v1952 = vxor.u32 %v1951, 2147483648
        %v1953 = vsel %vm1870, %v1952, %v1951
        %v1954 = vsub.s32 4, %v1930
        %v1955 = vsel %vm1870, %v1954, %v1930
        %v1956 = vsel %vm1869, %v703, %v1953
        %v1957 = vsel %vm1869, 0, %v1955
        %v1958 = vcosq.f32.pop %v1956
        %v1959 = vsinq.f32.pop %v1956
        %vm1960 = vweird.f32 %v703
        %v1961 = vadd.s32 %v1957, 3
        %v1962 = vand.u32 %v1961, 3
        %vm1963 = vcmp.lt.s32.totalorder %v1962, 2
        %vm1964 = vcmp.eq.s32.totalorder %v1962, 0
        %v1965 = vxor.u32 %v1959, 2147483648
        %v1966 = vsel %vm1964, %v1958, %v1965
        %vm1967 = vcmp.eq.s32.totalorder %v1962, 2
        %v1968 = vxor.u32 %v1958, 2147483648
        %v1969 = vsel %vm1967, %v1968, %v1959
        %v1970 = vsel %vm1963, %v1966, %v1969
        %v1971 = vsel %vm1960, nan, %v1970
        %v1972 = vand.u32 2147483647, %v704
        %vm1973 = vcmp.le.f32.partialorder %v1972, 0.7853982
        %vm1974 = vcmp.lt.s32.totalorder %v704, 0
        %v1975 = vand.u32 %v704, 2139095040
        %v1976 = vshrl.u32 %v1975, 23
        %v1977 = vsub.s32 %v1976, 127
        %v1978 = vand.u32 2147483647, %v704
        %v1979 = vand.u32 %v1978, 8388607
        %v1980 = vor.u32 %v1979, 8388608
        %v1981 = vsub.s32 0, %v1980
        %v1982 = vadd.s32 %v1977, 1
        %vm1983 = vcmp.gt.s32.totalorder %v1982, 0
        %v1984 = vsel %vm1983, %v1982, 0
        %v1985 = vshrl.u32 %v1984, 5
        %v1986 = vand.u32 %v1984, 31
        %v1987 = vsub.s32 32, %v1986
        %v1988 = vshrl.u32 683565275, %v1987
        %v1989 = vshll.u32 683565275, %v1986
        %v1990 = vshrl.u32 2475754826, %v1987
        %v1991 = vor.u32 %v1989, %v1990
        %v1992 = vshll.u32 2475754826, %v1986
        %v1993 = vshrl.u32 2131351028, %v1987
        %v1994 = vor.u32 %v1992, %v1993
        %v1995 = vshll.u32 2131351028, %v1986
        %v1996 = vshrl.u32 2102212464, %v1987
        %v1997 = vor.u32 %v1995, %v1996
        %v1998 = vshll.u32 2102212464, %v1986
        %v1999 = vshrl.u32 920167782, %v1987
        %v2000 = vor.u32 %v1998, %v1999
        %v2001 = vshll.u32 920167782, %v1986
        %v2002 = vshrl.u32 1326507024, %v1987
        %v2003 = vor.u32 %v2001, %v2002
        %vm2004 = vcmp.lt.s32.totalorder %v1985, 1
        %vm2005 = vcmp.lt.s32.totalorder %v1985, 2
        %vm2006 = vcmp.lt.s32.totalorder %v1985, 3
        %vm2007 = vcmp.lt.s32.totalorder %v1985, 4
        %v2008 = vsel %vm2004, %v1988, %v1991
        %v2009 = vsel %vm2007, %v1997, 2102212464
        %v2010 = vsel %vm2006, %v1994, %v2009
        %v2011 = vsel %vm2005, %v2008, %v2010
        %v2012 = vsel %vm2004, %v1991, %v1994
        %v2013 = vsel %vm2007, %v2000, 920167782
        %v2014 = vsel %vm2006, %v1997, %v2013
        %v2015 = vsel %vm2005, %v2012, %v2014
        %v2016 = vsel %vm2004, %v1994, %v1997
        %v2017 = vsel %vm2007, %v2003, 1326507024
        %v2018 = vsel %vm2006, %v2000, %v2017
        %v2019 = vsel %vm2005, %v2016, %v2018
        %v2020 = vshll.u32 %v1980, 8
        %v2021 = vmul.u32.u64.compose %v2020, %v2019
        %v2022 = vextract.low.u32 %v2021
        %v2023 = vextract.high.u32 %v2021
        %v2024 = vmul.u32.u64.compose %v2020, %v2015
        %v2025 = vextract.low.u32 %v2024
        %v2026 = vextract.high.u32 %v2024
        %v2027 = vmul.u32 %v2020, %v2011
        %v2028 = vadd.s32 %v2023, %v2025
        %vm2029 = vc.u32 %v2023, %v2025
        %v2030 = vadd.s32 %v2026, 1
        %v2031 = vsel %vm2029, %v2030, %v2026
        %v2032 = vadd.s32 %v2027, %v2031
        %v2033 = vadd.s32 %v2032, 536870912
        %v2034 = vshrl.u32 %v2033, 30
        %v2035 = vshll.u32 %v2034, 30
        %v2036 = vsub.s32 %v2032, %v2035
        %vm2037 = vcmp.lt.s32.totalorder %v2036, 0
        %v2038 = vsub.s32 0, %v2036
        %v2039 = vsel %vm2037, %v2038, %v2036
        %v2040 = vclz %v2039
        %v2041 = vsub.s32 %v2040, 2
        %vm2042 = vcmp.gt.s32.totalorder 0, %v2041
        %v2043 = vsel %vm2042, 0, %v2041
        %v2044 = vsub.s32 32, %v2043
        %v2045 = vshll.u32 %v2036, %v2043
        %v2046 = vshrl.u32 %v2028, %v2044
        %v2047 = vor.u32 %v2045, %v2046
        %v2048 = vsub.s32 4294967266, %v2043
        %v2049 = vadd.s32 %v2048, 127
        %v2050 = vshll.u32 %v2049, 23
        %v2051 = vor.u32 4788187, %v2050
        %v2052 = vand.u32 2147483647, %v2051
        %v2054 = vcvt.s32.f32 %v2047
        %v2055 = vmul.f32 %v2054, %v2052
        %v2056 = vxor.u32 %v2055, 2147483648
        %v2057 = vsel %vm1974, %v2056, %v2055
        %v2058 = vsub.s32 4, %v2034
        %v2059 = vsel %vm1974, %v2058, %v2034
        %v2060 = vsel %vm1973, %v704, %v2057
        %v2061 = vsel %vm1973, 0, %v2059
        %v2062 = vcosq.f32.pop %v2060
        %v2063 = vsinq.f32.pop %v2060
        %vm2064 = vweird.f32 %v704
        %v2065 = vadd.s32 %v2061, 3
        %v2066 = vand.u32 %v2065, 3
        %vm2067 = vcmp.lt.s32.totalorder %v2066, 2
        %vm2068 = vcmp.eq.s32.totalorder %v2066, 0
        %v2069 = vxor.u32 %v2063, 2147483648
        %v2070 = vsel %vm2068, %v2062, %v2069
        %vm2071 = vcmp.eq.s32.totalorder %v2066, 2
        %v2072 = vxor.u32 %v2062, 2147483648
        %v2073 = vsel %vm2071, %v2072, %v2063
        %v2074 = vsel %vm2067, %v2070, %v2073
        %v2075 = vsel %vm2064, nan, %v2074
        %v2076 = vand.u32 2147483647, %v705
        %vm2077 = vcmp.le.f32.partialorder %v2076, 0.7853982
        %vm2078 = vcmp.lt.s32.totalorder %v705, 0
        %v2079 = vand.u32 %v705, 2139095040
        %v2080 = vshrl.u32 %v2079, 23
        %v2081 = vsub.s32 %v2080, 127
        %v2082 = vand.u32 2147483647, %v705
        %v2083 = vand.u32 %v2082, 8388607
        %v2084 = vor.u32 %v2083, 8388608
        %v2085 = vsub.s32 0, %v2084
        %v2086 = vadd.s32 %v2081, 1
        %vm2087 = vcmp.gt.s32.totalorder %v2086, 0
        %v2088 = vsel %vm2087, %v2086, 0
        %v2089 = vshrl.u32 %v2088, 5
        %v2090 = vand.u32 %v2088, 31
        %v2091 = vsub.s32 32, %v2090
        %v2092 = vshrl.u32 683565275, %v2091
        %v2093 = vshll.u32 683565275, %v2090
        %v2094 = vshrl.u32 2475754826, %v2091
        %v2095 = vor.u32 %v2093, %v2094
        %v2096 = vshll.u32 2475754826, %v2090
        %v2097 = vshrl.u32 2131351028, %v2091
        %v2098 = vor.u32 %v2096, %v2097
        %v2099 = vshll.u32 2131351028, %v2090
        %v2100 = vshrl.u32 2102212464, %v2091
        %v2101 = vor.u32 %v2099, %v2100
        %v2102 = vshll.u32 2102212464, %v2090
        %v2103 = vshrl.u32 920167782, %v2091
        %v2104 = vor.u32 %v2102, %v2103
        %v2105 = vshll.u32 920167782, %v2090
        %v2106 = vshrl.u32 1326507024, %v2091
        %v2107 = vor.u32 %v2105, %v2106
        %vm2108 = vcmp.lt.s32.totalorder %v2089, 1
        %vm2109 = vcmp.lt.s32.totalorder %v2089, 2
        %vm2110 = vcmp.lt.s32.totalorder %v2089, 3
        %vm2111 = vcmp.lt.s32.totalorder %v2089, 4
        %v2112 = vsel %vm2108, %v2092, %v2095
        %v2113 = vsel %vm2111, %v2101, 2102212464
        %v2114 = vsel %vm2110, %v2098, %v2113
        %v2115 = vsel %vm2109, %v2112, %v2114
        %v2116 = vsel %vm2108, %v2095, %v2098
        %v2117 = vsel %vm2111, %v2104, 920167782
        %v2118 = vsel %vm2110, %v2101, %v2117
        %v2119 = vsel %vm2109, %v2116, %v2118
        %v2120 = vsel %vm2108, %v2098, %v2101
        %v2121 = vsel %vm2111, %v2107, 1326507024
        %v2122 = vsel %vm2110, %v2104, %v2121
        %v2123 = vsel %vm2109, %v2120, %v2122
        %v2124 = vshll.u32 %v2084, 8
        %v2125 = vmul.u32.u64.compose %v2124, %v2123
        %v2126 = vextract.low.u32 %v2125
        %v2127 = vextract.high.u32 %v2125
        %v2128 = vmul.u32.u64.compose %v2124, %v2119
        %v2129 = vextract.low.u32 %v2128
        %v2130 = vextract.high.u32 %v2128
        %v2131 = vmul.u32 %v2124, %v2115
        %v2132 = vadd.s32 %v2127, %v2129
        %vm2133 = vc.u32 %v2127, %v2129
        %v2134 = vadd.s32 %v2130, 1
        %v2135 = vsel %vm2133, %v2134, %v2130
        %v2136 = vadd.s32 %v2131, %v2135
        %v2137 = vadd.s32 %v2136, 536870912
        %v2138 = vshrl.u32 %v2137, 30
        %v2139 = vshll.u32 %v2138, 30
        %v2140 = vsub.s32 %v2136, %v2139
        %vm2141 = vcmp.lt.s32.totalorder %v2140, 0
        %v2142 = vsub.s32 0, %v2140
        %v2143 = vsel %vm2141, %v2142, %v2140
        %v2144 = vclz %v2143
        %v2145 = vsub.s32 %v2144, 2
        %vm2146 = vcmp.gt.s32.totalorder 0, %v2145
        %v2147 = vsel %vm2146, 0, %v2145
        %v2148 = vsub.s32 32, %v2147
        %v2149 = vshll.u32 %v2140, %v2147
        %v2150 = vshrl.u32 %v2132, %v2148
        %v2151 = vor.u32 %v2149, %v2150
        %v2152 = vsub.s32 4294967266, %v2147
        %v2153 = vadd.s32 %v2152, 127
        %v2154 = vshll.u32 %v2153, 23
        %v2155 = vor.u32 4788187, %v2154
        %v2156 = vand.u32 2147483647, %v2155
        %v2158 = vcvt.s32.f32 %v2151
        %v2159 = vmul.f32 %v2158, %v2156
        %v2160 = vxor.u32 %v2159, 2147483648
        %v2161 = vsel %vm2078, %v2160, %v2159
        %v2162 = vsub.s32 4, %v2138
        %v2163 = vsel %vm2078, %v2162, %v2138
        %v2164 = vsel %vm2077, %v705, %v2161
        %v2165 = vsel %vm2077, 0, %v2163
        %v2166 = vcosq.f32.pop %v2164
        %v2167 = vsinq.f32.pop %v2164
        %vm2168 = vweird.f32 %v705
        %v2169 = vadd.s32 %v2165, 3
        %v2170 = vand.u32 %v2169, 3
        %vm2171 = vcmp.lt.s32.totalorder %v2170, 2
        %vm2172 = vcmp.eq.s32.totalorder %v2170, 0
        %v2173 = vxor.u32 %v2167, 2147483648
        %v2174 = vsel %vm2172, %v2166, %v2173
        %vm2175 = vcmp.eq.s32.totalorder %v2170, 2
        %v2176 = vxor.u32 %v2166, 2147483648
        %v2177 = vsel %vm2175, %v2176, %v2167
        %v2178 = vsel %vm2171, %v2174, %v2177
        %v2179 = vsel %vm2168, nan, %v2178
        %v2180 = vand.u32 2147483647, %v706
        %vm2181 = vcmp.le.f32.partialorder %v2180, 0.7853982
        %vm2182 = vcmp.lt.s32.totalorder %v706, 0
        %v2183 = vand.u32 %v706, 2139095040
        %v2184 = vshrl.u32 %v2183, 23
        %v2185 = vsub.s32 %v2184, 127
        %v2186 = vand.u32 2147483647, %v706
        %v2187 = vand.u32 %v2186, 8388607
        %v2188 = vor.u32 %v2187, 8388608
        %v2189 = vsub.s32 0, %v2188
        %v2190 = vadd.s32 %v2185, 1
        %vm2191 = vcmp.gt.s32.totalorder %v2190, 0
        %v2192 = vsel %vm2191, %v2190, 0
        %v2193 = vshrl.u32 %v2192, 5
        %v2194 = vand.u32 %v2192, 31
        %v2195 = vsub.s32 32, %v2194
        %v2196 = vshrl.u32 683565275, %v2195
        %v2197 = vshll.u32 683565275, %v2194
        %v2198 = vshrl.u32 2475754826, %v2195
        %v2199 = vor.u32 %v2197, %v2198
        %v2200 = vshll.u32 2475754826, %v2194
        %v2201 = vshrl.u32 2131351028, %v2195
        %v2202 = vor.u32 %v2200, %v2201
        %v2203 = vshll.u32 2131351028, %v2194
        %v2204 = vshrl.u32 2102212464, %v2195
        %v2205 = vor.u32 %v2203, %v2204
        %v2206 = vshll.u32 2102212464, %v2194
        %v2207 = vshrl.u32 920167782, %v2195
        %v2208 = vor.u32 %v2206, %v2207
        %v2209 = vshll.u32 920167782, %v2194
        %v2210 = vshrl.u32 1326507024, %v2195
        %v2211 = vor.u32 %v2209, %v2210
        %vm2212 = vcmp.lt.s32.totalorder %v2193, 1
        %vm2213 = vcmp.lt.s32.totalorder %v2193, 2
        %vm2214 = vcmp.lt.s32.totalorder %v2193, 3
        %vm2215 = vcmp.lt.s32.totalorder %v2193, 4
        %v2216 = vsel %vm2212, %v2196, %v2199
        %v2217 = vsel %vm2215, %v2205, 2102212464
        %v2218 = vsel %vm2214, %v2202, %v2217
        %v2219 = vsel %vm2213, %v2216, %v2218
        %v2220 = vsel %vm2212, %v2199, %v2202
        %v2221 = vsel %vm2215, %v2208, 920167782
        %v2222 = vsel %vm2214, %v2205, %v2221
        %v2223 = vsel %vm2213, %v2220, %v2222
        %v2224 = vsel %vm2212, %v2202, %v2205
        %v2225 = vsel %vm2215, %v2211, 1326507024
        %v2226 = vsel %vm2214, %v2208, %v2225
        %v2227 = vsel %vm2213, %v2224, %v2226
        %v2228 = vshll.u32 %v2188, 8
        %v2229 = vmul.u32.u64.compose %v2228, %v2227
        %v2230 = vextract.low.u32 %v2229
        %v2231 = vextract.high.u32 %v2229
        %v2232 = vmul.u32.u64.compose %v2228, %v2223
        %v2233 = vextract.low.u32 %v2232
        %v2234 = vextract.high.u32 %v2232
        %v2235 = vmul.u32 %v2228, %v2219
        %v2236 = vadd.s32 %v2231, %v2233
        %vm2237 = vc.u32 %v2231, %v2233
        %v2238 = vadd.s32 %v2234, 1
        %v2239 = vsel %vm2237, %v2238, %v2234
        %v2240 = vadd.s32 %v2235, %v2239
        %v2241 = vadd.s32 %v2240, 536870912
        %v2242 = vshrl.u32 %v2241, 30
        %v2243 = vshll.u32 %v2242, 30
        %v2244 = vsub.s32 %v2240, %v2243
        %vm2245 = vcmp.lt.s32.totalorder %v2244, 0
        %v2246 = vsub.s32 0, %v2244
        %v2247 = vsel %vm2245, %v2246, %v2244
        %v2248 = vclz %v2247
        %v2249 = vsub.s32 %v2248, 2
        %vm2250 = vcmp.gt.s32.totalorder 0, %v2249
        %v2251 = vsel %vm2250, 0, %v2249
        %v2252 = vsub.s32 32, %v2251
        %v2253 = vshll.u32 %v2244, %v2251
        %v2254 = vshrl.u32 %v2236, %v2252
        %v2255 = vor.u32 %v2253, %v2254
        %v2256 = vsub.s32 4294967266, %v2251
        %v2257 = vadd.s32 %v2256, 127
        %v2258 = vshll.u32 %v2257, 23
        %v2259 = vor.u32 4788187, %v2258
        %v2260 = vand.u32 2147483647, %v2259
        %v2262 = vcvt.s32.f32 %v2255
        %v2263 = vmul.f32 %v2262, %v2260
        %v2264 = vxor.u32 %v2263, 2147483648
        %v2265 = vsel %vm2182, %v2264, %v2263
        %v2266 = vsub.s32 4, %v2242
        %v2267 = vsel %vm2182, %v2266, %v2242
        %v2268 = vsel %vm2181, %v706, %v2265
        %v2269 = vsel %vm2181, 0, %v2267
        %v2270 = vcosq.f32.pop %v2268
        %v2271 = vsinq.f32.pop %v2268
        %vm2272 = vweird.f32 %v706
        %v2273 = vadd.s32 %v2269, 3
        %v2274 = vand.u32 %v2273, 3
        %vm2275 = vcmp.lt.s32.totalorder %v2274, 2
        %vm2276 = vcmp.eq.s32.totalorder %v2274, 0
        %v2277 = vxor.u32 %v2271, 2147483648
        %v2278 = vsel %vm2276, %v2270, %v2277
        %vm2279 = vcmp.eq.s32.totalorder %v2274, 2
        %v2280 = vxor.u32 %v2270, 2147483648
        %v2281 = vsel %vm2279, %v2280, %v2271
        %v2282 = vsel %vm2275, %v2278, %v2281
        %v2283 = vsel %vm2272, nan, %v2282
        %v2284 = vand.u32 2147483647, %v707
        %vm2285 = vcmp.le.f32.partialorder %v2284, 0.7853982
        %vm2286 = vcmp.lt.s32.totalorder %v707, 0
        %v2287 = vand.u32 %v707, 2139095040
        %v2288 = vshrl.u32 %v2287, 23
        %v2289 = vsub.s32 %v2288, 127
        %v2290 = vand.u32 2147483647, %v707
        %v2291 = vand.u32 %v2290, 8388607
        %v2292 = vor.u32 %v2291, 8388608
        %v2293 = vsub.s32 0, %v2292
        %v2294 = vadd.s32 %v2289, 1
        %vm2295 = vcmp.gt.s32.totalorder %v2294, 0
        %v2296 = vsel %vm2295, %v2294, 0
        %v2297 = vshrl.u32 %v2296, 5
        %v2298 = vand.u32 %v2296, 31
        %v2299 = vsub.s32 32, %v2298
        %v2300 = vshrl.u32 683565275, %v2299
        %v2301 = vshll.u32 683565275, %v2298
        %v2302 = vshrl.u32 2475754826, %v2299
        %v2303 = vor.u32 %v2301, %v2302
        %v2304 = vshll.u32 2475754826, %v2298
        %v2305 = vshrl.u32 2131351028, %v2299
        %v2306 = vor.u32 %v2304, %v2305
        %v2307 = vshll.u32 2131351028, %v2298
        %v2308 = vshrl.u32 2102212464, %v2299
        %v2309 = vor.u32 %v2307, %v2308
        %v2310 = vshll.u32 2102212464, %v2298
        %v2311 = vshrl.u32 920167782, %v2299
        %v2312 = vor.u32 %v2310, %v2311
        %v2313 = vshll.u32 920167782, %v2298
        %v2314 = vshrl.u32 1326507024, %v2299
        %v2315 = vor.u32 %v2313, %v2314
        %vm2316 = vcmp.lt.s32.totalorder %v2297, 1
        %vm2317 = vcmp.lt.s32.totalorder %v2297, 2
        %vm2318 = vcmp.lt.s32.totalorder %v2297, 3
        %vm2319 = vcmp.lt.s32.totalorder %v2297, 4
        %v2320 = vsel %vm2316, %v2300, %v2303
        %v2321 = vsel %vm2319, %v2309, 2102212464
        %v2322 = vsel %vm2318, %v2306, %v2321
        %v2323 = vsel %vm2317, %v2320, %v2322
        %v2324 = vsel %vm2316, %v2303, %v2306
        %v2325 = vsel %vm2319, %v2312, 920167782
        %v2326 = vsel %vm2318, %v2309, %v2325
        %v2327 = vsel %vm2317, %v2324, %v2326
        %v2328 = vsel %vm2316, %v2306, %v2309
        %v2329 = vsel %vm2319, %v2315, 1326507024
        %v2330 = vsel %vm2318, %v2312, %v2329
        %v2331 = vsel %vm2317, %v2328, %v2330
        %v2332 = vshll.u32 %v2292, 8
        %v2333 = vmul.u32.u64.compose %v2332, %v2331
        %v2334 = vextract.low.u32 %v2333
        %v2335 = vextract.high.u32 %v2333
        %v2336 = vmul.u32.u64.compose %v2332, %v2327
        %v2337 = vextract.low.u32 %v2336
        %v2338 = vextract.high.u32 %v2336
        %v2339 = vmul.u32 %v2332, %v2323
        %v2340 = vadd.s32 %v2335, %v2337
        %vm2341 = vc.u32 %v2335, %v2337
        %v2342 = vadd.s32 %v2338, 1
        %v2343 = vsel %vm2341, %v2342, %v2338
        %v2344 = vadd.s32 %v2339, %v2343
        %v2345 = vadd.s32 %v2344, 536870912
        %v2346 = vshrl.u32 %v2345, 30
        %v2347 = vshll.u32 %v2346, 30
        %v2348 = vsub.s32 %v2344, %v2347
        %vm2349 = vcmp.lt.s32.totalorder %v2348, 0
        %v2350 = vsub.s32 0, %v2348
        %v2351 = vsel %vm2349, %v2350, %v2348
        %v2352 = vclz %v2351
        %v2353 = vsub.s32 %v2352, 2
        %vm2354 = vcmp.gt.s32.totalorder 0, %v2353
        %v2355 = vsel %vm2354, 0, %v2353
        %v2356 = vsub.s32 32, %v2355
        %v2357 = vshll.u32 %v2348, %v2355
        %v2358 = vshrl.u32 %v2340, %v2356
        %v2359 = vor.u32 %v2357, %v2358
        %v2360 = vsub.s32 4294967266, %v2355
        %v2361 = vadd.s32 %v2360, 127
        %v2362 = vshll.u32 %v2361, 23
        %v2363 = vor.u32 4788187, %v2362
        %v2364 = vand.u32 2147483647, %v2363
        %v2366 = vcvt.s32.f32 %v2359
        %v2367 = vmul.f32 %v2366, %v2364
        %v2368 = vxor.u32 %v2367, 2147483648
        %v2369 = vsel %vm2286, %v2368, %v2367
        %v2370 = vsub.s32 4, %v2346
        %v2371 = vsel %vm2286, %v2370, %v2346
        %v2372 = vsel %vm2285, %v707, %v2369
        %v2373 = vsel %vm2285, 0, %v2371
        %v2374 = vcosq.f32.pop %v2372
        %v2375 = vsinq.f32.pop %v2372
        %vm2376 = vweird.f32 %v707
        %v2377 = vadd.s32 %v2373, 3
        %v2378 = vand.u32 %v2377, 3
        %vm2379 = vcmp.lt.s32.totalorder %v2378, 2
        %vm2380 = vcmp.eq.s32.totalorder %v2378, 0
        %v2381 = vxor.u32 %v2375, 2147483648
        %v2382 = vsel %vm2380, %v2374, %v2381
        %vm2383 = vcmp.eq.s32.totalorder %v2378, 2
        %v2384 = vxor.u32 %v2374, 2147483648
        %v2385 = vsel %vm2383, %v2384, %v2375
        %v2386 = vsel %vm2379, %v2382, %v2385
        %v2387 = vsel %vm2376, nan, %v2386
        %v2388 = vand.u32 2147483647, %v708
        %vm2389 = vcmp.le.f32.partialorder %v2388, 0.7853982
        %vm2390 = vcmp.lt.s32.totalorder %v708, 0
        %v2391 = vand.u32 %v708, 2139095040
        %v2392 = vshrl.u32 %v2391, 23
        %v2393 = vsub.s32 %v2392, 127
        %v2394 = vand.u32 2147483647, %v708
        %v2395 = vand.u32 %v2394, 8388607
        %v2396 = vor.u32 %v2395, 8388608
        %v2397 = vsub.s32 0, %v2396
        %v2398 = vadd.s32 %v2393, 1
        %vm2399 = vcmp.gt.s32.totalorder %v2398, 0
        %v2400 = vsel %vm2399, %v2398, 0
        %v2401 = vshrl.u32 %v2400, 5
        %v2402 = vand.u32 %v2400, 31
        %v2403 = vsub.s32 32, %v2402
        %v2404 = vshrl.u32 683565275, %v2403
        %v2405 = vshll.u32 683565275, %v2402
        %v2406 = vshrl.u32 2475754826, %v2403
        %v2407 = vor.u32 %v2405, %v2406
        %v2408 = vshll.u32 2475754826, %v2402
        %v2409 = vshrl.u32 2131351028, %v2403
        %v2410 = vor.u32 %v2408, %v2409
        %v2411 = vshll.u32 2131351028, %v2402
        %v2412 = vshrl.u32 2102212464, %v2403
        %v2413 = vor.u32 %v2411, %v2412
        %v2414 = vshll.u32 2102212464, %v2402
        %v2415 = vshrl.u32 920167782, %v2403
        %v2416 = vor.u32 %v2414, %v2415
        %v2417 = vshll.u32 920167782, %v2402
        %v2418 = vshrl.u32 1326507024, %v2403
        %v2419 = vor.u32 %v2417, %v2418
        %vm2420 = vcmp.lt.s32.totalorder %v2401, 1
        %vm2421 = vcmp.lt.s32.totalorder %v2401, 2
        %vm2422 = vcmp.lt.s32.totalorder %v2401, 3
        %vm2423 = vcmp.lt.s32.totalorder %v2401, 4
        %v2424 = vsel %vm2420, %v2404, %v2407
        %v2425 = vsel %vm2423, %v2413, 2102212464
        %v2426 = vsel %vm2422, %v2410, %v2425
        %v2427 = vsel %vm2421, %v2424, %v2426
        %v2428 = vsel %vm2420, %v2407, %v2410
        %v2429 = vsel %vm2423, %v2416, 920167782
        %v2430 = vsel %vm2422, %v2413, %v2429
        %v2431 = vsel %vm2421, %v2428, %v2430
        %v2432 = vsel %vm2420, %v2410, %v2413
        %v2433 = vsel %vm2423, %v2419, 1326507024
        %v2434 = vsel %vm2422, %v2416, %v2433
        %v2435 = vsel %vm2421, %v2432, %v2434
        %v2436 = vshll.u32 %v2396, 8
        %v2437 = vmul.u32.u64.compose %v2436, %v2435
        %v2438 = vextract.low.u32 %v2437
        %v2439 = vextract.high.u32 %v2437
        %v2440 = vmul.u32.u64.compose %v2436, %v2431
        %v2441 = vextract.low.u32 %v2440
        %v2442 = vextract.high.u32 %v2440
        %v2443 = vmul.u32 %v2436, %v2427
        %v2444 = vadd.s32 %v2439, %v2441
        %vm2445 = vc.u32 %v2439, %v2441
        %v2446 = vadd.s32 %v2442, 1
        %v2447 = vsel %vm2445, %v2446, %v2442
        %v2448 = vadd.s32 %v2443, %v2447
        %v2449 = vadd.s32 %v2448, 536870912
        %v2450 = vshrl.u32 %v2449, 30
        %v2451 = vshll.u32 %v2450, 30
        %v2452 = vsub.s32 %v2448, %v2451
        %vm2453 = vcmp.lt.s32.totalorder %v2452, 0
        %v2454 = vsub.s32 0, %v2452
        %v2455 = vsel %vm2453, %v2454, %v2452
        %v2456 = vclz %v2455
        %v2457 = vsub.s32 %v2456, 2
        %vm2458 = vcmp.gt.s32.totalorder 0, %v2457
        %v2459 = vsel %vm2458, 0, %v2457
        %v2460 = vsub.s32 32, %v2459
        %v2461 = vshll.u32 %v2452, %v2459
        %v2462 = vshrl.u32 %v2444, %v2460
        %v2463 = vor.u32 %v2461, %v2462
        %v2464 = vsub.s32 4294967266, %v2459
        %v2465 = vadd.s32 %v2464, 127
        %v2466 = vshll.u32 %v2465, 23
        %v2467 = vor.u32 4788187, %v2466
        %v2468 = vand.u32 2147483647, %v2467
        %v2470 = vcvt.s32.f32 %v2463
        %v2471 = vmul.f32 %v2470, %v2468
        %v2472 = vxor.u32 %v2471, 2147483648
        %v2473 = vsel %vm2390, %v2472, %v2471
        %v2474 = vsub.s32 4, %v2450
        %v2475 = vsel %vm2390, %v2474, %v2450
        %v2476 = vsel %vm2389, %v708, %v2473
        %v2477 = vsel %vm2389, 0, %v2475
        %v2478 = vcosq.f32.pop %v2476
        %v2479 = vsinq.f32.pop %v2476
        %vm2480 = vweird.f32 %v708
        %v2481 = vadd.s32 %v2477, 3
        %v2482 = vand.u32 %v2481, 3
        %vm2483 = vcmp.lt.s32.totalorder %v2482, 2
        %vm2484 = vcmp.eq.s32.totalorder %v2482, 0
        %v2485 = vxor.u32 %v2479, 2147483648
        %v2486 = vsel %vm2484, %v2478, %v2485
        %vm2487 = vcmp.eq.s32.totalorder %v2482, 2
        %v2488 = vxor.u32 %v2478, 2147483648
        %v2489 = vsel %vm2487, %v2488, %v2479
        %v2490 = vsel %vm2483, %v2486, %v2489
        %v2491 = vsel %vm2480, nan, %v2490
        %v2492 = vand.u32 2147483647, %v709
        %vm2493 = vcmp.le.f32.partialorder %v2492, 0.7853982
        %vm2494 = vcmp.lt.s32.totalorder %v709, 0
        %v2495 = vand.u32 %v709, 2139095040
        %v2496 = vshrl.u32 %v2495, 23
        %v2497 = vsub.s32 %v2496, 127
        %v2498 = vand.u32 2147483647, %v709
        %v2499 = vand.u32 %v2498, 8388607
        %v2500 = vor.u32 %v2499, 8388608
        %v2501 = vsub.s32 0, %v2500
        %v2502 = vadd.s32 %v2497, 1
        %vm2503 = vcmp.gt.s32.totalorder %v2502, 0
        %v2504 = vsel %vm2503, %v2502, 0
        %v2505 = vshrl.u32 %v2504, 5
        %v2506 = vand.u32 %v2504, 31
        %v2507 = vsub.s32 32, %v2506
        %v2508 = vshrl.u32 683565275, %v2507
        %v2509 = vshll.u32 683565275, %v2506
        %v2510 = vshrl.u32 2475754826, %v2507
        %v2511 = vor.u32 %v2509, %v2510
        %v2512 = vshll.u32 2475754826, %v2506
        %v2513 = vshrl.u32 2131351028, %v2507
        %v2514 = vor.u32 %v2512, %v2513
        %v2515 = vshll.u32 2131351028, %v2506
        %v2516 = vshrl.u32 2102212464, %v2507
        %v2517 = vor.u32 %v2515, %v2516
        %v2518 = vshll.u32 2102212464, %v2506
        %v2519 = vshrl.u32 920167782, %v2507
        %v2520 = vor.u32 %v2518, %v2519
        %v2521 = vshll.u32 920167782, %v2506
        %v2522 = vshrl.u32 1326507024, %v2507
        %v2523 = vor.u32 %v2521, %v2522
        %vm2524 = vcmp.lt.s32.totalorder %v2505, 1
        %vm2525 = vcmp.lt.s32.totalorder %v2505, 2
        %vm2526 = vcmp.lt.s32.totalorder %v2505, 3
        %vm2527 = vcmp.lt.s32.totalorder %v2505, 4
        %v2528 = vsel %vm2524, %v2508, %v2511
        %v2529 = vsel %vm2527, %v2517, 2102212464
        %v2530 = vsel %vm2526, %v2514, %v2529
        %v2531 = vsel %vm2525, %v2528, %v2530
        %v2532 = vsel %vm2524, %v2511, %v2514
        %v2533 = vsel %vm2527, %v2520, 920167782
        %v2534 = vsel %vm2526, %v2517, %v2533
        %v2535 = vsel %vm2525, %v2532, %v2534
        %v2536 = vsel %vm2524, %v2514, %v2517
        %v2537 = vsel %vm2527, %v2523, 1326507024
        %v2538 = vsel %vm2526, %v2520, %v2537
        %v2539 = vsel %vm2525, %v2536, %v2538
        %v2540 = vshll.u32 %v2500, 8
        %v2541 = vmul.u32.u64.compose %v2540, %v2539
        %v2542 = vextract.low.u32 %v2541
        %v2543 = vextract.high.u32 %v2541
        %v2544 = vmul.u32.u64.compose %v2540, %v2535
        %v2545 = vextract.low.u32 %v2544
        %v2546 = vextract.high.u32 %v2544
        %v2547 = vmul.u32 %v2540, %v2531
        %v2548 = vadd.s32 %v2543, %v2545
        %vm2549 = vc.u32 %v2543, %v2545
        %v2550 = vadd.s32 %v2546, 1
        %v2551 = vsel %vm2549, %v2550, %v2546
        %v2552 = vadd.s32 %v2547, %v2551
        %v2553 = vadd.s32 %v2552, 536870912
        %v2554 = vshrl.u32 %v2553, 30
        %v2555 = vshll.u32 %v2554, 30
        %v2556 = vsub.s32 %v2552, %v2555
        %vm2557 = vcmp.lt.s32.totalorder %v2556, 0
        %v2558 = vsub.s32 0, %v2556
        %v2559 = vsel %vm2557, %v2558, %v2556
        %v2560 = vclz %v2559
        %v2561 = vsub.s32 %v2560, 2
        %vm2562 = vcmp.gt.s32.totalorder 0, %v2561
        %v2563 = vsel %vm2562, 0, %v2561
        %v2564 = vsub.s32 32, %v2563
        %v2565 = vshll.u32 %v2556, %v2563
        %v2566 = vshrl.u32 %v2548, %v2564
        %v2567 = vor.u32 %v2565, %v2566
        %v2568 = vsub.s32 4294967266, %v2563
        %v2569 = vadd.s32 %v2568, 127
        %v2570 = vshll.u32 %v2569, 23
        %v2571 = vor.u32 4788187, %v2570
        %v2572 = vand.u32 2147483647, %v2571
        %v2574 = vcvt.s32.f32 %v2567
        %v2575 = vmul.f32 %v2574, %v2572
        %v2576 = vxor.u32 %v2575, 2147483648
        %v2577 = vsel %vm2494, %v2576, %v2575
        %v2578 = vsub.s32 4, %v2554
        %v2579 = vsel %vm2494, %v2578, %v2554
        %v2580 = vsel %vm2493, %v709, %v2577
        %v2581 = vsel %vm2493, 0, %v2579
        %v2582 = vcosq.f32.pop %v2580
        %v2583 = vsinq.f32.pop %v2580
        %vm2584 = vweird.f32 %v709
        %v2585 = vadd.s32 %v2581, 3
        %v2586 = vand.u32 %v2585, 3
        %vm2587 = vcmp.lt.s32.totalorder %v2586, 2
        %vm2588 = vcmp.eq.s32.totalorder %v2586, 0
        %v2589 = vxor.u32 %v2583, 2147483648
        %v2590 = vsel %vm2588, %v2582, %v2589
        %vm2591 = vcmp.eq.s32.totalorder %v2586, 2
        %v2592 = vxor.u32 %v2582, 2147483648
        %v2593 = vsel %vm2591, %v2592, %v2583
        %v2594 = vsel %vm2587, %v2590, %v2593
        %v2595 = vsel %vm2584, nan, %v2594
        %v2596 = vand.u32 2147483647, %v710
        %vm2597 = vcmp.le.f32.partialorder %v2596, 0.7853982
        %vm2598 = vcmp.lt.s32.totalorder %v710, 0
        %v2599 = vand.u32 %v710, 2139095040
        %v2600 = vshrl.u32 %v2599, 23
        %v2601 = vsub.s32 %v2600, 127
        %v2602 = vand.u32 2147483647, %v710
        %v2603 = vand.u32 %v2602, 8388607
        %v2604 = vor.u32 %v2603, 8388608
        %v2605 = vsub.s32 0, %v2604
        %v2606 = vadd.s32 %v2601, 1
        %vm2607 = vcmp.gt.s32.totalorder %v2606, 0
        %v2608 = vsel %vm2607, %v2606, 0
        %v2609 = vshrl.u32 %v2608, 5
        %v2610 = vand.u32 %v2608, 31
        %v2611 = vsub.s32 32, %v2610
        %v2612 = vshrl.u32 683565275, %v2611
        %v2613 = vshll.u32 683565275, %v2610
        %v2614 = vshrl.u32 2475754826, %v2611
        %v2615 = vor.u32 %v2613, %v2614
        %v2616 = vshll.u32 2475754826, %v2610
        %v2617 = vshrl.u32 2131351028, %v2611
        %v2618 = vor.u32 %v2616, %v2617
        %v2619 = vshll.u32 2131351028, %v2610
        %v2620 = vshrl.u32 2102212464, %v2611
        %v2621 = vor.u32 %v2619, %v2620
        %v2622 = vshll.u32 2102212464, %v2610
        %v2623 = vshrl.u32 920167782, %v2611
        %v2624 = vor.u32 %v2622, %v2623
        %v2625 = vshll.u32 920167782, %v2610
        %v2626 = vshrl.u32 1326507024, %v2611
        %v2627 = vor.u32 %v2625, %v2626
        %vm2628 = vcmp.lt.s32.totalorder %v2609, 1
        %vm2629 = vcmp.lt.s32.totalorder %v2609, 2
        %vm2630 = vcmp.lt.s32.totalorder %v2609, 3
        %vm2631 = vcmp.lt.s32.totalorder %v2609, 4
        %v2632 = vsel %vm2628, %v2612, %v2615
        %v2633 = vsel %vm2631, %v2621, 2102212464
        %v2634 = vsel %vm2630, %v2618, %v2633
        %v2635 = vsel %vm2629, %v2632, %v2634
        %v2636 = vsel %vm2628, %v2615, %v2618
        %v2637 = vsel %vm2631, %v2624, 920167782
        %v2638 = vsel %vm2630, %v2621, %v2637
        %v2639 = vsel %vm2629, %v2636, %v2638
        %v2640 = vsel %vm2628, %v2618, %v2621
        %v2641 = vsel %vm2631, %v2627, 1326507024
        %v2642 = vsel %vm2630, %v2624, %v2641
        %v2643 = vsel %vm2629, %v2640, %v2642
        %v2644 = vshll.u32 %v2604, 8
        %v2645 = vmul.u32.u64.compose %v2644, %v2643
        %v2646 = vextract.low.u32 %v2645
        %v2647 = vextract.high.u32 %v2645
        %v2648 = vmul.u32.u64.compose %v2644, %v2639
        %v2649 = vextract.low.u32 %v2648
        %v2650 = vextract.high.u32 %v2648
        %v2651 = vmul.u32 %v2644, %v2635
        %v2652 = vadd.s32 %v2647, %v2649
        %vm2653 = vc.u32 %v2647, %v2649
        %v2654 = vadd.s32 %v2650, 1
        %v2655 = vsel %vm2653, %v2654, %v2650
        %v2656 = vadd.s32 %v2651, %v2655
        %v2657 = vadd.s32 %v2656, 536870912
        %v2658 = vshrl.u32 %v2657, 30
        %v2659 = vshll.u32 %v2658, 30
        %v2660 = vsub.s32 %v2656, %v2659
        %vm2661 = vcmp.lt.s32.totalorder %v2660, 0
        %v2662 = vsub.s32 0, %v2660
        %v2663 = vsel %vm2661, %v2662, %v2660
        %v2664 = vclz %v2663
        %v2665 = vsub.s32 %v2664, 2
        %vm2666 = vcmp.gt.s32.totalorder 0, %v2665
        %v2667 = vsel %vm2666, 0, %v2665
        %v2668 = vsub.s32 32, %v2667
        %v2669 = vshll.u32 %v2660, %v2667
        %v2670 = vshrl.u32 %v2652, %v2668
        %v2671 = vor.u32 %v2669, %v2670
        %v2672 = vsub.s32 4294967266, %v2667
        %v2673 = vadd.s32 %v2672, 127
        %v2674 = vshll.u32 %v2673, 23
        %v2675 = vor.u32 4788187, %v2674
        %v2676 = vand.u32 2147483647, %v2675
        %v2678 = vcvt.s32.f32 %v2671
        %v2679 = vmul.f32 %v2678, %v2676
        %v2680 = vxor.u32 %v2679, 2147483648
        %v2681 = vsel %vm2598, %v2680, %v2679
        %v2682 = vsub.s32 4, %v2658
        %v2683 = vsel %vm2598, %v2682, %v2658
        %v2684 = vsel %vm2597, %v710, %v2681
        %v2685 = vsel %vm2597, 0, %v2683
        %v2686 = vcosq.f32.pop %v2684
        %v2687 = vsinq.f32.pop %v2684
        %vm2688 = vweird.f32 %v710
        %v2689 = vadd.s32 %v2685, 3
        %v2690 = vand.u32 %v2689, 3
        %vm2691 = vcmp.lt.s32.totalorder %v2690, 2
        %vm2692 = vcmp.eq.s32.totalorder %v2690, 0
        %v2693 = vxor.u32 %v2687, 2147483648
        %v2694 = vsel %vm2692, %v2686, %v2693
        %vm2695 = vcmp.eq.s32.totalorder %v2690, 2
        %v2696 = vxor.u32 %v2686, 2147483648
        %v2697 = vsel %vm2695, %v2696, %v2687
        %v2698 = vsel %vm2691, %v2694, %v2697
        %v2699 = vsel %vm2688, nan, %v2698
        %v2700 = vand.u32 2147483647, %v711
        %vm2701 = vcmp.le.f32.partialorder %v2700, 0.7853982
        %vm2702 = vcmp.lt.s32.totalorder %v711, 0
        %v2703 = vand.u32 %v711, 2139095040
        %v2704 = vshrl.u32 %v2703, 23
        %v2705 = vsub.s32 %v2704, 127
        %v2706 = vand.u32 2147483647, %v711
        %v2707 = vand.u32 %v2706, 8388607
        %v2708 = vor.u32 %v2707, 8388608
        %v2709 = vsub.s32 0, %v2708
        %v2710 = vadd.s32 %v2705, 1
        %vm2711 = vcmp.gt.s32.totalorder %v2710, 0
        %v2712 = vsel %vm2711, %v2710, 0
        %v2713 = vshrl.u32 %v2712, 5
        %v2714 = vand.u32 %v2712, 31
        %v2715 = vsub.s32 32, %v2714
        %v2716 = vshrl.u32 683565275, %v2715
        %v2717 = vshll.u32 683565275, %v2714
        %v2718 = vshrl.u32 2475754826, %v2715
        %v2719 = vor.u32 %v2717, %v2718
        %v2720 = vshll.u32 2475754826, %v2714
        %v2721 = vshrl.u32 2131351028, %v2715
        %v2722 = vor.u32 %v2720, %v2721
        %v2723 = vshll.u32 2131351028, %v2714
        %v2724 = vshrl.u32 2102212464, %v2715
        %v2725 = vor.u32 %v2723, %v2724
        %v2726 = vshll.u32 2102212464, %v2714
        %v2727 = vshrl.u32 920167782, %v2715
        %v2728 = vor.u32 %v2726, %v2727
        %v2729 = vshll.u32 920167782, %v2714
        %v2730 = vshrl.u32 1326507024, %v2715
        %v2731 = vor.u32 %v2729, %v2730
        %vm2732 = vcmp.lt.s32.totalorder %v2713, 1
        %vm2733 = vcmp.lt.s32.totalorder %v2713, 2
        %vm2734 = vcmp.lt.s32.totalorder %v2713, 3
        %vm2735 = vcmp.lt.s32.totalorder %v2713, 4
        %v2736 = vsel %vm2732, %v2716, %v2719
        %v2737 = vsel %vm2735, %v2725, 2102212464
        %v2738 = vsel %vm2734, %v2722, %v2737
        %v2739 = vsel %vm2733, %v2736, %v2738
        %v2740 = vsel %vm2732, %v2719, %v2722
        %v2741 = vsel %vm2735, %v2728, 920167782
        %v2742 = vsel %vm2734, %v2725, %v2741
        %v2743 = vsel %vm2733, %v2740, %v2742
        %v2744 = vsel %vm2732, %v2722, %v2725
        %v2745 = vsel %vm2735, %v2731, 1326507024
        %v2746 = vsel %vm2734, %v2728, %v2745
        %v2747 = vsel %vm2733, %v2744, %v2746
        %v2748 = vshll.u32 %v2708, 8
        %v2749 = vmul.u32.u64.compose %v2748, %v2747
        %v2750 = vextract.low.u32 %v2749
        %v2751 = vextract.high.u32 %v2749
        %v2752 = vmul.u32.u64.compose %v2748, %v2743
        %v2753 = vextract.low.u32 %v2752
        %v2754 = vextract.high.u32 %v2752
        %v2755 = vmul.u32 %v2748, %v2739
        %v2756 = vadd.s32 %v2751, %v2753
        %vm2757 = vc.u32 %v2751, %v2753
        %v2758 = vadd.s32 %v2754, 1
        %v2759 = vsel %vm2757, %v2758, %v2754
        %v2760 = vadd.s32 %v2755, %v2759
        %v2761 = vadd.s32 %v2760, 536870912
        %v2762 = vshrl.u32 %v2761, 30
        %v2763 = vshll.u32 %v2762, 30
        %v2764 = vsub.s32 %v2760, %v2763
        %vm2765 = vcmp.lt.s32.totalorder %v2764, 0
        %v2766 = vsub.s32 0, %v2764
        %v2767 = vsel %vm2765, %v2766, %v2764
        %v2768 = vclz %v2767
        %v2769 = vsub.s32 %v2768, 2
        %vm2770 = vcmp.gt.s32.totalorder 0, %v2769
        %v2771 = vsel %vm2770, 0, %v2769
        %v2772 = vsub.s32 32, %v2771
        %v2773 = vshll.u32 %v2764, %v2771
        %v2774 = vshrl.u32 %v2756, %v2772
        %v2775 = vor.u32 %v2773, %v2774
        %v2776 = vsub.s32 4294967266, %v2771
        %v2777 = vadd.s32 %v2776, 127
        %v2778 = vshll.u32 %v2777, 23
        %v2779 = vor.u32 4788187, %v2778
        %v2780 = vand.u32 2147483647, %v2779
        %v2782 = vcvt.s32.f32 %v2775
        %v2783 = vmul.f32 %v2782, %v2780
        %v2784 = vxor.u32 %v2783, 2147483648
        %v2785 = vsel %vm2702, %v2784, %v2783
        %v2786 = vsub.s32 4, %v2762
        %v2787 = vsel %vm2702, %v2786, %v2762
        %v2788 = vsel %vm2701, %v711, %v2785
        %v2789 = vsel %vm2701, 0, %v2787
        %v2790 = vcosq.f32.pop %v2788
        %v2791 = vsinq.f32.pop %v2788
        %vm2792 = vweird.f32 %v711
        %v2793 = vadd.s32 %v2789, 3
        %v2794 = vand.u32 %v2793, 3
        %vm2795 = vcmp.lt.s32.totalorder %v2794, 2
        %vm2796 = vcmp.eq.s32.totalorder %v2794, 0
        %v2797 = vxor.u32 %v2791, 2147483648
        %v2798 = vsel %vm2796, %v2790, %v2797
        %vm2799 = vcmp.eq.s32.totalorder %v2794, 2
        %v2800 = vxor.u32 %v2790, 2147483648
        %v2801 = vsel %vm2799, %v2800, %v2791
        %v2802 = vsel %vm2795, %v2798, %v2801
        %v2803 = vsel %vm2792, nan, %v2802
        %v2804 = vand.u32 2147483647, %v712
        %vm2805 = vcmp.le.f32.partialorder %v2804, 0.7853982
        %vm2806 = vcmp.lt.s32.totalorder %v712, 0
        %v2807 = vand.u32 %v712, 2139095040
        %v2808 = vshrl.u32 %v2807, 23
        %v2809 = vsub.s32 %v2808, 127
        %v2810 = vand.u32 2147483647, %v712
        %v2811 = vand.u32 %v2810, 8388607
        %v2812 = vor.u32 %v2811, 8388608
        %v2813 = vsub.s32 0, %v2812
        %v2814 = vadd.s32 %v2809, 1
        %vm2815 = vcmp.gt.s32.totalorder %v2814, 0
        %v2816 = vsel %vm2815, %v2814, 0
        %v2817 = vshrl.u32 %v2816, 5
        %v2818 = vand.u32 %v2816, 31
        %v2819 = vsub.s32 32, %v2818
        %v2820 = vshrl.u32 683565275, %v2819
        %v2821 = vshll.u32 683565275, %v2818
        %v2822 = vshrl.u32 2475754826, %v2819
        %v2823 = vor.u32 %v2821, %v2822
        %v2824 = vshll.u32 2475754826, %v2818
        %v2825 = vshrl.u32 2131351028, %v2819
        %v2826 = vor.u32 %v2824, %v2825
        %v2827 = vshll.u32 2131351028, %v2818
        %v2828 = vshrl.u32 2102212464, %v2819
        %v2829 = vor.u32 %v2827, %v2828
        %v2830 = vshll.u32 2102212464, %v2818
        %v2831 = vshrl.u32 920167782, %v2819
        %v2832 = vor.u32 %v2830, %v2831
        %v2833 = vshll.u32 920167782, %v2818
        %v2834 = vshrl.u32 1326507024, %v2819
        %v2835 = vor.u32 %v2833, %v2834
        %vm2836 = vcmp.lt.s32.totalorder %v2817, 1
        %vm2837 = vcmp.lt.s32.totalorder %v2817, 2
        %vm2838 = vcmp.lt.s32.totalorder %v2817, 3
        %vm2839 = vcmp.lt.s32.totalorder %v2817, 4
        %v2840 = vsel %vm2836, %v2820, %v2823
        %v2841 = vsel %vm2839, %v2829, 2102212464
        %v2842 = vsel %vm2838, %v2826, %v2841
        %v2843 = vsel %vm2837, %v2840, %v2842
        %v2844 = vsel %vm2836, %v2823, %v2826
        %v2845 = vsel %vm2839, %v2832, 920167782
        %v2846 = vsel %vm2838, %v2829, %v2845
        %v2847 = vsel %vm2837, %v2844, %v2846
        %v2848 = vsel %vm2836, %v2826, %v2829
        %v2849 = vsel %vm2839, %v2835, 1326507024
        %v2850 = vsel %vm2838, %v2832, %v2849
        %v2851 = vsel %vm2837, %v2848, %v2850
        %v2852 = vshll.u32 %v2812, 8
        %v2853 = vmul.u32.u64.compose %v2852, %v2851
        %v2854 = vextract.low.u32 %v2853
        %v2855 = vextract.high.u32 %v2853
        %v2856 = vmul.u32.u64.compose %v2852, %v2847
        %v2857 = vextract.low.u32 %v2856
        %v2858 = vextract.high.u32 %v2856
        %v2859 = vmul.u32 %v2852, %v2843
        %v2860 = vadd.s32 %v2855, %v2857
        %vm2861 = vc.u32 %v2855, %v2857
        %v2862 = vadd.s32 %v2858, 1
        %v2863 = vsel %vm2861, %v2862, %v2858
        %v2864 = vadd.s32 %v2859, %v2863
        %v2865 = vadd.s32 %v2864, 536870912
        %v2866 = vshrl.u32 %v2865, 30
        %v2867 = vshll.u32 %v2866, 30
        %v2868 = vsub.s32 %v2864, %v2867
        %vm2869 = vcmp.lt.s32.totalorder %v2868, 0
        %v2870 = vsub.s32 0, %v2868
        %v2871 = vsel %vm2869, %v2870, %v2868
        %v2872 = vclz %v2871
        %v2873 = vsub.s32 %v2872, 2
        %vm2874 = vcmp.gt.s32.totalorder 0, %v2873
        %v2875 = vsel %vm2874, 0, %v2873
        %v2876 = vsub.s32 32, %v2875
        %v2877 = vshll.u32 %v2868, %v2875
        %v2878 = vshrl.u32 %v2860, %v2876
        %v2879 = vor.u32 %v2877, %v2878
        %v2880 = vsub.s32 4294967266, %v2875
        %v2881 = vadd.s32 %v2880, 127
        %v2882 = vshll.u32 %v2881, 23
        %v2883 = vor.u32 4788187, %v2882
        %v2884 = vand.u32 2147483647, %v2883
        %v2886 = vcvt.s32.f32 %v2879
        %v2887 = vmul.f32 %v2886, %v2884
        %v2888 = vxor.u32 %v2887, 2147483648
        %v2889 = vsel %vm2806, %v2888, %v2887
        %v2890 = vsub.s32 4, %v2866
        %v2891 = vsel %vm2806, %v2890, %v2866
        %v2892 = vsel %vm2805, %v712, %v2889
        %v2893 = vsel %vm2805, 0, %v2891
        %v2894 = vcosq.f32.pop %v2892
        %v2895 = vsinq.f32.pop %v2892
        %vm2896 = vweird.f32 %v712
        %v2897 = vadd.s32 %v2893, 3
        %v2898 = vand.u32 %v2897, 3
        %vm2899 = vcmp.lt.s32.totalorder %v2898, 2
        %vm2900 = vcmp.eq.s32.totalorder %v2898, 0
        %v2901 = vxor.u32 %v2895, 2147483648
        %v2902 = vsel %vm2900, %v2894, %v2901
        %vm2903 = vcmp.eq.s32.totalorder %v2898, 2
        %v2904 = vxor.u32 %v2894, 2147483648
        %v2905 = vsel %vm2903, %v2904, %v2895
        %v2906 = vsel %vm2899, %v2902, %v2905
        %v2907 = vsel %vm2896, nan, %v2906
        %v2908 = vand.u32 2147483647, %v713
        %vm2909 = vcmp.le.f32.partialorder %v2908, 0.7853982
        %vm2910 = vcmp.lt.s32.totalorder %v713, 0
        %v2911 = vand.u32 %v713, 2139095040
        %v2912 = vshrl.u32 %v2911, 23
        %v2913 = vsub.s32 %v2912, 127
        %v2914 = vand.u32 2147483647, %v713
        %v2915 = vand.u32 %v2914, 8388607
        %v2916 = vor.u32 %v2915, 8388608
        %v2917 = vsub.s32 0, %v2916
        %v2918 = vadd.s32 %v2913, 1
        %vm2919 = vcmp.gt.s32.totalorder %v2918, 0
        %v2920 = vsel %vm2919, %v2918, 0
        %v2921 = vshrl.u32 %v2920, 5
        %v2922 = vand.u32 %v2920, 31
        %v2923 = vsub.s32 32, %v2922
        %v2924 = vshrl.u32 683565275, %v2923
        %v2925 = vshll.u32 683565275, %v2922
        %v2926 = vshrl.u32 2475754826, %v2923
        %v2927 = vor.u32 %v2925, %v2926
        %v2928 = vshll.u32 2475754826, %v2922
        %v2929 = vshrl.u32 2131351028, %v2923
        %v2930 = vor.u32 %v2928, %v2929
        %v2931 = vshll.u32 2131351028, %v2922
        %v2932 = vshrl.u32 2102212464, %v2923
        %v2933 = vor.u32 %v2931, %v2932
        %v2934 = vshll.u32 2102212464, %v2922
        %v2935 = vshrl.u32 920167782, %v2923
        %v2936 = vor.u32 %v2934, %v2935
        %v2937 = vshll.u32 920167782, %v2922
        %v2938 = vshrl.u32 1326507024, %v2923
        %v2939 = vor.u32 %v2937, %v2938
        %vm2940 = vcmp.lt.s32.totalorder %v2921, 1
        %vm2941 = vcmp.lt.s32.totalorder %v2921, 2
        %vm2942 = vcmp.lt.s32.totalorder %v2921, 3
        %vm2943 = vcmp.lt.s32.totalorder %v2921, 4
        %v2944 = vsel %vm2940, %v2924, %v2927
        %v2945 = vsel %vm2943, %v2933, 2102212464
        %v2946 = vsel %vm2942, %v2930, %v2945
        %v2947 = vsel %vm2941, %v2944, %v2946
        %v2948 = vsel %vm2940, %v2927, %v2930
        %v2949 = vsel %vm2943, %v2936, 920167782
        %v2950 = vsel %vm2942, %v2933, %v2949
        %v2951 = vsel %vm2941, %v2948, %v2950
        %v2952 = vsel %vm2940, %v2930, %v2933
        %v2953 = vsel %vm2943, %v2939, 1326507024
        %v2954 = vsel %vm2942, %v2936, %v2953
        %v2955 = vsel %vm2941, %v2952, %v2954
        %v2956 = vshll.u32 %v2916, 8
        %v2957 = vmul.u32.u64.compose %v2956, %v2955
        %v2958 = vextract.low.u32 %v2957
        %v2959 = vextract.high.u32 %v2957
        %v2960 = vmul.u32.u64.compose %v2956, %v2951
        %v2961 = vextract.low.u32 %v2960
        %v2962 = vextract.high.u32 %v2960
        %v2963 = vmul.u32 %v2956, %v2947
        %v2964 = vadd.s32 %v2959, %v2961
        %vm2965 = vc.u32 %v2959, %v2961
        %v2966 = vadd.s32 %v2962, 1
        %v2967 = vsel %vm2965, %v2966, %v2962
        %v2968 = vadd.s32 %v2963, %v2967
        %v2969 = vadd.s32 %v2968, 536870912
        %v2970 = vshrl.u32 %v2969, 30
        %v2971 = vshll.u32 %v2970, 30
        %v2972 = vsub.s32 %v2968, %v2971
        %vm2973 = vcmp.lt.s32.totalorder %v2972, 0
        %v2974 = vsub.s32 0, %v2972
        %v2975 = vsel %vm2973, %v2974, %v2972
        %v2976 = vclz %v2975
        %v2977 = vsub.s32 %v2976, 2
        %vm2978 = vcmp.gt.s32.totalorder 0, %v2977
        %v2979 = vsel %vm2978, 0, %v2977
        %v2980 = vsub.s32 32, %v2979
        %v2981 = vshll.u32 %v2972, %v2979
        %v2982 = vshrl.u32 %v2964, %v2980
        %v2983 = vor.u32 %v2981, %v2982
        %v2984 = vsub.s32 4294967266, %v2979
        %v2985 = vadd.s32 %v2984, 127
        %v2986 = vshll.u32 %v2985, 23
        %v2987 = vor.u32 4788187, %v2986
        %v2988 = vand.u32 2147483647, %v2987
        %v2990 = vcvt.s32.f32 %v2983
        %v2991 = vmul.f32 %v2990, %v2988
        %v2992 = vxor.u32 %v2991, 2147483648
        %v2993 = vsel %vm2910, %v2992, %v2991
        %v2994 = vsub.s32 4, %v2970
        %v2995 = vsel %vm2910, %v2994, %v2970
        %v2996 = vsel %vm2909, %v713, %v2993
        %v2997 = vsel %vm2909, 0, %v2995
        %v2998 = vcosq.f32.pop %v2996
        %v2999 = vsinq.f32.pop %v2996
        %vm3000 = vweird.f32 %v713
        %v3001 = vadd.s32 %v2997, 3
        %v3002 = vand.u32 %v3001, 3
        %vm3003 = vcmp.lt.s32.totalorder %v3002, 2
        %vm3004 = vcmp.eq.s32.totalorder %v3002, 0
        %v3005 = vxor.u32 %v2999, 2147483648
        %v3006 = vsel %vm3004, %v2998, %v3005
        %vm3007 = vcmp.eq.s32.totalorder %v3002, 2
        %v3008 = vxor.u32 %v2998, 2147483648
        %v3009 = vsel %vm3007, %v3008, %v2999
        %v3010 = vsel %vm3003, %v3006, %v3009
        %v3011 = vsel %vm3000, nan, %v3010
        %v3012 = vand.u32 2147483647, %v714
        %vm3013 = vcmp.le.f32.partialorder %v3012, 0.7853982
        %vm3014 = vcmp.lt.s32.totalorder %v714, 0
        %v3015 = vand.u32 %v714, 2139095040
        %v3016 = vshrl.u32 %v3015, 23
        %v3017 = vsub.s32 %v3016, 127
        %v3018 = vand.u32 2147483647, %v714
        %v3019 = vand.u32 %v3018, 8388607
        %v3020 = vor.u32 %v3019, 8388608
        %v3021 = vsub.s32 0, %v3020
        %v3022 = vadd.s32 %v3017, 1
        %vm3023 = vcmp.gt.s32.totalorder %v3022, 0
        %v3024 = vsel %vm3023, %v3022, 0
        %v3025 = vshrl.u32 %v3024, 5
        %v3026 = vand.u32 %v3024, 31
        %v3027 = vsub.s32 32, %v3026
        %v3028 = vshrl.u32 683565275, %v3027
        %v3029 = vshll.u32 683565275, %v3026
        %v3030 = vshrl.u32 2475754826, %v3027
        %v3031 = vor.u32 %v3029, %v3030
        %v3032 = vshll.u32 2475754826, %v3026
        %v3033 = vshrl.u32 2131351028, %v3027
        %v3034 = vor.u32 %v3032, %v3033
        %v3035 = vshll.u32 2131351028, %v3026
        %v3036 = vshrl.u32 2102212464, %v3027
        %v3037 = vor.u32 %v3035, %v3036
        %v3038 = vshll.u32 2102212464, %v3026
        %v3039 = vshrl.u32 920167782, %v3027
        %v3040 = vor.u32 %v3038, %v3039
        %v3041 = vshll.u32 920167782, %v3026
        %v3042 = vshrl.u32 1326507024, %v3027
        %v3043 = vor.u32 %v3041, %v3042
        %vm3044 = vcmp.lt.s32.totalorder %v3025, 1
        %vm3045 = vcmp.lt.s32.totalorder %v3025, 2
        %vm3046 = vcmp.lt.s32.totalorder %v3025, 3
        %vm3047 = vcmp.lt.s32.totalorder %v3025, 4
        %v3048 = vsel %vm3044, %v3028, %v3031
        %v3049 = vsel %vm3047, %v3037, 2102212464
        %v3050 = vsel %vm3046, %v3034, %v3049
        %v3051 = vsel %vm3045, %v3048, %v3050
        %v3052 = vsel %vm3044, %v3031, %v3034
        %v3053 = vsel %vm3047, %v3040, 920167782
        %v3054 = vsel %vm3046, %v3037, %v3053
        %v3055 = vsel %vm3045, %v3052, %v3054
        %v3056 = vsel %vm3044, %v3034, %v3037
        %v3057 = vsel %vm3047, %v3043, 1326507024
        %v3058 = vsel %vm3046, %v3040, %v3057
        %v3059 = vsel %vm3045, %v3056, %v3058
        %v3060 = vshll.u32 %v3020, 8
        %v3061 = vmul.u32.u64.compose %v3060, %v3059
        %v3062 = vextract.low.u32 %v3061
        %v3063 = vextract.high.u32 %v3061
        %v3064 = vmul.u32.u64.compose %v3060, %v3055
        %v3065 = vextract.low.u32 %v3064
        %v3066 = vextract.high.u32 %v3064
        %v3067 = vmul.u32 %v3060, %v3051
        %v3068 = vadd.s32 %v3063, %v3065
        %vm3069 = vc.u32 %v3063, %v3065
        %v3070 = vadd.s32 %v3066, 1
        %v3071 = vsel %vm3069, %v3070, %v3066
        %v3072 = vadd.s32 %v3067, %v3071
        %v3073 = vadd.s32 %v3072, 536870912
        %v3074 = vshrl.u32 %v3073, 30
        %v3075 = vshll.u32 %v3074, 30
        %v3076 = vsub.s32 %v3072, %v3075
        %vm3077 = vcmp.lt.s32.totalorder %v3076, 0
        %v3078 = vsub.s32 0, %v3076
        %v3079 = vsel %vm3077, %v3078, %v3076
        %v3080 = vclz %v3079
        %v3081 = vsub.s32 %v3080, 2
        %vm3082 = vcmp.gt.s32.totalorder 0, %v3081
        %v3083 = vsel %vm3082, 0, %v3081
        %v3084 = vsub.s32 32, %v3083
        %v3085 = vshll.u32 %v3076, %v3083
        %v3086 = vshrl.u32 %v3068, %v3084
        %v3087 = vor.u32 %v3085, %v3086
        %v3088 = vsub.s32 4294967266, %v3083
        %v3089 = vadd.s32 %v3088, 127
        %v3090 = vshll.u32 %v3089, 23
        %v3091 = vor.u32 4788187, %v3090
        %v3092 = vand.u32 2147483647, %v3091
        %v3094 = vcvt.s32.f32 %v3087
        %v3095 = vmul.f32 %v3094, %v3092
        %v3096 = vxor.u32 %v3095, 2147483648
        %v3097 = vsel %vm3014, %v3096, %v3095
        %v3098 = vsub.s32 4, %v3074
        %v3099 = vsel %vm3014, %v3098, %v3074
        %v3100 = vsel %vm3013, %v714, %v3097
        %v3101 = vsel %vm3013, 0, %v3099
        %v3102 = vcosq.f32.pop %v3100
        %v3103 = vsinq.f32.pop %v3100
        %vm3104 = vweird.f32 %v714
        %v3105 = vadd.s32 %v3101, 3
        %v3106 = vand.u32 %v3105, 3
        %vm3107 = vcmp.lt.s32.totalorder %v3106, 2
        %vm3108 = vcmp.eq.s32.totalorder %v3106, 0
        %v3109 = vxor.u32 %v3103, 2147483648
        %v3110 = vsel %vm3108, %v3102, %v3109
        %vm3111 = vcmp.eq.s32.totalorder %v3106, 2
        %v3112 = vxor.u32 %v3102, 2147483648
        %v3113 = vsel %vm3111, %v3112, %v3103
        %v3114 = vsel %vm3107, %v3110, %v3113
        %v3115 = vsel %vm3104, nan, %v3114
        %v3116 = vand.u32 2147483647, %v715
        %vm3117 = vcmp.le.f32.partialorder %v3116, 0.7853982
        %vm3118 = vcmp.lt.s32.totalorder %v715, 0
        %v3119 = vand.u32 %v715, 2139095040
        %v3120 = vshrl.u32 %v3119, 23
        %v3121 = vsub.s32 %v3120, 127
        %v3122 = vand.u32 2147483647, %v715
        %v3123 = vand.u32 %v3122, 8388607
        %v3124 = vor.u32 %v3123, 8388608
        %v3125 = vsub.s32 0, %v3124
        %v3126 = vadd.s32 %v3121, 1
        %vm3127 = vcmp.gt.s32.totalorder %v3126, 0
        %v3128 = vsel %vm3127, %v3126, 0
        %v3129 = vshrl.u32 %v3128, 5
        %v3130 = vand.u32 %v3128, 31
        %v3131 = vsub.s32 32, %v3130
        %v3132 = vshrl.u32 683565275, %v3131
        %v3133 = vshll.u32 683565275, %v3130
        %v3134 = vshrl.u32 2475754826, %v3131
        %v3135 = vor.u32 %v3133, %v3134
        %v3136 = vshll.u32 2475754826, %v3130
        %v3137 = vshrl.u32 2131351028, %v3131
        %v3138 = vor.u32 %v3136, %v3137
        %v3139 = vshll.u32 2131351028, %v3130
        %v3140 = vshrl.u32 2102212464, %v3131
        %v3141 = vor.u32 %v3139, %v3140
        %v3142 = vshll.u32 2102212464, %v3130
        %v3143 = vshrl.u32 920167782, %v3131
        %v3144 = vor.u32 %v3142, %v3143
        %v3145 = vshll.u32 920167782, %v3130
        %v3146 = vshrl.u32 1326507024, %v3131
        %v3147 = vor.u32 %v3145, %v3146
        %vm3148 = vcmp.lt.s32.totalorder %v3129, 1
        %vm3149 = vcmp.lt.s32.totalorder %v3129, 2
        %vm3150 = vcmp.lt.s32.totalorder %v3129, 3
        %vm3151 = vcmp.lt.s32.totalorder %v3129, 4
        %v3152 = vsel %vm3148, %v3132, %v3135
        %v3153 = vsel %vm3151, %v3141, 2102212464
        %v3154 = vsel %vm3150, %v3138, %v3153
        %v3155 = vsel %vm3149, %v3152, %v3154
        %v3156 = vsel %vm3148, %v3135, %v3138
        %v3157 = vsel %vm3151, %v3144, 920167782
        %v3158 = vsel %vm3150, %v3141, %v3157
        %v3159 = vsel %vm3149, %v3156, %v3158
        %v3160 = vsel %vm3148, %v3138, %v3141
        %v3161 = vsel %vm3151, %v3147, 1326507024
        %v3162 = vsel %vm3150, %v3144, %v3161
        %v3163 = vsel %vm3149, %v3160, %v3162
        %v3164 = vshll.u32 %v3124, 8
        %v3165 = vmul.u32.u64.compose %v3164, %v3163
        %v3166 = vextract.low.u32 %v3165
        %v3167 = vextract.high.u32 %v3165
        %v3168 = vmul.u32.u64.compose %v3164, %v3159
        %v3169 = vextract.low.u32 %v3168
        %v3170 = vextract.high.u32 %v3168
        %v3171 = vmul.u32 %v3164, %v3155
        %v3172 = vadd.s32 %v3167, %v3169
        %vm3173 = vc.u32 %v3167, %v3169
        %v3174 = vadd.s32 %v3170, 1
        %v3175 = vsel %vm3173, %v3174, %v3170
        %v3176 = vadd.s32 %v3171, %v3175
        %v3177 = vadd.s32 %v3176, 536870912
        %v3178 = vshrl.u32 %v3177, 30
        %v3179 = vshll.u32 %v3178, 30
        %v3180 = vsub.s32 %v3176, %v3179
        %vm3181 = vcmp.lt.s32.totalorder %v3180, 0
        %v3182 = vsub.s32 0, %v3180
        %v3183 = vsel %vm3181, %v3182, %v3180
        %v3184 = vclz %v3183
        %v3185 = vsub.s32 %v3184, 2
        %vm3186 = vcmp.gt.s32.totalorder 0, %v3185
        %v3187 = vsel %vm3186, 0, %v3185
        %v3188 = vsub.s32 32, %v3187
        %v3189 = vshll.u32 %v3180, %v3187
        %v3190 = vshrl.u32 %v3172, %v3188
        %v3191 = vor.u32 %v3189, %v3190
        %v3192 = vsub.s32 4294967266, %v3187
        %v3193 = vadd.s32 %v3192, 127
        %v3194 = vshll.u32 %v3193, 23
        %v3195 = vor.u32 4788187, %v3194
        %v3196 = vand.u32 2147483647, %v3195
        %v3198 = vcvt.s32.f32 %v3191
        %v3199 = vmul.f32 %v3198, %v3196
        %v3200 = vxor.u32 %v3199, 2147483648
        %v3201 = vsel %vm3118, %v3200, %v3199
        %v3202 = vsub.s32 4, %v3178
        %v3203 = vsel %vm3118, %v3202, %v3178
        %v3204 = vsel %vm3117, %v715, %v3201
        %v3205 = vsel %vm3117, 0, %v3203
        %v3206 = vcosq.f32.pop %v3204
        %v3207 = vsinq.f32.pop %v3204
        %vm3208 = vweird.f32 %v715
        %v3209 = vadd.s32 %v3205, 3
        %v3210 = vand.u32 %v3209, 3
        %vm3211 = vcmp.lt.s32.totalorder %v3210, 2
        %vm3212 = vcmp.eq.s32.totalorder %v3210, 0
        %v3213 = vxor.u32 %v3207, 2147483648
        %v3214 = vsel %vm3212, %v3206, %v3213
        %vm3215 = vcmp.eq.s32.totalorder %v3210, 2
        %v3216 = vxor.u32 %v3206, 2147483648
        %v3217 = vsel %vm3215, %v3216, %v3207
        %v3218 = vsel %vm3211, %v3214, %v3217
        %v3219 = vsel %vm3208, nan, %v3218
        %v3220 = vand.u32 2147483647, %v716
        %vm3221 = vcmp.le.f32.partialorder %v3220, 0.7853982
        %vm3222 = vcmp.lt.s32.totalorder %v716, 0
        %v3223 = vand.u32 %v716, 2139095040
        %v3224 = vshrl.u32 %v3223, 23
        %v3225 = vsub.s32 %v3224, 127
        %v3226 = vand.u32 2147483647, %v716
        %v3227 = vand.u32 %v3226, 8388607
        %v3228 = vor.u32 %v3227, 8388608
        %v3229 = vsub.s32 0, %v3228
        %v3230 = vadd.s32 %v3225, 1
        %vm3231 = vcmp.gt.s32.totalorder %v3230, 0
        %v3232 = vsel %vm3231, %v3230, 0
        %v3233 = vshrl.u32 %v3232, 5
        %v3234 = vand.u32 %v3232, 31
        %v3235 = vsub.s32 32, %v3234
        %v3236 = vshrl.u32 683565275, %v3235
        %v3237 = vshll.u32 683565275, %v3234
        %v3238 = vshrl.u32 2475754826, %v3235
        %v3239 = vor.u32 %v3237, %v3238
        %v3240 = vshll.u32 2475754826, %v3234
        %v3241 = vshrl.u32 2131351028, %v3235
        %v3242 = vor.u32 %v3240, %v3241
        %v3243 = vshll.u32 2131351028, %v3234
        %v3244 = vshrl.u32 2102212464, %v3235
        %v3245 = vor.u32 %v3243, %v3244
        %v3246 = vshll.u32 2102212464, %v3234
        %v3247 = vshrl.u32 920167782, %v3235
        %v3248 = vor.u32 %v3246, %v3247
        %v3249 = vshll.u32 920167782, %v3234
        %v3250 = vshrl.u32 1326507024, %v3235
        %v3251 = vor.u32 %v3249, %v3250
        %vm3252 = vcmp.lt.s32.totalorder %v3233, 1
        %vm3253 = vcmp.lt.s32.totalorder %v3233, 2
        %vm3254 = vcmp.lt.s32.totalorder %v3233, 3
        %vm3255 = vcmp.lt.s32.totalorder %v3233, 4
        %v3256 = vsel %vm3252, %v3236, %v3239
        %v3257 = vsel %vm3255, %v3245, 2102212464
        %v3258 = vsel %vm3254, %v3242, %v3257
        %v3259 = vsel %vm3253, %v3256, %v3258
        %v3260 = vsel %vm3252, %v3239, %v3242
        %v3261 = vsel %vm3255, %v3248, 920167782
        %v3262 = vsel %vm3254, %v3245, %v3261
        %v3263 = vsel %vm3253, %v3260, %v3262
        %v3264 = vsel %vm3252, %v3242, %v3245
        %v3265 = vsel %vm3255, %v3251, 1326507024
        %v3266 = vsel %vm3254, %v3248, %v3265
        %v3267 = vsel %vm3253, %v3264, %v3266
        %v3268 = vshll.u32 %v3228, 8
        %v3269 = vmul.u32.u64.compose %v3268, %v3267
        %v3270 = vextract.low.u32 %v3269
        %v3271 = vextract.high.u32 %v3269
        %v3272 = vmul.u32.u64.compose %v3268, %v3263
        %v3273 = vextract.low.u32 %v3272
        %v3274 = vextract.high.u32 %v3272
        %v3275 = vmul.u32 %v3268, %v3259
        %v3276 = vadd.s32 %v3271, %v3273
        %vm3277 = vc.u32 %v3271, %v3273
        %v3278 = vadd.s32 %v3274, 1
        %v3279 = vsel %vm3277, %v3278, %v3274
        %v3280 = vadd.s32 %v3275, %v3279
        %v3281 = vadd.s32 %v3280, 536870912
        %v3282 = vshrl.u32 %v3281, 30
        %v3283 = vshll.u32 %v3282, 30
        %v3284 = vsub.s32 %v3280, %v3283
        %vm3285 = vcmp.lt.s32.totalorder %v3284, 0
        %v3286 = vsub.s32 0, %v3284
        %v3287 = vsel %vm3285, %v3286, %v3284
        %v3288 = vclz %v3287
        %v3289 = vsub.s32 %v3288, 2
        %vm3290 = vcmp.gt.s32.totalorder 0, %v3289
        %v3291 = vsel %vm3290, 0, %v3289
        %v3292 = vsub.s32 32, %v3291
        %v3293 = vshll.u32 %v3284, %v3291
        %v3294 = vshrl.u32 %v3276, %v3292
        %v3295 = vor.u32 %v3293, %v3294
        %v3296 = vsub.s32 4294967266, %v3291
        %v3297 = vadd.s32 %v3296, 127
        %v3298 = vshll.u32 %v3297, 23
        %v3299 = vor.u32 4788187, %v3298
        %v3300 = vand.u32 2147483647, %v3299
        %v3302 = vcvt.s32.f32 %v3295
        %v3303 = vmul.f32 %v3302, %v3300
        %v3304 = vxor.u32 %v3303, 2147483648
        %v3305 = vsel %vm3222, %v3304, %v3303
        %v3306 = vsub.s32 4, %v3282
        %v3307 = vsel %vm3222, %v3306, %v3282
        %v3308 = vsel %vm3221, %v716, %v3305
        %v3309 = vsel %vm3221, 0, %v3307
        %v3310 = vcosq.f32.pop %v3308
        %v3311 = vsinq.f32.pop %v3308
        %vm3312 = vweird.f32 %v716
        %v3313 = vadd.s32 %v3309, 3
        %v3314 = vand.u32 %v3313, 3
        %vm3315 = vcmp.lt.s32.totalorder %v3314, 2
        %vm3316 = vcmp.eq.s32.totalorder %v3314, 0
        %v3317 = vxor.u32 %v3311, 2147483648
        %v3318 = vsel %vm3316, %v3310, %v3317
        %vm3319 = vcmp.eq.s32.totalorder %v3314, 2
        %v3320 = vxor.u32 %v3310, 2147483648
        %v3321 = vsel %vm3319, %v3320, %v3311
        %v3322 = vsel %vm3315, %v3318, %v3321
        %v3323 = vsel %vm3312, nan, %v3322
        %v3324 = vand.u32 2147483647, %v717
        %vm3325 = vcmp.le.f32.partialorder %v3324, 0.7853982
        %vm3326 = vcmp.lt.s32.totalorder %v717, 0
        %v3327 = vand.u32 %v717, 2139095040
        %v3328 = vshrl.u32 %v3327, 23
        %v3329 = vsub.s32 %v3328, 127
        %v3330 = vand.u32 2147483647, %v717
        %v3331 = vand.u32 %v3330, 8388607
        %v3332 = vor.u32 %v3331, 8388608
        %v3333 = vsub.s32 0, %v3332
        %v3334 = vadd.s32 %v3329, 1
        %vm3335 = vcmp.gt.s32.totalorder %v3334, 0
        %v3336 = vsel %vm3335, %v3334, 0
        %v3337 = vshrl.u32 %v3336, 5
        %v3338 = vand.u32 %v3336, 31
        %v3339 = vsub.s32 32, %v3338
        %v3340 = vshrl.u32 683565275, %v3339
        %v3341 = vshll.u32 683565275, %v3338
        %v3342 = vshrl.u32 2475754826, %v3339
        %v3343 = vor.u32 %v3341, %v3342
        %v3344 = vshll.u32 2475754826, %v3338
        %v3345 = vshrl.u32 2131351028, %v3339
        %v3346 = vor.u32 %v3344, %v3345
        %v3347 = vshll.u32 2131351028, %v3338
        %v3348 = vshrl.u32 2102212464, %v3339
        %v3349 = vor.u32 %v3347, %v3348
        %v3350 = vshll.u32 2102212464, %v3338
        %v3351 = vshrl.u32 920167782, %v3339
        %v3352 = vor.u32 %v3350, %v3351
        %v3353 = vshll.u32 920167782, %v3338
        %v3354 = vshrl.u32 1326507024, %v3339
        %v3355 = vor.u32 %v3353, %v3354
        %vm3356 = vcmp.lt.s32.totalorder %v3337, 1
        %vm3357 = vcmp.lt.s32.totalorder %v3337, 2
        %vm3358 = vcmp.lt.s32.totalorder %v3337, 3
        %vm3359 = vcmp.lt.s32.totalorder %v3337, 4
        %v3360 = vsel %vm3356, %v3340, %v3343
        %v3361 = vsel %vm3359, %v3349, 2102212464
        %v3362 = vsel %vm3358, %v3346, %v3361
        %v3363 = vsel %vm3357, %v3360, %v3362
        %v3364 = vsel %vm3356, %v3343, %v3346
        %v3365 = vsel %vm3359, %v3352, 920167782
        %v3366 = vsel %vm3358, %v3349, %v3365
        %v3367 = vsel %vm3357, %v3364, %v3366
        %v3368 = vsel %vm3356, %v3346, %v3349
        %v3369 = vsel %vm3359, %v3355, 1326507024
        %v3370 = vsel %vm3358, %v3352, %v3369
        %v3371 = vsel %vm3357, %v3368, %v3370
        %v3372 = vshll.u32 %v3332, 8
        %v3373 = vmul.u32.u64.compose %v3372, %v3371
        %v3374 = vextract.low.u32 %v3373
        %v3375 = vextract.high.u32 %v3373
        %v3376 = vmul.u32.u64.compose %v3372, %v3367
        %v3377 = vextract.low.u32 %v3376
        %v3378 = vextract.high.u32 %v3376
        %v3379 = vmul.u32 %v3372, %v3363
        %v3380 = vadd.s32 %v3375, %v3377
        %vm3381 = vc.u32 %v3375, %v3377
        %v3382 = vadd.s32 %v3378, 1
        %v3383 = vsel %vm3381, %v3382, %v3378
        %v3384 = vadd.s32 %v3379, %v3383
        %v3385 = vadd.s32 %v3384, 536870912
        %v3386 = vshrl.u32 %v3385, 30
        %v3387 = vshll.u32 %v3386, 30
        %v3388 = vsub.s32 %v3384, %v3387
        %vm3389 = vcmp.lt.s32.totalorder %v3388, 0
        %v3390 = vsub.s32 0, %v3388
        %v3391 = vsel %vm3389, %v3390, %v3388
        %v3392 = vclz %v3391
        %v3393 = vsub.s32 %v3392, 2
        %vm3394 = vcmp.gt.s32.totalorder 0, %v3393
        %v3395 = vsel %vm3394, 0, %v3393
        %v3396 = vsub.s32 32, %v3395
        %v3397 = vshll.u32 %v3388, %v3395
        %v3398 = vshrl.u32 %v3380, %v3396
        %v3399 = vor.u32 %v3397, %v3398
        %v3400 = vsub.s32 4294967266, %v3395
        %v3401 = vadd.s32 %v3400, 127
        %v3402 = vshll.u32 %v3401, 23
        %v3403 = vor.u32 4788187, %v3402
        %v3404 = vand.u32 2147483647, %v3403
        %v3406 = vcvt.s32.f32 %v3399
        %v3407 = vmul.f32 %v3406, %v3404
        %v3408 = vxor.u32 %v3407, 2147483648
        %v3409 = vsel %vm3326, %v3408, %v3407
        %v3410 = vsub.s32 4, %v3386
        %v3411 = vsel %vm3326, %v3410, %v3386
        %v3412 = vsel %vm3325, %v717, %v3409
        %v3413 = vsel %vm3325, 0, %v3411
        %v3414 = vcosq.f32.pop %v3412
        %v3415 = vsinq.f32.pop %v3412
        %vm3416 = vweird.f32 %v717
        %v3417 = vadd.s32 %v3413, 3
        %v3418 = vand.u32 %v3417, 3
        %vm3419 = vcmp.lt.s32.totalorder %v3418, 2
        %vm3420 = vcmp.eq.s32.totalorder %v3418, 0
        %v3421 = vxor.u32 %v3415, 2147483648
        %v3422 = vsel %vm3420, %v3414, %v3421
        %vm3423 = vcmp.eq.s32.totalorder %v3418, 2
        %v3424 = vxor.u32 %v3414, 2147483648
        %v3425 = vsel %vm3423, %v3424, %v3415
        %v3426 = vsel %vm3419, %v3422, %v3425
        %v3427 = vsel %vm3416, nan, %v3426
        %v3428 = vand.u32 2147483647, %v718
        %vm3429 = vcmp.le.f32.partialorder %v3428, 0.7853982
        %vm3430 = vcmp.lt.s32.totalorder %v718, 0
        %v3431 = vand.u32 %v718, 2139095040
        %v3432 = vshrl.u32 %v3431, 23
        %v3433 = vsub.s32 %v3432, 127
        %v3434 = vand.u32 2147483647, %v718
        %v3435 = vand.u32 %v3434, 8388607
        %v3436 = vor.u32 %v3435, 8388608
        %v3437 = vsub.s32 0, %v3436
        %v3438 = vadd.s32 %v3433, 1
        %vm3439 = vcmp.gt.s32.totalorder %v3438, 0
        %v3440 = vsel %vm3439, %v3438, 0
        %v3441 = vshrl.u32 %v3440, 5
        %v3442 = vand.u32 %v3440, 31
        %v3443 = vsub.s32 32, %v3442
        %v3444 = vshrl.u32 683565275, %v3443
        %v3445 = vshll.u32 683565275, %v3442
        %v3446 = vshrl.u32 2475754826, %v3443
        %v3447 = vor.u32 %v3445, %v3446
        %v3448 = vshll.u32 2475754826, %v3442
        %v3449 = vshrl.u32 2131351028, %v3443
        %v3450 = vor.u32 %v3448, %v3449
        %v3451 = vshll.u32 2131351028, %v3442
        %v3452 = vshrl.u32 2102212464, %v3443
        %v3453 = vor.u32 %v3451, %v3452
        %v3454 = vshll.u32 2102212464, %v3442
        %v3455 = vshrl.u32 920167782, %v3443
        %v3456 = vor.u32 %v3454, %v3455
        %v3457 = vshll.u32 920167782, %v3442
        %v3458 = vshrl.u32 1326507024, %v3443
        %v3459 = vor.u32 %v3457, %v3458
        %vm3460 = vcmp.lt.s32.totalorder %v3441, 1
        %vm3461 = vcmp.lt.s32.totalorder %v3441, 2
        %vm3462 = vcmp.lt.s32.totalorder %v3441, 3
        %vm3463 = vcmp.lt.s32.totalorder %v3441, 4
        %v3464 = vsel %vm3460, %v3444, %v3447
        %v3465 = vsel %vm3463, %v3453, 2102212464
        %v3466 = vsel %vm3462, %v3450, %v3465
        %v3467 = vsel %vm3461, %v3464, %v3466
        %v3468 = vsel %vm3460, %v3447, %v3450
        %v3469 = vsel %vm3463, %v3456, 920167782
        %v3470 = vsel %vm3462, %v3453, %v3469
        %v3471 = vsel %vm3461, %v3468, %v3470
        %v3472 = vsel %vm3460, %v3450, %v3453
        %v3473 = vsel %vm3463, %v3459, 1326507024
        %v3474 = vsel %vm3462, %v3456, %v3473
        %v3475 = vsel %vm3461, %v3472, %v3474
        %v3476 = vshll.u32 %v3436, 8
        %v3477 = vmul.u32.u64.compose %v3476, %v3475
        %v3478 = vextract.low.u32 %v3477
        %v3479 = vextract.high.u32 %v3477
        %v3480 = vmul.u32.u64.compose %v3476, %v3471
        %v3481 = vextract.low.u32 %v3480
        %v3482 = vextract.high.u32 %v3480
        %v3483 = vmul.u32 %v3476, %v3467
        %v3484 = vadd.s32 %v3479, %v3481
        %vm3485 = vc.u32 %v3479, %v3481
        %v3486 = vadd.s32 %v3482, 1
        %v3487 = vsel %vm3485, %v3486, %v3482
        %v3488 = vadd.s32 %v3483, %v3487
        %v3489 = vadd.s32 %v3488, 536870912
        %v3490 = vshrl.u32 %v3489, 30
        %v3491 = vshll.u32 %v3490, 30
        %v3492 = vsub.s32 %v3488, %v3491
        %vm3493 = vcmp.lt.s32.totalorder %v3492, 0
        %v3494 = vsub.s32 0, %v3492
        %v3495 = vsel %vm3493, %v3494, %v3492
        %v3496 = vclz %v3495
        %v3497 = vsub.s32 %v3496, 2
        %vm3498 = vcmp.gt.s32.totalorder 0, %v3497
        %v3499 = vsel %vm3498, 0, %v3497
        %v3500 = vsub.s32 32, %v3499
        %v3501 = vshll.u32 %v3492, %v3499
        %v3502 = vshrl.u32 %v3484, %v3500
        %v3503 = vor.u32 %v3501, %v3502
        %v3504 = vsub.s32 4294967266, %v3499
        %v3505 = vadd.s32 %v3504, 127
        %v3506 = vshll.u32 %v3505, 23
        %v3507 = vor.u32 4788187, %v3506
        %v3508 = vand.u32 2147483647, %v3507
        %v3510 = vcvt.s32.f32 %v3503
        %v3511 = vmul.f32 %v3510, %v3508
        %v3512 = vxor.u32 %v3511, 2147483648
        %v3513 = vsel %vm3430, %v3512, %v3511
        %v3514 = vsub.s32 4, %v3490
        %v3515 = vsel %vm3430, %v3514, %v3490
        %v3516 = vsel %vm3429, %v718, %v3513
        %v3517 = vsel %vm3429, 0, %v3515
        %v3518 = vcosq.f32.pop %v3516
        %v3519 = vsinq.f32.pop %v3516
        %vm3520 = vweird.f32 %v718
        %v3521 = vadd.s32 %v3517, 3
        %v3522 = vand.u32 %v3521, 3
        %vm3523 = vcmp.lt.s32.totalorder %v3522, 2
        %vm3524 = vcmp.eq.s32.totalorder %v3522, 0
        %v3525 = vxor.u32 %v3519, 2147483648
        %v3526 = vsel %vm3524, %v3518, %v3525
        %vm3527 = vcmp.eq.s32.totalorder %v3522, 2
        %v3528 = vxor.u32 %v3518, 2147483648
        %v3529 = vsel %vm3527, %v3528, %v3519
        %v3530 = vsel %vm3523, %v3526, %v3529
        %v3531 = vsel %vm3520, nan, %v3530
        %v3532 = vand.u32 2147483647, %v719
        %vm3533 = vcmp.le.f32.partialorder %v3532, 0.7853982
        %vm3534 = vcmp.lt.s32.totalorder %v719, 0
        %v3535 = vand.u32 %v719, 2139095040
        %v3536 = vshrl.u32 %v3535, 23
        %v3537 = vsub.s32 %v3536, 127
        %v3538 = vand.u32 2147483647, %v719
        %v3539 = vand.u32 %v3538, 8388607
        %v3540 = vor.u32 %v3539, 8388608
        %v3541 = vsub.s32 0, %v3540
        %v3542 = vadd.s32 %v3537, 1
        %vm3543 = vcmp.gt.s32.totalorder %v3542, 0
        %v3544 = vsel %vm3543, %v3542, 0
        %v3545 = vshrl.u32 %v3544, 5
        %v3546 = vand.u32 %v3544, 31
        %v3547 = vsub.s32 32, %v3546
        %v3548 = vshrl.u32 683565275, %v3547
        %v3549 = vshll.u32 683565275, %v3546
        %v3550 = vshrl.u32 2475754826, %v3547
        %v3551 = vor.u32 %v3549, %v3550
        %v3552 = vshll.u32 2475754826, %v3546
        %v3553 = vshrl.u32 2131351028, %v3547
        %v3554 = vor.u32 %v3552, %v3553
        %v3555 = vshll.u32 2131351028, %v3546
        %v3556 = vshrl.u32 2102212464, %v3547
        %v3557 = vor.u32 %v3555, %v3556
        %v3558 = vshll.u32 2102212464, %v3546
        %v3559 = vshrl.u32 920167782, %v3547
        %v3560 = vor.u32 %v3558, %v3559
        %v3561 = vshll.u32 920167782, %v3546
        %v3562 = vshrl.u32 1326507024, %v3547
        %v3563 = vor.u32 %v3561, %v3562
        %vm3564 = vcmp.lt.s32.totalorder %v3545, 1
        %vm3565 = vcmp.lt.s32.totalorder %v3545, 2
        %vm3566 = vcmp.lt.s32.totalorder %v3545, 3
        %vm3567 = vcmp.lt.s32.totalorder %v3545, 4
        %v3568 = vsel %vm3564, %v3548, %v3551
        %v3569 = vsel %vm3567, %v3557, 2102212464
        %v3570 = vsel %vm3566, %v3554, %v3569
        %v3571 = vsel %vm3565, %v3568, %v3570
        %v3572 = vsel %vm3564, %v3551, %v3554
        %v3573 = vsel %vm3567, %v3560, 920167782
        %v3574 = vsel %vm3566, %v3557, %v3573
        %v3575 = vsel %vm3565, %v3572, %v3574
        %v3576 = vsel %vm3564, %v3554, %v3557
        %v3577 = vsel %vm3567, %v3563, 1326507024
        %v3578 = vsel %vm3566, %v3560, %v3577
        %v3579 = vsel %vm3565, %v3576, %v3578
        %v3580 = vshll.u32 %v3540, 8
        %v3581 = vmul.u32.u64.compose %v3580, %v3579
        %v3582 = vextract.low.u32 %v3581
        %v3583 = vextract.high.u32 %v3581
        %v3584 = vmul.u32.u64.compose %v3580, %v3575
        %v3585 = vextract.low.u32 %v3584
        %v3586 = vextract.high.u32 %v3584
        %v3587 = vmul.u32 %v3580, %v3571
        %v3588 = vadd.s32 %v3583, %v3585
        %vm3589 = vc.u32 %v3583, %v3585
        %v3590 = vadd.s32 %v3586, 1
        %v3591 = vsel %vm3589, %v3590, %v3586
        %v3592 = vadd.s32 %v3587, %v3591
        %v3593 = vadd.s32 %v3592, 536870912
        %v3594 = vshrl.u32 %v3593, 30
        %v3595 = vshll.u32 %v3594, 30
        %v3596 = vsub.s32 %v3592, %v3595
        %vm3597 = vcmp.lt.s32.totalorder %v3596, 0
        %v3598 = vsub.s32 0, %v3596
        %v3599 = vsel %vm3597, %v3598, %v3596
        %v3600 = vclz %v3599
        %v3601 = vsub.s32 %v3600, 2
        %vm3602 = vcmp.gt.s32.totalorder 0, %v3601
        %v3603 = vsel %vm3602, 0, %v3601
        %v3604 = vsub.s32 32, %v3603
        %v3605 = vshll.u32 %v3596, %v3603
        %v3606 = vshrl.u32 %v3588, %v3604
        %v3607 = vor.u32 %v3605, %v3606
        %v3608 = vsub.s32 4294967266, %v3603
        %v3609 = vadd.s32 %v3608, 127
        %v3610 = vshll.u32 %v3609, 23
        %v3611 = vor.u32 4788187, %v3610
        %v3612 = vand.u32 2147483647, %v3611
        %v3614 = vcvt.s32.f32 %v3607
        %v3615 = vmul.f32 %v3614, %v3612
        %v3616 = vxor.u32 %v3615, 2147483648
        %v3617 = vsel %vm3534, %v3616, %v3615
        %v3618 = vsub.s32 4, %v3594
        %v3619 = vsel %vm3534, %v3618, %v3594
        %v3620 = vsel %vm3533, %v719, %v3617
        %v3621 = vsel %vm3533, 0, %v3619
        %v3622 = vcosq.f32.pop %v3620
        %v3623 = vsinq.f32.pop %v3620
        %vm3624 = vweird.f32 %v719
        %v3625 = vadd.s32 %v3621, 3
        %v3626 = vand.u32 %v3625, 3
        %vm3627 = vcmp.lt.s32.totalorder %v3626, 2
        %vm3628 = vcmp.eq.s32.totalorder %v3626, 0
        %v3629 = vxor.u32 %v3623, 2147483648
        %v3630 = vsel %vm3628, %v3622, %v3629
        %vm3631 = vcmp.eq.s32.totalorder %v3626, 2
        %v3632 = vxor.u32 %v3622, 2147483648
        %v3633 = vsel %vm3631, %v3632, %v3623
        %v3634 = vsel %vm3627, %v3630, %v3633
        %v3635 = vsel %vm3624, nan, %v3634
        %v3636 = vand.u32 2147483647, %v720
        %vm3637 = vcmp.le.f32.partialorder %v3636, 0.7853982
        %vm3638 = vcmp.lt.s32.totalorder %v720, 0
        %v3639 = vand.u32 %v720, 2139095040
        %v3640 = vshrl.u32 %v3639, 23
        %v3641 = vsub.s32 %v3640, 127
        %v3642 = vand.u32 2147483647, %v720
        %v3643 = vand.u32 %v3642, 8388607
        %v3644 = vor.u32 %v3643, 8388608
        %v3645 = vsub.s32 0, %v3644
        %v3646 = vadd.s32 %v3641, 1
        %vm3647 = vcmp.gt.s32.totalorder %v3646, 0
        %v3648 = vsel %vm3647, %v3646, 0
        %v3649 = vshrl.u32 %v3648, 5
        %v3650 = vand.u32 %v3648, 31
        %v3651 = vsub.s32 32, %v3650
        %v3652 = vshrl.u32 683565275, %v3651
        %v3653 = vshll.u32 683565275, %v3650
        %v3654 = vshrl.u32 2475754826, %v3651
        %v3655 = vor.u32 %v3653, %v3654
        %v3656 = vshll.u32 2475754826, %v3650
        %v3657 = vshrl.u32 2131351028, %v3651
        %v3658 = vor.u32 %v3656, %v3657
        %v3659 = vshll.u32 2131351028, %v3650
        %v3660 = vshrl.u32 2102212464, %v3651
        %v3661 = vor.u32 %v3659, %v3660
        %v3662 = vshll.u32 2102212464, %v3650
        %v3663 = vshrl.u32 920167782, %v3651
        %v3664 = vor.u32 %v3662, %v3663
        %v3665 = vshll.u32 920167782, %v3650
        %v3666 = vshrl.u32 1326507024, %v3651
        %v3667 = vor.u32 %v3665, %v3666
        %vm3668 = vcmp.lt.s32.totalorder %v3649, 1
        %vm3669 = vcmp.lt.s32.totalorder %v3649, 2
        %vm3670 = vcmp.lt.s32.totalorder %v3649, 3
        %vm3671 = vcmp.lt.s32.totalorder %v3649, 4
        %v3672 = vsel %vm3668, %v3652, %v3655
        %v3673 = vsel %vm3671, %v3661, 2102212464
        %v3674 = vsel %vm3670, %v3658, %v3673
        %v3675 = vsel %vm3669, %v3672, %v3674
        %v3676 = vsel %vm3668, %v3655, %v3658
        %v3677 = vsel %vm3671, %v3664, 920167782
        %v3678 = vsel %vm3670, %v3661, %v3677
        %v3679 = vsel %vm3669, %v3676, %v3678
        %v3680 = vsel %vm3668, %v3658, %v3661
        %v3681 = vsel %vm3671, %v3667, 1326507024
        %v3682 = vsel %vm3670, %v3664, %v3681
        %v3683 = vsel %vm3669, %v3680, %v3682
        %v3684 = vshll.u32 %v3644, 8
        %v3685 = vmul.u32.u64.compose %v3684, %v3683
        %v3686 = vextract.low.u32 %v3685
        %v3687 = vextract.high.u32 %v3685
        %v3688 = vmul.u32.u64.compose %v3684, %v3679
        %v3689 = vextract.low.u32 %v3688
        %v3690 = vextract.high.u32 %v3688
        %v3691 = vmul.u32 %v3684, %v3675
        %v3692 = vadd.s32 %v3687, %v3689
        %vm3693 = vc.u32 %v3687, %v3689
        %v3694 = vadd.s32 %v3690, 1
        %v3695 = vsel %vm3693, %v3694, %v3690
        %v3696 = vadd.s32 %v3691, %v3695
        %v3697 = vadd.s32 %v3696, 536870912
        %v3698 = vshrl.u32 %v3697, 30
        %v3699 = vshll.u32 %v3698, 30
        %v3700 = vsub.s32 %v3696, %v3699
        %vm3701 = vcmp.lt.s32.totalorder %v3700, 0
        %v3702 = vsub.s32 0, %v3700
        %v3703 = vsel %vm3701, %v3702, %v3700
        %v3704 = vclz %v3703
        %v3705 = vsub.s32 %v3704, 2
        %vm3706 = vcmp.gt.s32.totalorder 0, %v3705
        %v3707 = vsel %vm3706, 0, %v3705
        %v3708 = vsub.s32 32, %v3707
        %v3709 = vshll.u32 %v3700, %v3707
        %v3710 = vshrl.u32 %v3692, %v3708
        %v3711 = vor.u32 %v3709, %v3710
        %v3712 = vsub.s32 4294967266, %v3707
        %v3713 = vadd.s32 %v3712, 127
        %v3714 = vshll.u32 %v3713, 23
        %v3715 = vor.u32 4788187, %v3714
        %v3716 = vand.u32 2147483647, %v3715
        %v3718 = vcvt.s32.f32 %v3711
        %v3719 = vmul.f32 %v3718, %v3716
        %v3720 = vxor.u32 %v3719, 2147483648
        %v3721 = vsel %vm3638, %v3720, %v3719
        %v3722 = vsub.s32 4, %v3698
        %v3723 = vsel %vm3638, %v3722, %v3698
        %v3724 = vsel %vm3637, %v720, %v3721
        %v3725 = vsel %vm3637, 0, %v3723
        %v3726 = vcosq.f32.pop %v3724
        %v3727 = vsinq.f32.pop %v3724
        %vm3728 = vweird.f32 %v720
        %v3729 = vadd.s32 %v3725, 3
        %v3730 = vand.u32 %v3729, 3
        %vm3731 = vcmp.lt.s32.totalorder %v3730, 2
        %vm3732 = vcmp.eq.s32.totalorder %v3730, 0
        %v3733 = vxor.u32 %v3727, 2147483648
        %v3734 = vsel %vm3732, %v3726, %v3733
        %vm3735 = vcmp.eq.s32.totalorder %v3730, 2
        %v3736 = vxor.u32 %v3726, 2147483648
        %v3737 = vsel %vm3735, %v3736, %v3727
        %v3738 = vsel %vm3731, %v3734, %v3737
        %v3739 = vsel %vm3728, nan, %v3738
        %v3740 = vand.u32 2147483647, %v721
        %vm3741 = vcmp.le.f32.partialorder %v3740, 0.7853982
        %vm3742 = vcmp.lt.s32.totalorder %v721, 0
        %v3743 = vand.u32 %v721, 2139095040
        %v3744 = vshrl.u32 %v3743, 23
        %v3745 = vsub.s32 %v3744, 127
        %v3746 = vand.u32 2147483647, %v721
        %v3747 = vand.u32 %v3746, 8388607
        %v3748 = vor.u32 %v3747, 8388608
        %v3749 = vsub.s32 0, %v3748
        %v3750 = vadd.s32 %v3745, 1
        %vm3751 = vcmp.gt.s32.totalorder %v3750, 0
        %v3752 = vsel %vm3751, %v3750, 0
        %v3753 = vshrl.u32 %v3752, 5
        %v3754 = vand.u32 %v3752, 31
        %v3755 = vsub.s32 32, %v3754
        %v3756 = vshrl.u32 683565275, %v3755
        %v3757 = vshll.u32 683565275, %v3754
        %v3758 = vshrl.u32 2475754826, %v3755
        %v3759 = vor.u32 %v3757, %v3758
        %v3760 = vshll.u32 2475754826, %v3754
        %v3761 = vshrl.u32 2131351028, %v3755
        %v3762 = vor.u32 %v3760, %v3761
        %v3763 = vshll.u32 2131351028, %v3754
        %v3764 = vshrl.u32 2102212464, %v3755
        %v3765 = vor.u32 %v3763, %v3764
        %v3766 = vshll.u32 2102212464, %v3754
        %v3767 = vshrl.u32 920167782, %v3755
        %v3768 = vor.u32 %v3766, %v3767
        %v3769 = vshll.u32 920167782, %v3754
        %v3770 = vshrl.u32 1326507024, %v3755
        %v3771 = vor.u32 %v3769, %v3770
        %vm3772 = vcmp.lt.s32.totalorder %v3753, 1
        %vm3773 = vcmp.lt.s32.totalorder %v3753, 2
        %vm3774 = vcmp.lt.s32.totalorder %v3753, 3
        %vm3775 = vcmp.lt.s32.totalorder %v3753, 4
        %v3776 = vsel %vm3772, %v3756, %v3759
        %v3777 = vsel %vm3775, %v3765, 2102212464
        %v3778 = vsel %vm3774, %v3762, %v3777
        %v3779 = vsel %vm3773, %v3776, %v3778
        %v3780 = vsel %vm3772, %v3759, %v3762
        %v3781 = vsel %vm3775, %v3768, 920167782
        %v3782 = vsel %vm3774, %v3765, %v3781
        %v3783 = vsel %vm3773, %v3780, %v3782
        %v3784 = vsel %vm3772, %v3762, %v3765
        %v3785 = vsel %vm3775, %v3771, 1326507024
        %v3786 = vsel %vm3774, %v3768, %v3785
        %v3787 = vsel %vm3773, %v3784, %v3786
        %v3788 = vshll.u32 %v3748, 8
        %v3789 = vmul.u32.u64.compose %v3788, %v3787
        %v3790 = vextract.low.u32 %v3789
        %v3791 = vextract.high.u32 %v3789
        %v3792 = vmul.u32.u64.compose %v3788, %v3783
        %v3793 = vextract.low.u32 %v3792
        %v3794 = vextract.high.u32 %v3792
        %v3795 = vmul.u32 %v3788, %v3779
        %v3796 = vadd.s32 %v3791, %v3793
        %vm3797 = vc.u32 %v3791, %v3793
        %v3798 = vadd.s32 %v3794, 1
        %v3799 = vsel %vm3797, %v3798, %v3794
        %v3800 = vadd.s32 %v3795, %v3799
        %v3801 = vadd.s32 %v3800, 536870912
        %v3802 = vshrl.u32 %v3801, 30
        %v3803 = vshll.u32 %v3802, 30
        %v3804 = vsub.s32 %v3800, %v3803
        %vm3805 = vcmp.lt.s32.totalorder %v3804, 0
        %v3806 = vsub.s32 0, %v3804
        %v3807 = vsel %vm3805, %v3806, %v3804
        %v3808 = vclz %v3807
        %v3809 = vsub.s32 %v3808, 2
        %vm3810 = vcmp.gt.s32.totalorder 0, %v3809
        %v3811 = vsel %vm3810, 0, %v3809
        %v3812 = vsub.s32 32, %v3811
        %v3813 = vshll.u32 %v3804, %v3811
        %v3814 = vshrl.u32 %v3796, %v3812
        %v3815 = vor.u32 %v3813, %v3814
        %v3816 = vsub.s32 4294967266, %v3811
        %v3817 = vadd.s32 %v3816, 127
        %v3818 = vshll.u32 %v3817, 23
        %v3819 = vor.u32 4788187, %v3818
        %v3820 = vand.u32 2147483647, %v3819
        %v3822 = vcvt.s32.f32 %v3815
        %v3823 = vmul.f32 %v3822, %v3820
        %v3824 = vxor.u32 %v3823, 2147483648
        %v3825 = vsel %vm3742, %v3824, %v3823
        %v3826 = vsub.s32 4, %v3802
        %v3827 = vsel %vm3742, %v3826, %v3802
        %v3828 = vsel %vm3741, %v721, %v3825
        %v3829 = vsel %vm3741, 0, %v3827
        %v3830 = vcosq.f32.pop %v3828
        %v3831 = vsinq.f32.pop %v3828
        %vm3832 = vweird.f32 %v721
        %v3833 = vadd.s32 %v3829, 3
        %v3834 = vand.u32 %v3833, 3
        %vm3835 = vcmp.lt.s32.totalorder %v3834, 2
        %vm3836 = vcmp.eq.s32.totalorder %v3834, 0
        %v3837 = vxor.u32 %v3831, 2147483648
        %v3838 = vsel %vm3836, %v3830, %v3837
        %vm3839 = vcmp.eq.s32.totalorder %v3834, 2
        %v3840 = vxor.u32 %v3830, 2147483648
        %v3841 = vsel %vm3839, %v3840, %v3831
        %v3842 = vsel %vm3835, %v3838, %v3841
        %v3843 = vsel %vm3832, nan, %v3842
        %v3844 = vand.u32 2147483647, %v722
        %vm3845 = vcmp.le.f32.partialorder %v3844, 0.7853982
        %vm3846 = vcmp.lt.s32.totalorder %v722, 0
        %v3847 = vand.u32 %v722, 2139095040
        %v3848 = vshrl.u32 %v3847, 23
        %v3849 = vsub.s32 %v3848, 127
        %v3850 = vand.u32 2147483647, %v722
        %v3851 = vand.u32 %v3850, 8388607
        %v3852 = vor.u32 %v3851, 8388608
        %v3853 = vsub.s32 0, %v3852
        %v3854 = vadd.s32 %v3849, 1
        %vm3855 = vcmp.gt.s32.totalorder %v3854, 0
        %v3856 = vsel %vm3855, %v3854, 0
        %v3857 = vshrl.u32 %v3856, 5
        %v3858 = vand.u32 %v3856, 31
        %v3859 = vsub.s32 32, %v3858
        %v3860 = vshrl.u32 683565275, %v3859
        %v3861 = vshll.u32 683565275, %v3858
        %v3862 = vshrl.u32 2475754826, %v3859
        %v3863 = vor.u32 %v3861, %v3862
        %v3864 = vshll.u32 2475754826, %v3858
        %v3865 = vshrl.u32 2131351028, %v3859
        %v3866 = vor.u32 %v3864, %v3865
        %v3867 = vshll.u32 2131351028, %v3858
        %v3868 = vshrl.u32 2102212464, %v3859
        %v3869 = vor.u32 %v3867, %v3868
        %v3870 = vshll.u32 2102212464, %v3858
        %v3871 = vshrl.u32 920167782, %v3859
        %v3872 = vor.u32 %v3870, %v3871
        %v3873 = vshll.u32 920167782, %v3858
        %v3874 = vshrl.u32 1326507024, %v3859
        %v3875 = vor.u32 %v3873, %v3874
        %vm3876 = vcmp.lt.s32.totalorder %v3857, 1
        %vm3877 = vcmp.lt.s32.totalorder %v3857, 2
        %vm3878 = vcmp.lt.s32.totalorder %v3857, 3
        %vm3879 = vcmp.lt.s32.totalorder %v3857, 4
        %v3880 = vsel %vm3876, %v3860, %v3863
        %v3881 = vsel %vm3879, %v3869, 2102212464
        %v3882 = vsel %vm3878, %v3866, %v3881
        %v3883 = vsel %vm3877, %v3880, %v3882
        %v3884 = vsel %vm3876, %v3863, %v3866
        %v3885 = vsel %vm3879, %v3872, 920167782
        %v3886 = vsel %vm3878, %v3869, %v3885
        %v3887 = vsel %vm3877, %v3884, %v3886
        %v3888 = vsel %vm3876, %v3866, %v3869
        %v3889 = vsel %vm3879, %v3875, 1326507024
        %v3890 = vsel %vm3878, %v3872, %v3889
        %v3891 = vsel %vm3877, %v3888, %v3890
        %v3892 = vshll.u32 %v3852, 8
        %v3893 = vmul.u32.u64.compose %v3892, %v3891
        %v3894 = vextract.low.u32 %v3893
        %v3895 = vextract.high.u32 %v3893
        %v3896 = vmul.u32.u64.compose %v3892, %v3887
        %v3897 = vextract.low.u32 %v3896
        %v3898 = vextract.high.u32 %v3896
        %v3899 = vmul.u32 %v3892, %v3883
        %v3900 = vadd.s32 %v3895, %v3897
        %vm3901 = vc.u32 %v3895, %v3897
        %v3902 = vadd.s32 %v3898, 1
        %v3903 = vsel %vm3901, %v3902, %v3898
        %v3904 = vadd.s32 %v3899, %v3903
        %v3905 = vadd.s32 %v3904, 536870912
        %v3906 = vshrl.u32 %v3905, 30
        %v3907 = vshll.u32 %v3906, 30
        %v3908 = vsub.s32 %v3904, %v3907
        %vm3909 = vcmp.lt.s32.totalorder %v3908, 0
        %v3910 = vsub.s32 0, %v3908
        %v3911 = vsel %vm3909, %v3910, %v3908
        %v3912 = vclz %v3911
        %v3913 = vsub.s32 %v3912, 2
        %vm3914 = vcmp.gt.s32.totalorder 0, %v3913
        %v3915 = vsel %vm3914, 0, %v3913
        %v3916 = vsub.s32 32, %v3915
        %v3917 = vshll.u32 %v3908, %v3915
        %v3918 = vshrl.u32 %v3900, %v3916
        %v3919 = vor.u32 %v3917, %v3918
        %v3920 = vsub.s32 4294967266, %v3915
        %v3921 = vadd.s32 %v3920, 127
        %v3922 = vshll.u32 %v3921, 23
        %v3923 = vor.u32 4788187, %v3922
        %v3924 = vand.u32 2147483647, %v3923
        %v3926 = vcvt.s32.f32 %v3919
        %v3927 = vmul.f32 %v3926, %v3924
        %v3928 = vxor.u32 %v3927, 2147483648
        %v3929 = vsel %vm3846, %v3928, %v3927
        %v3930 = vsub.s32 4, %v3906
        %v3931 = vsel %vm3846, %v3930, %v3906
        %v3932 = vsel %vm3845, %v722, %v3929
        %v3933 = vsel %vm3845, 0, %v3931
        %v3934 = vcosq.f32.pop %v3932
        %v3935 = vsinq.f32.pop %v3932
        %vm3936 = vweird.f32 %v722
        %v3937 = vadd.s32 %v3933, 3
        %v3938 = vand.u32 %v3937, 3
        %vm3939 = vcmp.lt.s32.totalorder %v3938, 2
        %vm3940 = vcmp.eq.s32.totalorder %v3938, 0
        %v3941 = vxor.u32 %v3935, 2147483648
        %v3942 = vsel %vm3940, %v3934, %v3941
        %vm3943 = vcmp.eq.s32.totalorder %v3938, 2
        %v3944 = vxor.u32 %v3934, 2147483648
        %v3945 = vsel %vm3943, %v3944, %v3935
        %v3946 = vsel %vm3939, %v3942, %v3945
        %v3947 = vsel %vm3936, nan, %v3946
        %v3948 = vand.u32 2147483647, %v723
        %vm3949 = vcmp.le.f32.partialorder %v3948, 0.7853982
        %vm3950 = vcmp.lt.s32.totalorder %v723, 0
        %v3951 = vand.u32 %v723, 2139095040
        %v3952 = vshrl.u32 %v3951, 23
        %v3953 = vsub.s32 %v3952, 127
        %v3954 = vand.u32 2147483647, %v723
        %v3955 = vand.u32 %v3954, 8388607
        %v3956 = vor.u32 %v3955, 8388608
        %v3957 = vsub.s32 0, %v3956
        %v3958 = vadd.s32 %v3953, 1
        %vm3959 = vcmp.gt.s32.totalorder %v3958, 0
        %v3960 = vsel %vm3959, %v3958, 0
        %v3961 = vshrl.u32 %v3960, 5
        %v3962 = vand.u32 %v3960, 31
        %v3963 = vsub.s32 32, %v3962
        %v3964 = vshrl.u32 683565275, %v3963
        %v3965 = vshll.u32 683565275, %v3962
        %v3966 = vshrl.u32 2475754826, %v3963
        %v3967 = vor.u32 %v3965, %v3966
        %v3968 = vshll.u32 2475754826, %v3962
        %v3969 = vshrl.u32 2131351028, %v3963
        %v3970 = vor.u32 %v3968, %v3969
        %v3971 = vshll.u32 2131351028, %v3962
        %v3972 = vshrl.u32 2102212464, %v3963
        %v3973 = vor.u32 %v3971, %v3972
        %v3974 = vshll.u32 2102212464, %v3962
        %v3975 = vshrl.u32 920167782, %v3963
        %v3976 = vor.u32 %v3974, %v3975
        %v3977 = vshll.u32 920167782, %v3962
        %v3978 = vshrl.u32 1326507024, %v3963
        %v3979 = vor.u32 %v3977, %v3978
        %vm3980 = vcmp.lt.s32.totalorder %v3961, 1
        %vm3981 = vcmp.lt.s32.totalorder %v3961, 2
        %vm3982 = vcmp.lt.s32.totalorder %v3961, 3
        %vm3983 = vcmp.lt.s32.totalorder %v3961, 4
        %v3984 = vsel %vm3980, %v3964, %v3967
        %v3985 = vsel %vm3983, %v3973, 2102212464
        %v3986 = vsel %vm3982, %v3970, %v3985
        %v3987 = vsel %vm3981, %v3984, %v3986
        %v3988 = vsel %vm3980, %v3967, %v3970
        %v3989 = vsel %vm3983, %v3976, 920167782
        %v3990 = vsel %vm3982, %v3973, %v3989
        %v3991 = vsel %vm3981, %v3988, %v3990
        %v3992 = vsel %vm3980, %v3970, %v3973
        %v3993 = vsel %vm3983, %v3979, 1326507024
        %v3994 = vsel %vm3982, %v3976, %v3993
        %v3995 = vsel %vm3981, %v3992, %v3994
        %v3996 = vshll.u32 %v3956, 8
        %v3997 = vmul.u32.u64.compose %v3996, %v3995
        %v3998 = vextract.low.u32 %v3997
        %v3999 = vextract.high.u32 %v3997
        %v4000 = vmul.u32.u64.compose %v3996, %v3991
        %v4001 = vextract.low.u32 %v4000
        %v4002 = vextract.high.u32 %v4000
        %v4003 = vmul.u32 %v3996, %v3987
        %v4004 = vadd.s32 %v3999, %v4001
        %vm4005 = vc.u32 %v3999, %v4001
        %v4006 = vadd.s32 %v4002, 1
        %v4007 = vsel %vm4005, %v4006, %v4002
        %v4008 = vadd.s32 %v4003, %v4007
        %v4009 = vadd.s32 %v4008, 536870912
        %v4010 = vshrl.u32 %v4009, 30
        %v4011 = vshll.u32 %v4010, 30
        %v4012 = vsub.s32 %v4008, %v4011
        %vm4013 = vcmp.lt.s32.totalorder %v4012, 0
        %v4014 = vsub.s32 0, %v4012
        %v4015 = vsel %vm4013, %v4014, %v4012
        %v4016 = vclz %v4015
        %v4017 = vsub.s32 %v4016, 2
        %vm4018 = vcmp.gt.s32.totalorder 0, %v4017
        %v4019 = vsel %vm4018, 0, %v4017
        %v4020 = vsub.s32 32, %v4019
        %v4021 = vshll.u32 %v4012, %v4019
        %v4022 = vshrl.u32 %v4004, %v4020
        %v4023 = vor.u32 %v4021, %v4022
        %v4024 = vsub.s32 4294967266, %v4019
        %v4025 = vadd.s32 %v4024, 127
        %v4026 = vshll.u32 %v4025, 23
        %v4027 = vor.u32 4788187, %v4026
        %v4028 = vand.u32 2147483647, %v4027
        %v4030 = vcvt.s32.f32 %v4023
        %v4031 = vmul.f32 %v4030, %v4028
        %v4032 = vxor.u32 %v4031, 2147483648
        %v4033 = vsel %vm3950, %v4032, %v4031
        %v4034 = vsub.s32 4, %v4010
        %v4035 = vsel %vm3950, %v4034, %v4010
        %v4036 = vsel %vm3949, %v723, %v4033
        %v4037 = vsel %vm3949, 0, %v4035
        %v4038 = vcosq.f32.pop %v4036
        %v4039 = vsinq.f32.pop %v4036
        %vm4040 = vweird.f32 %v723
        %v4041 = vadd.s32 %v4037, 3
        %v4042 = vand.u32 %v4041, 3
        %vm4043 = vcmp.lt.s32.totalorder %v4042, 2
        %vm4044 = vcmp.eq.s32.totalorder %v4042, 0
        %v4045 = vxor.u32 %v4039, 2147483648
        %v4046 = vsel %vm4044, %v4038, %v4045
        %vm4047 = vcmp.eq.s32.totalorder %v4042, 2
        %v4048 = vxor.u32 %v4038, 2147483648
        %v4049 = vsel %vm4047, %v4048, %v4039
        %v4050 = vsel %vm4043, %v4046, %v4049
        %v4051 = vsel %vm4040, nan, %v4050
        %4052 = vst [vmem:[%s264] sm:$0xff] %v827
        %4053 = vst [vmem:[%s264 + $0x8] sm:$0xff] %v931
        %4054 = vst [vmem:[%s264 + $0x10] sm:$0xff] %v1035
        %4055 = vst [vmem:[%s264 + $0x18] sm:$0xff] %v1139
        %4056 = vst [vmem:[%s264 + $0x20] sm:$0xff] %v1243
        %4057 = vst [vmem:[%s264 + $0x28] sm:$0xff] %v1347
        %4058 = vst [vmem:[%s264 + $0x30] sm:$0xff] %v1451
        %4059 = vst [vmem:[%s264 + $0x38] sm:$0xff] %v1555
        %4060 = vst [vmem:[%s264 + $0x40] sm:$0xff] %v1659
        %4061 = vst [vmem:[%s264 + $0x48] sm:$0xff] %v1763
        %4062 = vst [vmem:[%s264 + $0x50] sm:$0xff] %v1867
        %4063 = vst [vmem:[%s264 + $0x58] sm:$0xff] %v1971
        %4064 = vst [vmem:[%s264 + $0x60] sm:$0xff] %v2075
        %4065 = vst [vmem:[%s264 + $0x68] sm:$0xff] %v2179
        %4066 = vst [vmem:[%s264 + $0x70] sm:$0xff] %v2283
        %4067 = vst [vmem:[%s264 + $0x78] sm:$0xff] %v2387
        %4068 = vst [vmem:[%s264 + $0x80] sm:$0xff] %v2491
        %4069 = vst [vmem:[%s264 + $0x88] sm:$0xff] %v2595
        %4070 = vst [vmem:[%s264 + $0x90] sm:$0xff] %v2699
        %4071 = vst [vmem:[%s264 + $0x98] sm:$0xff] %v2803
        %4072 = vst [vmem:[%s264 + $0xa0] sm:$0xff] %v2907
        %4073 = vst [vmem:[%s264 + $0xa8] sm:$0xff] %v3011
        %4074 = vst [vmem:[%s264 + $0xb0] sm:$0xff] %v3115
        %4075 = vst [vmem:[%s264 + $0xb8] sm:$0xff] %v3219
        %4076 = vst [vmem:[%s264 + $0xc0] sm:$0xff] %v3323
        %4077 = vst [vmem:[%s264 + $0xc8] sm:$0xff] %v3427
        %4078 = vst [vmem:[%s264 + $0xd0] sm:$0xff] %v3531
        %4079 = vst [vmem:[%s264 + $0xd8] sm:$0xff] %v3635
        %4080 = vst [vmem:[%s264 + $0xe0] sm:$0xff] %v3739
        %4081 = vst [vmem:[%s264 + $0xe8] sm:$0xff] %v3843
        %4082 = vst [vmem:[%s264 + $0xf0] sm:$0xff] %v3947
        %4083 = vst [vmem:[%s264 + $0xf8] sm:$0xff] %v4051
        %s4084 = sand.u32 %s160, 1
        %s4085 = scalar_lea.sflag [#allocation3], %s4084
        %s4086 = sand.u32 %s160, 1
        %s4087 = smul.addr %s4086, 256
        %s4088 = scalar_lea.vmem [#allocation2], %s4087
        // Predicated region
        $region41: #{tpu_custom_call.1} parent=39 // pred_check
          %p4089 = pneg %p170
        $region42: #{tpu_custom_call.1} parent=39 // pred_check_branch
          %4091 = sbr.rel (%p4089) target = $region44
        $region43: #{tpu_custom_call.1} parent=39 // pred_region
          %s4092 = smul.u32 2, %s24
          %s4094 = ssub.s32 4096, 4096
          %4095 = vsyncadd %s4085, %s4094
          %s4096 = smul.addr %s23, 32
          %s4097 = sadd.s32 %s4092, %s4096
          %s4098 = smul.addr %s4097, 128
          %s4099 = scalar_lea.hbm %s5, %s4098
          %s4100 = sshll.u32 %s4088, 4
          %s4101 = int_to_ptr.vmem [resolvable:$true] %s4100
          %4106 = dma.vmem_to_hbm [thread:$0]  %s4101, 4096, %s4099, %s4085, 256, 256, 16
        $region44: #{tpu_custom_call.1} parent=39 // pred_fallthru
          _
      $region40: #{tpu_custom_call.1} parent=5 // pred_fallthru
        _
      %p4107 = scmp.le.s32.totalorder 2, %s14
      // Predicated region
      $region45: #{tpu_custom_call.1} parent=5 // pred_check
        %p4108 = pneg %p4107
      $region46: #{tpu_custom_call.1} parent=5 // pred_check_branch
        %4110 = sbr.rel (%p4108) target = $region48
      $region47: #{tpu_custom_call.1} parent=5 // pred_region
        %s4111 = ssub.s32 %s14, 2
        // Predicated region
        $region49: #{tpu_custom_call.1} parent=47 // pred_check
          %p4112 = pneg %p176
        $region50: #{tpu_custom_call.1} parent=47 // pred_check_branch
          %4114 = sbr.rel (%p4112) target = $region52
        $region51: #{tpu_custom_call.1} parent=47 // pred_region
          %s4115 = sand.u32 %s161, 1
          %s4116 = scalar_lea.sflag [#allocation3], %s4115
          %s4117 = sand.u32 %s161, 1
          %s4118 = smul.addr %s4117, 256
          %s4119 = scalar_lea.vmem [#allocation2], %s4118
          %4120 = dma.done %s4116, 4096
        $region52: #{tpu_custom_call.1} parent=47 // pred_fallthru
          _
      $region48: #{tpu_custom_call.1} parent=5 // pred_fallthru
        _
    $region6: #{tpu_custom_call.1} parent=1 // loop_footer
      %s18 = sadd.s32 1, %s14
    $region7: #{tpu_custom_call.1} parent=1 // loop_footer_branch
      %13 = sbr.rel target = $region3
    $region8: #{tpu_custom_call.1} parent=1 // loop_exit
      _
    %4121 = vsyncpa [#allocation3], 1
    %s4122 = scalar_lea.sflag [#allocation3], 1
    %4123 = vsyncpa %s4122, 1

</llo_original>
